<compile_context>
chip_gen: v7x
topology: tpu7x:2x2x1
jax: 0.10.0
libtpu: 0.0.40
codegen_flags: <defaults>
</compile_context>

<pallas_src>
import math
import functools

import jax
import jax.numpy as jnp
from jax import lax
from jax.experimental import pallas as pl
from jax.experimental.pallas import tpu as pltpu


# ----------------------------- in-kernel helpers -----------------------------

def _layer_norm(x, gamma, beta, eps):
    mean = jnp.mean(x, axis=-1, keepdims=True)
    var = jnp.mean((x - mean) ** 2, axis=-1, keepdims=True)
    return (x - mean) * lax.rsqrt(var + eps) * gamma + beta


def _softmax(x, axis):
    m = jnp.max(x, axis=axis, keepdims=True)
    e = jnp.exp(x - m)
    return e / jnp.sum(e, axis=axis, keepdims=True)


def _gelu_erf(x):
    # exact (erf-based) GELU, matching the PyTorch module
    return x * 0.5 * (1.0 + jax.scipy.special.erf(x / math.sqrt(2.0)))


# ------------------------------- the kernel ----------------------------------

def encoder_kernel(x_ref, pos_ref,
                   w_qkv, b_qkv, w_pos, b_pos, pos_ln_g, pos_ln_b,
                   wd, bd, ln1_g, ln1_b,
                   w1, b1, w2, b2, ln2_g, ln2_b,
                   out_ref, carry, ctx_ref,
                   *, BT, S, H, K, n_heads, head_size, ffn_cb, eps):
    """One grid step == one LightTransformerLayer applied to one batch tile."""
    f32 = jnp.float32
    bf16 = jnp.bfloat16
    N = BT * S                                     # token rows in this batch tile

    # Layer 0 of this batch tile: load the encoder input into the resident carry.
    @pl.when(pl.program_id(1) == 0)
    def _():
        carry[...] = x_ref[...].reshape(N, H).astype(f32)

    x = carry[...]                                 # (N, H) f32, resident across layers
    xb = x.astype(bf16)

    # ---- fused projection: [ q | k | v | interest scores (theta folded) | pad ] ----
    proj = jnp.dot(xb, w_qkv[...], preferred_element_type=f32) + b_qkv[...]
    q3 = proj[:, 0 * H:1 * H].reshape(BT, S, H)
    k3 = proj[:, 1 * H:2 * H].reshape(BT, S, H)
    v3 = proj[:, 2 * H:3 * H].reshape(BT, S, H)
    d3 = proj[:, 3 * H:3 * H + 2 * K].reshape(BT, S, 2 * K)

    # ---- ItemToInterestAggregation: lane-axis softmax over S, batched pooling ----
    d_t = jnp.swapaxes(d3, 1, 2)                   # (BT, 2K, S): softmax reduces over lanes
    D = _softmax(d_t, axis=-1).astype(bf16)
    k3b = k3.astype(bf16)
    v3b = v3.astype(bf16)
    k_pool = jnp.einsum('bks,bsh->bkh', D[:, :K, :], k3b,
                        preferred_element_type=f32)            # (BT, K, H)
    v_pool = jnp.einsum('bks,bsh->bkh', D[:, K:, :], v3b,
                        preferred_element_type=f32)            # (BT, K, H)

    # ---- positional branch (batch independent) ----
    pos_n = _layer_norm(pos_ref[...].astype(f32), pos_ln_g[...], pos_ln_b[...], eps)
    pqpk = jnp.dot(pos_n.astype(bf16), w_pos[...],
                   preferred_element_type=f32) + b_pos[...]    # (S, 2H)
    pos_scaling = float(head_size * 2) ** (-0.5)
    pq = pqpk[:, :H] * pos_scaling                 # (S, H) f32
    pk = pqpk[:, H:]                               # (S, H) f32

    inv_sqrt_d = 1.0 / math.sqrt(head_size)
    v3_t = jnp.swapaxes(v3, 1, 2)                  # (BT, H, S): shared operand for pos ctx

    # ---- per-head attention; per-head contexts land in lane slices of ctx_ref ----
    for h in range(n_heads):
        lo, hi = h * head_size, (h + 1) * head_size
        qh = q3[:, :, lo:hi].astype(bf16)          # (BT, S, hd)
        kph = k_pool[:, :, lo:hi].astype(bf16)     # (BT, K, hd)
        vph = v_pool[:, :, lo:hi].astype(bf16)     # (BT, K, hd)

        # item attention: scores transposed (BT, K, S) so the softmax reduces over lanes
        sc_t = jnp.einsum('bkd,bsd->bks', kph, qh,
                          preferred_element_type=f32) * inv_sqrt_d
        p_t = _softmax(sc_t, axis=-1).astype(bf16)                       # (BT, K, S)
        ctx_h = jnp.einsum('bks,bkd->bsd', p_t, vph,
                           preferred_element_type=f32)                   # (BT, S, hd)

        # absolute position bias, transposed: bias_t[j, i] == bias[i, j];
        # reference softmax(dim=-2) over i  ==  lane-axis softmax here.
        bias_t = lax.dot_general(pk[:, lo:hi].astype(bf16), pq[:, lo:hi].astype(bf16),
                                 (((1,), (1,)), ((), ())),
                                 preferred_element_type=f32) * inv_sqrt_d
        bias_sm = _softmax(bias_t, axis=-1).astype(bf16)                 # (S_j, S_i)

        # shared (batch-independent) positional context: (BT*hd, S_j) @ (S_j, S_i)
        vh_t = v3_t[:, lo:hi, :].reshape(BT * head_size, S).astype(bf16)
        ctx_p = jnp.dot(vh_t, bias_sm, preferred_element_type=f32)       # (BT*hd, S)
        ctx_p = jnp.swapaxes(ctx_p.reshape(BT, head_size, S), 1, 2)      # (BT, S, hd)

        ctx_ref[:, lo:hi] = (ctx_h + ctx_p).reshape(N, head_size).astype(bf16)

    # ---- ONE full-width output projection + residual + LayerNorm 1 ----
    hidden = jnp.dot(ctx_ref[...], wd[...], preferred_element_type=f32) + bd[...]
    hidden = _layer_norm(hidden + x, ln1_g[...], ln1_b[...], eps)
    carry[...] = hidden

    # ---- feed-forward, chunked over tokens so (rows, INNER) is never fully live ----
    rows_c = ffn_cb * S
    n_chunks = N // rows_c

    @pl.loop(0, n_chunks)
    def _(c):
        r0 = pl.multiple_of(c * rows_c, rows_c)
        hc = carry[pl.ds(r0, rows_c), :]                                 # (rows_c, H) f32
        ff = jnp.dot(hc.astype(bf16), w1[...], preferred_element_type=f32) + b1[...]
        ff = _gelu_erf(ff)
        ff = jnp.dot(ff.astype(bf16), w2[...], preferred_element_type=f32) + b2[...]
        oc = _layer_norm(ff + hc, ln2_g[...], ln2_b[...], eps)
        carry[pl.ds(r0, rows_c), :] = oc                                 # carry to next layer
        b0 = pl.multiple_of(c * ffn_cb, ffn_cb)
        out_ref[pl.ds(b0, ffn_cb), :, :] = oc.reshape(ffn_cb, S, H).astype(out_ref.dtype)


# ------------------------------- host wrappers --------------------------------

PACKED_ORDER = ("w_qkv", "b_qkv", "w_pos", "b_pos", "pos_ln_g", "pos_ln_b",
                "wd", "bd", "ln1_g", "ln1_b", "w1", "b1", "w2", "b2",
                "ln2_g", "ln2_b")


def _round_up(x, m):
    return (x + m - 1) // m * m


def _pack_layer(p):
    """Fuse QKV(+theta-folded interest scores) and pos_q|pos_k; pad lanes; cast to bf16."""
    bf16, f32 = jnp.bfloat16, jnp.float32
    w_qkv = jnp.concatenate([p["wq"], p["wk"], p["wv"],
                             p["wk"] @ p["theta_k"], p["wv"] @ p["theta_v"]], axis=1)
    b_qkv = jnp.concatenate([p["bq"], p["bk"], p["bv"],
                             p["bk"] @ p["theta_k"], p["bv"] @ p["theta_v"]], axis=1)
    width = w_qkv.shape[1]
    pad = _round_up(width, 128) - width            # keep the fused-proj output lane-dense
    if pad:
        w_qkv = jnp.pad(w_qkv, ((0, 0), (0, pad)))
        b_qkv = jnp.pad(b_qkv, ((0, 0), (0, pad)))
    w_pos = jnp.concatenate([p["wpq"], p["wpk"]], axis=1)
    b_pos = jnp.concatenate([p["bpq"], p["bpk"]], axis=1)
    return dict(
        w_qkv=w_qkv.astype(bf16), b_qkv=b_qkv.astype(f32),
        w_pos=w_pos.astype(bf16), b_pos=b_pos.astype(f32),
        pos_ln_g=p["pos_ln_g"].astype(f32), pos_ln_b=p["pos_ln_b"].astype(f32),
        wd=p["wd"].astype(bf16), bd=p["bd"].astype(f32),
        ln1_g=p["ln1_g"].astype(f32), ln1_b=p["ln1_b"].astype(f32),
        w1=p["w1"].astype(bf16), b1=p["b1"].astype(f32),
        w2=p["w2"].astype(bf16), b2=p["b2"].astype(f32),
        ln2_g=p["ln2_g"].astype(f32), ln2_b=p["ln2_b"].astype(f32))


def _pick_batch_tile(B, S, max_rows=2048):
    """Largest divisor of B that fits max_rows and still gives >= 2 tiles (megacore)."""
    best = None
    for bt in range(B, 0, -1):
        if B % bt:
            continue
        if bt * S > max_rows:
            continue
        if best is None:
            best = bt
        if B // bt >= 2:
            return bt
    return best if best is not None else B


def _pick_ffn_chunk(BT, S, max_rows=512):
    """Largest divisor of BT whose token-chunk (cb*S rows) stays under max_rows."""
    for cb in range(BT, 0, -1):
        if BT % cb == 0 and cb * S <= max_rows:
            return cb
    return 1


def light_transformer_encoder(x, pos_emb, layer_params, *, n_heads, k_interests, eps,
                              output_all_encoded_layers=True):
    B, S, H = x.shape
    L = len(layer_params)
    head_size = H // n_heads

    BT = _pick_batch_tile(B, S)
    n_btiles = B // BT
    ffn_cb = _pick_ffn_chunk(BT, S)

    packed = [_pack_layer(p) for p in layer_params]
    stacked = [jnp.stack([pk[name] for pk in packed], axis=0) for name in PACKED_ORDER]

    kernel = functools.partial(encoder_kernel, BT=BT, S=S, H=H, K=k_interests,
                               n_heads=n_heads, head_size=head_size,
                               ffn_cb=ffn_cb, eps=eps)

    def stacked_spec(arr):
        tail = tuple(arr.shape[1:])

        def idx(bt, l, _n=len(tail)):
            return (l,) + (0,) * _n

        return pl.BlockSpec((None,) + tail, idx)

    in_specs = ([pl.BlockSpec((BT, S, H), lambda bt, l: (bt, 0, 0)),
                 pl.BlockSpec((S, H), lambda bt, l: (0, 0))]
                + [stacked_spec(a) for a in stacked])

    if output_all_encoded_layers:
        out_shape = jax.ShapeDtypeStruct((L, B, S, H), x.dtype)
        out_spec = pl.BlockSpec((None, BT, S, H), lambda bt, l: (l, bt, 0, 0))
    else:
        # only the last layer survives: same (bt) block is revisited across layers and
        # written back to HBM once, holding layer L-1's result.
        out_shape = jax.ShapeDtypeStruct((B, S, H), x.dtype)
        out_spec = pl.BlockSpec((BT, S, H), lambda bt, l: (bt, 0, 0))

    out = pl.pallas_call(
        kernel,
        out_shape=out_shape,
        grid=(n_btiles, L),
        in_specs=in_specs,
        out_specs=out_spec,
        scratch_shapes=[pltpu.VMEM((BT * S, H), jnp.float32),    # resident activation
                        pltpu.VMEM((BT * S, H), jnp.bfloat16)],  # per-head ctx slab
        compiler_params=pltpu.CompilerParams(
            dimension_semantics=("parallel", "arbitrary"),       # batch tiles || layers seq
            vmem_limit_bytes=64 * 1024 * 1024),
    )(x, pos_emb, *stacked)

    if output_all_encoded_layers:
        return [out[l] for l in range(L)]
    return [out]


# ------------------------------ parameter init ---------------------------------

def init_layer_params(key, H, K, INNER):
    keys = iter(jax.random.split(key, 32))

    def lin(fan_in, fan_out):
        bound = 1.0 / math.sqrt(fan_in)
        w = jax.random.uniform(next(keys), (fan_in, fan_out), jnp.float32, -bound, bound)
        b = jax.random.uniform(next(keys), (1, fan_out), jnp.float32, -bound, bound)
        return w, b

    p = {}
    p["wq"], p["bq"] = lin(H, H)
    p["wk"], p["bk"] = lin(H, H)
    p["wv"], p["bv"] = lin(H, H)
    p["theta_k"] = jax.random.normal(next(keys), (H, K), jnp.float32)
    p["theta_v"] = jax.random.normal(next(keys), (H, K), jnp.float32)
    p["wpq"], p["bpq"] = lin(H, H)
    p["wpk"], p["bpk"] = lin(H, H)
    p["pos_ln_g"] = jnp.ones((1, H), jnp.float32)
    p["pos_ln_b"] = jnp.zeros((1, H), jnp.float32)
    p["wd"], p["bd"] = lin(H, H)
    p["ln1_g"] = jnp.ones((1, H), jnp.float32)
    p["ln1_b"] = jnp.zeros((1, H), jnp.float32)
    p["w1"], p["b1"] = lin(H, INNER)
    p["w2"], p["b2"] = lin(INNER, H)
    p["ln2_g"] = jnp.ones((1, H), jnp.float32)
    p["ln2_b"] = jnp.zeros((1, H), jnp.float32)
    return p


# ---------------------------------- main ---------------------------------------

if __name__ == "__main__":
    B, S, H = 4, 8, 32
    N_LAYERS, N_HEADS, K_INTERESTS, INNER = 2, 2, 5, 64
    EPS = 1e-12

    root = jax.random.PRNGKey(0)
    k_x, k_pos, k_par = jax.random.split(root, 3)

    hidden_states = jax.random.normal(k_x, (B, S, H), jnp.float32)
    pos_emb = jax.random.normal(k_pos, (S, H), jnp.float32)

    # PyTorch module deep-copies one layer -> all layers start with identical weights
    shared = init_layer_params(k_par, H, K_INTERESTS, INNER)
    layer_params = [shared for _ in range(N_LAYERS)]

    outs = light_transformer_encoder(hidden_states, pos_emb, layer_params,
                                     n_heads=N_HEADS, k_interests=K_INTERESTS, eps=EPS,
                                     output_all_encoded_layers=True)
    for o in outs:
        jax.block_until_ready(o)

    assert len(outs) == N_LAYERS
    assert outs[-1].shape == (B, S, H)
    print("KERNEL_OK")
</pallas_src>

<mosaic_0001>
module attributes {stable_mosaic.version = 11 : i64} {
  func.func @encoder_kernel(%arg0: i32, %arg1: i32, %arg2: memref<2x8x32xf32, #tpu.memory_space<vmem>>, %arg3: memref<8x32xf32, #tpu.memory_space<vmem>>, %arg4: memref<1x32x128xbf16, #tpu.memory_space<vmem>>, %arg5: memref<1x1x128xf32, #tpu.memory_space<vmem>>, %arg6: memref<1x32x64xbf16, #tpu.memory_space<vmem>>, %arg7: memref<1x1x64xf32, #tpu.memory_space<vmem>>, %arg8: memref<1x1x32xf32, #tpu.memory_space<vmem>>, %arg9: memref<1x1x32xf32, #tpu.memory_space<vmem>>, %arg10: memref<1x32x32xbf16, #tpu.memory_space<vmem>>, %arg11: memref<1x1x32xf32, #tpu.memory_space<vmem>>, %arg12: memref<1x1x32xf32, #tpu.memory_space<vmem>>, %arg13: memref<1x1x32xf32, #tpu.memory_space<vmem>>, %arg14: memref<1x32x64xbf16, #tpu.memory_space<vmem>>, %arg15: memref<1x1x64xf32, #tpu.memory_space<vmem>>, %arg16: memref<1x64x32xbf16, #tpu.memory_space<vmem>>, %arg17: memref<1x1x32xf32, #tpu.memory_space<vmem>>, %arg18: memref<1x1x32xf32, #tpu.memory_space<vmem>>, %arg19: memref<1x1x32xf32, #tpu.memory_space<vmem>>, %arg20: memref<1x2x8x32xf32, #tpu.memory_space<vmem>>, %arg21: memref<16x32xf32, #tpu.memory_space<vmem>>, %arg22: memref<16x32xbf16, #tpu.memory_space<vmem>>) attributes {dimension_semantics = [#tpu.dimension_semantics<parallel>, #tpu.dimension_semantics<arbitrary>], iteration_bounds = array<i64: 2, 2>, scalar_prefetch = 0 : i64, scratch_operands = 2 : i64, tpu.core_type = #tpu.core_type<tc>, window_params = [{transform_indices = @transform_0, window_bounds = array<i64: 2, 8, 32>}, {pipeline_mode = #tpu.pipeline_mode<synchronous>, transform_indices = @transform_1, window_bounds = array<i64: 8, 32>}, {transform_indices = @transform_2, window_bounds = array<i64: 1, 32, 128>}, {transform_indices = @transform_3, window_bounds = array<i64: 1, 1, 128>}, {transform_indices = @transform_4, window_bounds = array<i64: 1, 32, 64>}, {transform_indices = @transform_5, window_bounds = array<i64: 1, 1, 64>}, {transform_indices = @transform_6, window_bounds = array<i64: 1, 1, 32>}, {transform_indices = @transform_7, window_bounds = array<i64: 1, 1, 32>}, {transform_indices = @transform_8, window_bounds = array<i64: 1, 32, 32>}, {transform_indices = @transform_9, window_bounds = array<i64: 1, 1, 32>}, {transform_indices = @transform_10, window_bounds = array<i64: 1, 1, 32>}, {transform_indices = @transform_11, window_bounds = array<i64: 1, 1, 32>}, {transform_indices = @transform_12, window_bounds = array<i64: 1, 32, 64>}, {transform_indices = @transform_13, window_bounds = array<i64: 1, 1, 64>}, {transform_indices = @transform_14, window_bounds = array<i64: 1, 64, 32>}, {transform_indices = @transform_15, window_bounds = array<i64: 1, 1, 32>}, {transform_indices = @transform_16, window_bounds = array<i64: 1, 1, 32>}, {transform_indices = @transform_17, window_bounds = array<i64: 1, 1, 32>}, {transform_indices = @transform_18, window_bounds = array<i64: 1, 2, 8, 32>}]} {
    %c0_i32 = arith.constant 0 : i32
    %0 = arith.cmpi eq, %arg1, %c0_i32 : i32
    %1 = arith.extui %0 : i1 to i32
    %c0_i32_0 = arith.constant 0 : i32
    %2 = arith.cmpi ne, %1, %c0_i32_0 : i32
    scf.if %2 {
      %c0_114 = arith.constant 0 : index
      %c0_115 = arith.constant 0 : index
      %c0_116 = arith.constant 0 : index
      %273 = vector.load %arg2[%c0_114, %c0_115, %c0_116] : memref<2x8x32xf32, #tpu.memory_space<vmem>>, vector<2x8x32xf32>
      %274 = vector.shape_cast %273 : vector<2x8x32xf32> to vector<16x32xf32>
      %c0_117 = arith.constant 0 : index
      %c0_118 = arith.constant 0 : index
      %275 = vector.load %arg21[%c0_117, %c0_118] : memref<16x32xf32, #tpu.memory_space<vmem>>, vector<16x32xf32>
      tpu.vector_store %arg21[%c0_117, %c0_118], %274 {strides = array<i32>} : memref<16x32xf32, #tpu.memory_space<vmem>>, vector<16x32xf32>,
    } else {
    }
    %c0 = arith.constant 0 : index
    %c0_1 = arith.constant 0 : index
    %3 = vector.load %arg21[%c0, %c0_1] : memref<16x32xf32, #tpu.memory_space<vmem>>, vector<16x32xf32>
    %4 = arith.truncf %3 : vector<16x32xf32> to vector<16x32xbf16>
    %c0_2 = arith.constant 0 : index
    %c0_3 = arith.constant 0 : index
    %c0_4 = arith.constant 0 : index
    %5 = vector.load %arg4[%c0_2, %c0_3, %c0_4] : memref<1x32x128xbf16, #tpu.memory_space<vmem>>, vector<1x32x128xbf16>
    %6 = vector.shape_cast %5 : vector<1x32x128xbf16> to vector<32x128xbf16>
    %cst = arith.constant dense<0.000000e+00> : vector<16x128xf32>
    %7 = tpu.matmul %4, %6, %cst {dimension_numbers = #tpu.dot_dimension_numbers<[1], [0], [0], [1], [0, 0, 1, 1], [], []>} : vector<16x32xbf16>, vector<32x128xbf16>, vector<16x128xf32> -> vector<16x128xf32>
    %c0_5 = arith.constant 0 : index
    %c0_6 = arith.constant 0 : index
    %c0_7 = arith.constant 0 : index
    %8 = vector.load %arg5[%c0_5, %c0_6, %c0_7] : memref<1x1x128xf32, #tpu.memory_space<vmem>>, vector<1x1x128xf32>
    %9 = vector.shape_cast %8 : vector<1x1x128xf32> to vector<1x128xf32>
    %10 = vector.broadcast %9 : vector<1x128xf32> to vector<16x128xf32>
    %11 = arith.addf %7, %10 : vector<16x128xf32>
    %12 = vector.extract_strided_slice %11 {offsets = [0, 0], sizes = [16, 32], strides = [1, 1]} : vector<16x128xf32> to vector<16x32xf32>
    %13 = vector.shape_cast %12 : vector<16x32xf32> to vector<2x8x32xf32>
    %14 = vector.extract_strided_slice %11 {offsets = [0, 32], sizes = [16, 32], strides = [1, 1]} : vector<16x128xf32> to vector<16x32xf32>
    %15 = vector.shape_cast %14 : vector<16x32xf32> to vector<2x8x32xf32>
    %16 = vector.extract_strided_slice %11 {offsets = [0, 64], sizes = [16, 32], strides = [1, 1]} : vector<16x128xf32> to vector<16x32xf32>
    %17 = vector.shape_cast %16 : vector<16x32xf32> to vector<2x8x32xf32>
    %18 = vector.extract_strided_slice %11 {offsets = [0, 96], sizes = [16, 10], strides = [1, 1]} : vector<16x128xf32> to vector<16x10xf32>
    %19 = vector.shape_cast %18 : vector<16x10xf32> to vector<2x8x10xf32>
    %20 = tpu.transpose %19, [0, 2, 1] : vector<2x8x10xf32> -> vector<2x10x8xf32>
    %cst_8 = arith.constant dense<0xFF800000> : vector<2x10xf32>
    %21 = vector.multi_reduction <maximumf>, %20, %cst_8 [2] : vector<2x10x8xf32> to vector<2x10xf32>
    %22 = vector.shape_cast %21 : vector<2x10xf32> to vector<2x10x1xf32>
    %23 = vector.broadcast %22 : vector<2x10x1xf32> to vector<2x10x8xf32>
    %24 = arith.subf %20, %23 : vector<2x10x8xf32>
    %25 = math.exp %24 : vector<2x10x8xf32>
    %cst_9 = arith.constant dense<0.000000e+00> : vector<2x10xf32>
    %26 = vector.multi_reduction <add>, %25, %cst_9 [2] : vector<2x10x8xf32> to vector<2x10xf32>
    %27 = vector.shape_cast %26 : vector<2x10xf32> to vector<2x10x1xf32>
    %28 = vector.broadcast %27 : vector<2x10x1xf32> to vector<2x10x8xf32>
    %29 = arith.divf %25, %28 : vector<2x10x8xf32>
    %30 = arith.truncf %29 : vector<2x10x8xf32> to vector<2x10x8xbf16>
    %31 = arith.truncf %15 : vector<2x8x32xf32> to vector<2x8x32xbf16>
    %32 = arith.truncf %17 : vector<2x8x32xf32> to vector<2x8x32xbf16>
    %33 = vector.extract_strided_slice %30 {offsets = [0, 0, 0], sizes = [2, 5, 8], strides = [1, 1, 1]} : vector<2x10x8xbf16> to vector<2x5x8xbf16>
    "tpu.trace_start"() <{level = 10 : i32, message = "bks,bsh->bkh"}> : () -> ()
    %cst_10 = arith.constant dense<0.000000e+00> : vector<2x5x32xf32>
    %34 = tpu.matmul %33, %31, %cst_10 {dimension_numbers = #tpu.dot_dimension_numbers<[2], [1], [1], [2], [0, 0, 0, 1, 1, 2], [0], [0]>} : vector<2x5x8xbf16>, vector<2x8x32xbf16>, vector<2x5x32xf32> -> vector<2x5x32xf32>
    "tpu.trace_stop"() : () -> ()
    %35 = vector.extract_strided_slice %30 {offsets = [0, 5, 0], sizes = [2, 5, 8], strides = [1, 1, 1]} : vector<2x10x8xbf16> to vector<2x5x8xbf16>
    "tpu.trace_start"() <{level = 10 : i32, message = "bks,bsh->bkh"}> : () -> ()
    %cst_11 = arith.constant dense<0.000000e+00> : vector<2x5x32xf32>
    %36 = tpu.matmul %35, %32, %cst_11 {dimension_numbers = #tpu.dot_dimension_numbers<[2], [1], [1], [2], [0, 0, 0, 1, 1, 2], [0], [0]>} : vector<2x5x8xbf16>, vector<2x8x32xbf16>, vector<2x5x32xf32> -> vector<2x5x32xf32>
    "tpu.trace_stop"() : () -> ()
    %c0_12 = arith.constant 0 : index
    %c0_13 = arith.constant 0 : index
    %37 = vector.load %arg3[%c0_12, %c0_13] : memref<8x32xf32, #tpu.memory_space<vmem>>, vector<8x32xf32>
    %c0_14 = arith.constant 0 : index
    %c0_15 = arith.constant 0 : index
    %c0_16 = arith.constant 0 : index
    %38 = vector.load %arg8[%c0_14, %c0_15, %c0_16] : memref<1x1x32xf32, #tpu.memory_space<vmem>>, vector<1x1x32xf32>
    %39 = vector.shape_cast %38 : vector<1x1x32xf32> to vector<1x32xf32>
    %c0_17 = arith.constant 0 : index
    %c0_18 = arith.constant 0 : index
    %c0_19 = arith.constant 0 : index
    %40 = vector.load %arg9[%c0_17, %c0_18, %c0_19] : memref<1x1x32xf32, #tpu.memory_space<vmem>>, vector<1x1x32xf32>
    %41 = vector.shape_cast %40 : vector<1x1x32xf32> to vector<1x32xf32>
    %cst_20 = arith.constant dense<0.000000e+00> : vector<8xf32>
    %42 = vector.multi_reduction <add>, %37, %cst_20 [1] : vector<8x32xf32> to vector<8xf32>
    %43 = vector.shape_cast %42 : vector<8xf32> to vector<8x1xf32>
    %cst_21 = arith.constant 3.200000e+01 : f32
    %44 = vector.broadcast %cst_21 : f32 to vector<8x1xf32>
    %45 = arith.divf %43, %44 : vector<8x1xf32>
    %46 = vector.broadcast %45 : vector<8x1xf32> to vector<8x32xf32>
    %47 = arith.subf %37, %46 : vector<8x32xf32>
    %48 = arith.mulf %47, %47 : vector<8x32xf32>
    %cst_22 = arith.constant dense<0.000000e+00> : vector<8xf32>
    %49 = vector.multi_reduction <add>, %48, %cst_22 [1] : vector<8x32xf32> to vector<8xf32>
    %50 = vector.shape_cast %49 : vector<8xf32> to vector<8x1xf32>
    %cst_23 = arith.constant 3.200000e+01 : f32
    %51 = vector.broadcast %cst_23 : f32 to vector<8x1xf32>
    %52 = arith.divf %50, %51 : vector<8x1xf32>
    %53 = vector.broadcast %45 : vector<8x1xf32> to vector<8x32xf32>
    %54 = arith.subf %37, %53 : vector<8x32xf32>
    %cst_24 = arith.constant 9.99999996E-13 : f32
    %55 = vector.broadcast %cst_24 : f32 to vector<8x1xf32>
    %56 = arith.addf %52, %55 : vector<8x1xf32>
    %57 = math.rsqrt %56 : vector<8x1xf32>
    %58 = vector.broadcast %57 : vector<8x1xf32> to vector<8x32xf32>
    %59 = arith.mulf %54, %58 : vector<8x32xf32>
    %60 = vector.broadcast %39 : vector<1x32xf32> to vector<8x32xf32>
    %61 = arith.mulf %59, %60 : vector<8x32xf32>
    %62 = vector.broadcast %41 : vector<1x32xf32> to vector<8x32xf32>
    %63 = arith.addf %61, %62 : vector<8x32xf32>
    %64 = arith.truncf %63 : vector<8x32xf32> to vector<8x32xbf16>
    %c0_25 = arith.constant 0 : index
    %c0_26 = arith.constant 0 : index
    %c0_27 = arith.constant 0 : index
    %65 = vector.load %arg6[%c0_25, %c0_26, %c0_27] : memref<1x32x64xbf16, #tpu.memory_space<vmem>>, vector<1x32x64xbf16>
    %66 = vector.shape_cast %65 : vector<1x32x64xbf16> to vector<32x64xbf16>
    %cst_28 = arith.constant dense<0.000000e+00> : vector<8x64xf32>
    %67 = tpu.matmul %64, %66, %cst_28 {dimension_numbers = #tpu.dot_dimension_numbers<[1], [0], [0], [1], [0, 0, 1, 1], [], []>} : vector<8x32xbf16>, vector<32x64xbf16>, vector<8x64xf32> -> vector<8x64xf32>
    %c0_29 = arith.constant 0 : index
    %c0_30 = arith.constant 0 : index
    %c0_31 = arith.constant 0 : index
    %68 = vector.load %arg7[%c0_29, %c0_30, %c0_31] : memref<1x1x64xf32, #tpu.memory_space<vmem>>, vector<1x1x64xf32>
    %69 = vector.shape_cast %68 : vector<1x1x64xf32> to vector<1x64xf32>
    %70 = vector.broadcast %69 : vector<1x64xf32> to vector<8x64xf32>
    %71 = arith.addf %67, %70 : vector<8x64xf32>
    %72 = vector.extract_strided_slice %71 {offsets = [0, 0], sizes = [8, 32], strides = [1, 1]} : vector<8x64xf32> to vector<8x32xf32>
    %cst_32 = arith.constant 0.176776692 : f32
    %73 = vector.broadcast %cst_32 : f32 to vector<8x32xf32>
    %74 = arith.mulf %72, %73 : vector<8x32xf32>
    %75 = vector.extract_strided_slice %71 {offsets = [0, 32], sizes = [8, 32], strides = [1, 1]} : vector<8x64xf32> to vector<8x32xf32>
    %76 = tpu.transpose %17, [0, 2, 1] : vector<2x8x32xf32> -> vector<2x32x8xf32>
    %77 = vector.extract_strided_slice %13 {offsets = [0, 0, 0], sizes = [2, 8, 16], strides = [1, 1, 1]} : vector<2x8x32xf32> to vector<2x8x16xf32>
    %78 = arith.truncf %77 : vector<2x8x16xf32> to vector<2x8x16xbf16>
    %79 = vector.extract_strided_slice %34 {offsets = [0, 0, 0], sizes = [2, 5, 16], strides = [1, 1, 1]} : vector<2x5x32xf32> to vector<2x5x16xf32>
    %80 = arith.truncf %79 : vector<2x5x16xf32> to vector<2x5x16xbf16>
    %81 = vector.extract_strided_slice %36 {offsets = [0, 0, 0], sizes = [2, 5, 16], strides = [1, 1, 1]} : vector<2x5x32xf32> to vector<2x5x16xf32>
    %82 = arith.truncf %81 : vector<2x5x16xf32> to vector<2x5x16xbf16>
    "tpu.trace_start"() <{level = 10 : i32, message = "bkd,bsd->bks"}> : () -> ()
    %cst_33 = arith.constant dense<0.000000e+00> : vector<2x5x8xf32>
    %83 = tpu.matmul %80, %78, %cst_33 {dimension_numbers = #tpu.dot_dimension_numbers<[2], [2], [1], [1], [0, 0, 0, 1, 1, 1], [0], [0]>} : vector<2x5x16xbf16>, vector<2x8x16xbf16>, vector<2x5x8xf32> -> vector<2x5x8xf32>
    "tpu.trace_stop"() : () -> ()
    %cst_34 = arith.constant 2.500000e-01 : f32
    %84 = vector.broadcast %cst_34 : f32 to vector<2x5x8xf32>
    %85 = arith.mulf %83, %84 : vector<2x5x8xf32>
    %cst_35 = arith.constant dense<0xFF800000> : vector<2x5xf32>
    %86 = vector.multi_reduction <maximumf>, %85, %cst_35 [2] : vector<2x5x8xf32> to vector<2x5xf32>
    %87 = vector.shape_cast %86 : vector<2x5xf32> to vector<2x5x1xf32>
    %88 = vector.broadcast %87 : vector<2x5x1xf32> to vector<2x5x8xf32>
    %89 = arith.subf %85, %88 : vector<2x5x8xf32>
    %90 = math.exp %89 : vector<2x5x8xf32>
    %cst_36 = arith.constant dense<0.000000e+00> : vector<2x5xf32>
    %91 = vector.multi_reduction <add>, %90, %cst_36 [2] : vector<2x5x8xf32> to vector<2x5xf32>
    %92 = vector.shape_cast %91 : vector<2x5xf32> to vector<2x5x1xf32>
    %93 = vector.broadcast %92 : vector<2x5x1xf32> to vector<2x5x8xf32>
    %94 = arith.divf %90, %93 : vector<2x5x8xf32>
    %95 = arith.truncf %94 : vector<2x5x8xf32> to vector<2x5x8xbf16>
    "tpu.trace_start"() <{level = 10 : i32, message = "bks,bkd->bsd"}> : () -> ()
    %cst_37 = arith.constant dense<0.000000e+00> : vector<2x8x16xf32>
    %96 = tpu.matmul %95, %82, %cst_37 {dimension_numbers = #tpu.dot_dimension_numbers<[1], [1], [2], [2], [0, 0, 0, 2, 1, 2], [0], [0]>} : vector<2x5x8xbf16>, vector<2x5x16xbf16>, vector<2x8x16xf32> -> vector<2x8x16xf32>
    "tpu.trace_stop"() : () -> ()
    %97 = vector.extract_strided_slice %75 {offsets = [0, 0], sizes = [8, 16], strides = [1, 1]} : vector<8x32xf32> to vector<8x16xf32>
    %98 = arith.truncf %97 : vector<8x16xf32> to vector<8x16xbf16>
    %99 = vector.extract_strided_slice %74 {offsets = [0, 0], sizes = [8, 16], strides = [1, 1]} : vector<8x32xf32> to vector<8x16xf32>
    %100 = arith.truncf %99 : vector<8x16xf32> to vector<8x16xbf16>
    %cst_38 = arith.constant dense<0.000000e+00> : vector<8x8xf32>
    %101 = tpu.matmul %98, %100, %cst_38 {dimension_numbers = #tpu.dot_dimension_numbers<[1], [1], [0], [0], [0, 0, 1, 0], [], []>} : vector<8x16xbf16>, vector<8x16xbf16>, vector<8x8xf32> -> vector<8x8xf32>
    %cst_39 = arith.constant 2.500000e-01 : f32
    %102 = vector.broadcast %cst_39 : f32 to vector<8x8xf32>
    %103 = arith.mulf %101, %102 : vector<8x8xf32>
    %cst_40 = arith.constant dense<0xFF800000> : vector<8xf32>
    %104 = vector.multi_reduction <maximumf>, %103, %cst_40 [1] : vector<8x8xf32> to vector<8xf32>
    %105 = vector.shape_cast %104 : vector<8xf32> to vector<8x1xf32>
    %106 = vector.broadcast %105 : vector<8x1xf32> to vector<8x8xf32>
    %107 = arith.subf %103, %106 : vector<8x8xf32>
    %108 = math.exp %107 : vector<8x8xf32>
    %cst_41 = arith.constant dense<0.000000e+00> : vector<8xf32>
    %109 = vector.multi_reduction <add>, %108, %cst_41 [1] : vector<8x8xf32> to vector<8xf32>
    %110 = vector.shape_cast %109 : vector<8xf32> to vector<8x1xf32>
    %111 = vector.broadcast %110 : vector<8x1xf32> to vector<8x8xf32>
    %112 = arith.divf %108, %111 : vector<8x8xf32>
    %113 = arith.truncf %112 : vector<8x8xf32> to vector<8x8xbf16>
    %114 = vector.extract_strided_slice %76 {offsets = [0, 0, 0], sizes = [2, 16, 8], strides = [1, 1, 1]} : vector<2x32x8xf32> to vector<2x16x8xf32>
    %115 = vector.shape_cast %114 : vector<2x16x8xf32> to vector<32x8xf32>
    %116 = arith.truncf %115 : vector<32x8xf32> to vector<32x8xbf16>
    %cst_42 = arith.constant dense<0.000000e+00> : vector<32x8xf32>
    %117 = tpu.matmul %116, %113, %cst_42 {dimension_numbers = #tpu.dot_dimension_numbers<[1], [0], [0], [1], [0, 0, 1, 1], [], []>} : vector<32x8xbf16>, vector<8x8xbf16>, vector<32x8xf32> -> vector<32x8xf32>
    %118 = vector.shape_cast %117 : vector<32x8xf32> to vector<2x16x8xf32>
    %119 = tpu.transpose %118, [0, 2, 1] : vector<2x16x8xf32> -> vector<2x8x16xf32>
    %120 = arith.addf %96, %119 : vector<2x8x16xf32>
    %121 = vector.shape_cast %120 : vector<2x8x16xf32> to vector<16x16xf32>
    %122 = arith.truncf %121 : vector<16x16xf32> to vector<16x16xbf16>
    %c0_43 = arith.constant 0 : index
    %c0_44 = arith.constant 0 : index
    %123 = vector.load %arg22[%c0_43, %c0_44] : memref<16x32xbf16, #tpu.memory_space<vmem>>, vector<16x16xbf16>
    tpu.vector_store %arg22[%c0_43, %c0_44], %122 {strides = array<i32>} : memref<16x32xbf16, #tpu.memory_space<vmem>>, vector<16x16xbf16>,
    %124 = vector.extract_strided_slice %13 {offsets = [0, 0, 16], sizes = [2, 8, 16], strides = [1, 1, 1]} : vector<2x8x32xf32> to vector<2x8x16xf32>
    %125 = arith.truncf %124 : vector<2x8x16xf32> to vector<2x8x16xbf16>
    %126 = vector.extract_strided_slice %34 {offsets = [0, 0, 16], sizes = [2, 5, 16], strides = [1, 1, 1]} : vector<2x5x32xf32> to vector<2x5x16xf32>
    %127 = arith.truncf %126 : vector<2x5x16xf32> to vector<2x5x16xbf16>
    %128 = vector.extract_strided_slice %36 {offsets = [0, 0, 16], sizes = [2, 5, 16], strides = [1, 1, 1]} : vector<2x5x32xf32> to vector<2x5x16xf32>
    %129 = arith.truncf %128 : vector<2x5x16xf32> to vector<2x5x16xbf16>
    "tpu.trace_start"() <{level = 10 : i32, message = "bkd,bsd->bks"}> : () -> ()
    %cst_45 = arith.constant dense<0.000000e+00> : vector<2x5x8xf32>
    %130 = tpu.matmul %127, %125, %cst_45 {dimension_numbers = #tpu.dot_dimension_numbers<[2], [2], [1], [1], [0, 0, 0, 1, 1, 1], [0], [0]>} : vector<2x5x16xbf16>, vector<2x8x16xbf16>, vector<2x5x8xf32> -> vector<2x5x8xf32>
    "tpu.trace_stop"() : () -> ()
    %cst_46 = arith.constant 2.500000e-01 : f32
    %131 = vector.broadcast %cst_46 : f32 to vector<2x5x8xf32>
    %132 = arith.mulf %130, %131 : vector<2x5x8xf32>
    %cst_47 = arith.constant dense<0xFF800000> : vector<2x5xf32>
    %133 = vector.multi_reduction <maximumf>, %132, %cst_47 [2] : vector<2x5x8xf32> to vector<2x5xf32>
    %134 = vector.shape_cast %133 : vector<2x5xf32> to vector<2x5x1xf32>
    %135 = vector.broadcast %134 : vector<2x5x1xf32> to vector<2x5x8xf32>
    %136 = arith.subf %132, %135 : vector<2x5x8xf32>
    %137 = math.exp %136 : vector<2x5x8xf32>
    %cst_48 = arith.constant dense<0.000000e+00> : vector<2x5xf32>
    %138 = vector.multi_reduction <add>, %137, %cst_48 [2] : vector<2x5x8xf32> to vector<2x5xf32>
    %139 = vector.shape_cast %138 : vector<2x5xf32> to vector<2x5x1xf32>
    %140 = vector.broadcast %139 : vector<2x5x1xf32> to vector<2x5x8xf32>
    %141 = arith.divf %137, %140 : vector<2x5x8xf32>
    %142 = arith.truncf %141 : vector<2x5x8xf32> to vector<2x5x8xbf16>
    "tpu.trace_start"() <{level = 10 : i32, message = "bks,bkd->bsd"}> : () -> ()
    %cst_49 = arith.constant dense<0.000000e+00> : vector<2x8x16xf32>
    %143 = tpu.matmul %142, %129, %cst_49 {dimension_numbers = #tpu.dot_dimension_numbers<[1], [1], [2], [2], [0, 0, 0, 2, 1, 2], [0], [0]>} : vector<2x5x8xbf16>, vector<2x5x16xbf16>, vector<2x8x16xf32> -> vector<2x8x16xf32>
    "tpu.trace_stop"() : () -> ()
    %144 = vector.extract_strided_slice %75 {offsets = [0, 16], sizes = [8, 16], strides = [1, 1]} : vector<8x32xf32> to vector<8x16xf32>
    %145 = arith.truncf %144 : vector<8x16xf32> to vector<8x16xbf16>
    %146 = vector.extract_strided_slice %74 {offsets = [0, 16], sizes = [8, 16], strides = [1, 1]} : vector<8x32xf32> to vector<8x16xf32>
    %147 = arith.truncf %146 : vector<8x16xf32> to vector<8x16xbf16>
    %cst_50 = arith.constant dense<0.000000e+00> : vector<8x8xf32>
    %148 = tpu.matmul %145, %147, %cst_50 {dimension_numbers = #tpu.dot_dimension_numbers<[1], [1], [0], [0], [0, 0, 1, 0], [], []>} : vector<8x16xbf16>, vector<8x16xbf16>, vector<8x8xf32> -> vector<8x8xf32>
    %cst_51 = arith.constant 2.500000e-01 : f32
    %149 = vector.broadcast %cst_51 : f32 to vector<8x8xf32>
    %150 = arith.mulf %148, %149 : vector<8x8xf32>
    %cst_52 = arith.constant dense<0xFF800000> : vector<8xf32>
    %151 = vector.multi_reduction <maximumf>, %150, %cst_52 [1] : vector<8x8xf32> to vector<8xf32>
    %152 = vector.shape_cast %151 : vector<8xf32> to vector<8x1xf32>
    %153 = vector.broadcast %152 : vector<8x1xf32> to vector<8x8xf32>
    %154 = arith.subf %150, %153 : vector<8x8xf32>
    %155 = math.exp %154 : vector<8x8xf32>
    %cst_53 = arith.constant dense<0.000000e+00> : vector<8xf32>
    %156 = vector.multi_reduction <add>, %155, %cst_53 [1] : vector<8x8xf32> to vector<8xf32>
    %157 = vector.shape_cast %156 : vector<8xf32> to vector<8x1xf32>
    %158 = vector.broadcast %157 : vector<8x1xf32> to vector<8x8xf32>
    %159 = arith.divf %155, %158 : vector<8x8xf32>
    %160 = arith.truncf %159 : vector<8x8xf32> to vector<8x8xbf16>
    %161 = vector.extract_strided_slice %76 {offsets = [0, 16, 0], sizes = [2, 16, 8], strides = [1, 1, 1]} : vector<2x32x8xf32> to vector<2x16x8xf32>
    %162 = vector.shape_cast %161 : vector<2x16x8xf32> to vector<32x8xf32>
    %163 = arith.truncf %162 : vector<32x8xf32> to vector<32x8xbf16>
    %cst_54 = arith.constant dense<0.000000e+00> : vector<32x8xf32>
    %164 = tpu.matmul %163, %160, %cst_54 {dimension_numbers = #tpu.dot_dimension_numbers<[1], [0], [0], [1], [0, 0, 1, 1], [], []>} : vector<32x8xbf16>, vector<8x8xbf16>, vector<32x8xf32> -> vector<32x8xf32>
    %165 = vector.shape_cast %164 : vector<32x8xf32> to vector<2x16x8xf32>
    %166 = tpu.transpose %165, [0, 2, 1] : vector<2x16x8xf32> -> vector<2x8x16xf32>
    %167 = arith.addf %143, %166 : vector<2x8x16xf32>
    %168 = vector.shape_cast %167 : vector<2x8x16xf32> to vector<16x16xf32>
    %169 = arith.truncf %168 : vector<16x16xf32> to vector<16x16xbf16>
    %c0_55 = arith.constant 0 : index
    %c16 = arith.constant 16 : index
    %170 = vector.load %arg22[%c0_55, %c16] : memref<16x32xbf16, #tpu.memory_space<vmem>>, vector<16x16xbf16>
    tpu.vector_store %arg22[%c0_55, %c16], %169 {strides = array<i32>} : memref<16x32xbf16, #tpu.memory_space<vmem>>, vector<16x16xbf16>,
    %c0_56 = arith.constant 0 : index
    %c0_57 = arith.constant 0 : index
    %171 = vector.load %arg22[%c0_56, %c0_57] : memref<16x32xbf16, #tpu.memory_space<vmem>>, vector<16x32xbf16>
    %c0_58 = arith.constant 0 : index
    %c0_59 = arith.constant 0 : index
    %c0_60 = arith.constant 0 : index
    %172 = vector.load %arg10[%c0_58, %c0_59, %c0_60] : memref<1x32x32xbf16, #tpu.memory_space<vmem>>, vector<1x32x32xbf16>
    %173 = vector.shape_cast %172 : vector<1x32x32xbf16> to vector<32x32xbf16>
    %cst_61 = arith.constant dense<0.000000e+00> : vector<16x32xf32>
    %174 = tpu.matmul %171, %173, %cst_61 {dimension_numbers = #tpu.dot_dimension_numbers<[1], [0], [0], [1], [0, 0, 1, 1], [], []>} : vector<16x32xbf16>, vector<32x32xbf16>, vector<16x32xf32> -> vector<16x32xf32>
    %c0_62 = arith.constant 0 : index
    %c0_63 = arith.constant 0 : index
    %c0_64 = arith.constant 0 : index
    %175 = vector.load %arg11[%c0_62, %c0_63, %c0_64] : memref<1x1x32xf32, #tpu.memory_space<vmem>>, vector<1x1x32xf32>
    %176 = vector.shape_cast %175 : vector<1x1x32xf32> to vector<1x32xf32>
    %177 = vector.broadcast %176 : vector<1x32xf32> to vector<16x32xf32>
    %178 = arith.addf %174, %177 : vector<16x32xf32>
    %179 = arith.addf %178, %3 : vector<16x32xf32>
    %c0_65 = arith.constant 0 : index
    %c0_66 = arith.constant 0 : index
    %c0_67 = arith.constant 0 : index
    %180 = vector.load %arg12[%c0_65, %c0_66, %c0_67] : memref<1x1x32xf32, #tpu.memory_space<vmem>>, vector<1x1x32xf32>
    %181 = vector.shape_cast %180 : vector<1x1x32xf32> to vector<1x32xf32>
    %c0_68 = arith.constant 0 : index
    %c0_69 = arith.constant 0 : index
    %c0_70 = arith.constant 0 : index
    %182 = vector.load %arg13[%c0_68, %c0_69, %c0_70] : memref<1x1x32xf32, #tpu.memory_space<vmem>>, vector<1x1x32xf32>
    %183 = vector.shape_cast %182 : vector<1x1x32xf32> to vector<1x32xf32>
    %cst_71 = arith.constant dense<0.000000e+00> : vector<16xf32>
    %184 = vector.multi_reduction <add>, %179, %cst_71 [1] : vector<16x32xf32> to vector<16xf32>
    %185 = vector.shape_cast %184 : vector<16xf32> to vector<16x1xf32>
    %cst_72 = arith.constant 3.200000e+01 : f32
    %186 = vector.broadcast %cst_72 : f32 to vector<16x1xf32>
    %187 = arith.divf %185, %186 : vector<16x1xf32>
    %188 = vector.broadcast %187 : vector<16x1xf32> to vector<16x32xf32>
    %189 = arith.subf %179, %188 : vector<16x32xf32>
    %190 = arith.mulf %189, %189 : vector<16x32xf32>
    %cst_73 = arith.constant dense<0.000000e+00> : vector<16xf32>
    %191 = vector.multi_reduction <add>, %190, %cst_73 [1] : vector<16x32xf32> to vector<16xf32>
    %192 = vector.shape_cast %191 : vector<16xf32> to vector<16x1xf32>
    %cst_74 = arith.constant 3.200000e+01 : f32
    %193 = vector.broadcast %cst_74 : f32 to vector<16x1xf32>
    %194 = arith.divf %192, %193 : vector<16x1xf32>
    %195 = vector.broadcast %187 : vector<16x1xf32> to vector<16x32xf32>
    %196 = arith.subf %179, %195 : vector<16x32xf32>
    %cst_75 = arith.constant 9.99999996E-13 : f32
    %197 = vector.broadcast %cst_75 : f32 to vector<16x1xf32>
    %198 = arith.addf %194, %197 : vector<16x1xf32>
    %199 = math.rsqrt %198 : vector<16x1xf32>
    %200 = vector.broadcast %199 : vector<16x1xf32> to vector<16x32xf32>
    %201 = arith.mulf %196, %200 : vector<16x32xf32>
    %202 = vector.broadcast %181 : vector<1x32xf32> to vector<16x32xf32>
    %203 = arith.mulf %201, %202 : vector<16x32xf32>
    %204 = vector.broadcast %183 : vector<1x32xf32> to vector<16x32xf32>
    %205 = arith.addf %203, %204 : vector<16x32xf32>
    %c0_76 = arith.constant 0 : index
    %c0_77 = arith.constant 0 : index
    %206 = vector.load %arg21[%c0_76, %c0_77] : memref<16x32xf32, #tpu.memory_space<vmem>>, vector<16x32xf32>
    tpu.vector_store %arg21[%c0_76, %c0_77], %205 {strides = array<i32>} : memref<16x32xf32, #tpu.memory_space<vmem>>, vector<16x32xf32>,
    %c0_i32_78 = arith.constant 0 : i32
    %c1_i32 = arith.constant 1 : i32
    %207 = arith.muli %c0_i32_78, %c1_i32 : i32
    %c0_i32_79 = arith.constant 0 : i32
    %208 = arith.addi %c0_i32_79, %207 : i32
    %c16_i32 = arith.constant 16 : i32
    %209 = arith.muli %208, %c16_i32 : i32
    %210 = tpu.assume_multiple %209, 16 : i32
    %211 = arith.index_cast %210 : i32 to index
    %c0_80 = arith.constant 0 : index
    %212 = vector.load %arg21[%211, %c0_80] : memref<16x32xf32, #tpu.memory_space<vmem>>, vector<16x32xf32>
    %213 = arith.truncf %212 : vector<16x32xf32> to vector<16x32xbf16>
    %c0_81 = arith.constant 0 : index
    %c0_82 = arith.constant 0 : index
    %c0_83 = arith.constant 0 : index
    %214 = vector.load %arg14[%c0_81, %c0_82, %c0_83] : memref<1x32x64xbf16, #tpu.memory_space<vmem>>, vector<1x32x64xbf16>
    %215 = vector.shape_cast %214 : vector<1x32x64xbf16> to vector<32x64xbf16>
    %cst_84 = arith.constant dense<0.000000e+00> : vector<16x64xf32>
    %216 = tpu.matmul %213, %215, %cst_84 {dimension_numbers = #tpu.dot_dimension_numbers<[1], [0], [0], [1], [0, 0, 1, 1], [], []>} : vector<16x32xbf16>, vector<32x64xbf16>, vector<16x64xf32> -> vector<16x64xf32>
    %c0_85 = arith.constant 0 : index
    %c0_86 = arith.constant 0 : index
    %c0_87 = arith.constant 0 : index
    %217 = vector.load %arg15[%c0_85, %c0_86, %c0_87] : memref<1x1x64xf32, #tpu.memory_space<vmem>>, vector<1x1x64xf32>
    %218 = vector.shape_cast %217 : vector<1x1x64xf32> to vector<1x64xf32>
    %219 = vector.broadcast %218 : vector<1x64xf32> to vector<16x64xf32>
    %220 = arith.addf %216, %219 : vector<16x64xf32>
    %cst_88 = arith.constant 5.000000e-01 : f32
    %221 = vector.broadcast %cst_88 : f32 to vector<16x64xf32>
    %222 = arith.mulf %220, %221 : vector<16x64xf32>
    %cst_89 = arith.constant 1.41421354 : f32
    %223 = vector.broadcast %cst_89 : f32 to vector<16x64xf32>
    %224 = arith.divf %220, %223 : vector<16x64xf32>
    %225 = math.erf %224 : vector<16x64xf32>
    %cst_90 = arith.constant 1.000000e+00 : f32
    %226 = vector.broadcast %cst_90 : f32 to vector<16x64xf32>
    %227 = arith.addf %226, %225 : vector<16x64xf32>
    %228 = arith.mulf %222, %227 : vector<16x64xf32>
    %229 = arith.truncf %228 : vector<16x64xf32> to vector<16x64xbf16>
    %c0_91 = arith.constant 0 : index
    %c0_92 = arith.constant 0 : index
    %c0_93 = arith.constant 0 : index
    %230 = vector.load %arg16[%c0_91, %c0_92, %c0_93] : memref<1x64x32xbf16, #tpu.memory_space<vmem>>, vector<1x64x32xbf16>
    %231 = vector.shape_cast %230 : vector<1x64x32xbf16> to vector<64x32xbf16>
    %cst_94 = arith.constant dense<0.000000e+00> : vector<16x32xf32>
    %232 = tpu.matmul %229, %231, %cst_94 {dimension_numbers = #tpu.dot_dimension_numbers<[1], [0], [0], [1], [0, 0, 1, 1], [], []>} : vector<16x64xbf16>, vector<64x32xbf16>, vector<16x32xf32> -> vector<16x32xf32>
    %c0_95 = arith.constant 0 : index
    %c0_96 = arith.constant 0 : index
    %c0_97 = arith.constant 0 : index
    %233 = vector.load %arg17[%c0_95, %c0_96, %c0_97] : memref<1x1x32xf32, #tpu.memory_space<vmem>>, vector<1x1x32xf32>
    %234 = vector.shape_cast %233 : vector<1x1x32xf32> to vector<1x32xf32>
    %235 = vector.broadcast %234 : vector<1x32xf32> to vector<16x32xf32>
    %236 = arith.addf %232, %235 : vector<16x32xf32>
    %237 = arith.addf %236, %212 : vector<16x32xf32>
    %c0_98 = arith.constant 0 : index
    %c0_99 = arith.constant 0 : index
    %c0_100 = arith.constant 0 : index
    %238 = vector.load %arg18[%c0_98, %c0_99, %c0_100] : memref<1x1x32xf32, #tpu.memory_space<vmem>>, vector<1x1x32xf32>
    %239 = vector.shape_cast %238 : vector<1x1x32xf32> to vector<1x32xf32>
    %c0_101 = arith.constant 0 : index
    %c0_102 = arith.constant 0 : index
    %c0_103 = arith.constant 0 : index
    %240 = vector.load %arg19[%c0_101, %c0_102, %c0_103] : memref<1x1x32xf32, #tpu.memory_space<vmem>>, vector<1x1x32xf32>
    %241 = vector.shape_cast %240 : vector<1x1x32xf32> to vector<1x32xf32>
    %cst_104 = arith.constant dense<0.000000e+00> : vector<16xf32>
    %242 = vector.multi_reduction <add>, %237, %cst_104 [1] : vector<16x32xf32> to vector<16xf32>
    %243 = vector.shape_cast %242 : vector<16xf32> to vector<16x1xf32>
    %cst_105 = arith.constant 3.200000e+01 : f32
    %244 = vector.broadcast %cst_105 : f32 to vector<16x1xf32>
    %245 = arith.divf %243, %244 : vector<16x1xf32>
    %246 = vector.broadcast %245 : vector<16x1xf32> to vector<16x32xf32>
    %247 = arith.subf %237, %246 : vector<16x32xf32>
    %248 = arith.mulf %247, %247 : vector<16x32xf32>
    %cst_106 = arith.constant dense<0.000000e+00> : vector<16xf32>
    %249 = vector.multi_reduction <add>, %248, %cst_106 [1] : vector<16x32xf32> to vector<16xf32>
    %250 = vector.shape_cast %249 : vector<16xf32> to vector<16x1xf32>
    %cst_107 = arith.constant 3.200000e+01 : f32
    %251 = vector.broadcast %cst_107 : f32 to vector<16x1xf32>
    %252 = arith.divf %250, %251 : vector<16x1xf32>
    %253 = vector.broadcast %245 : vector<16x1xf32> to vector<16x32xf32>
    %254 = arith.subf %237, %253 : vector<16x32xf32>
    %cst_108 = arith.constant 9.99999996E-13 : f32
    %255 = vector.broadcast %cst_108 : f32 to vector<16x1xf32>
    %256 = arith.addf %252, %255 : vector<16x1xf32>
    %257 = math.rsqrt %256 : vector<16x1xf32>
    %258 = vector.broadcast %257 : vector<16x1xf32> to vector<16x32xf32>
    %259 = arith.mulf %254, %258 : vector<16x32xf32>
    %260 = vector.broadcast %239 : vector<1x32xf32> to vector<16x32xf32>
    %261 = arith.mulf %259, %260 : vector<16x32xf32>
    %262 = vector.broadcast %241 : vector<1x32xf32> to vector<16x32xf32>
    %263 = arith.addf %261, %262 : vector<16x32xf32>
    %264 = arith.index_cast %210 : i32 to index
    %c0_109 = arith.constant 0 : index
    %265 = vector.load %arg21[%264, %c0_109] : memref<16x32xf32, #tpu.memory_space<vmem>>, vector<16x32xf32>
    tpu.vector_store %arg21[%264, %c0_109], %263 {strides = array<i32>} : memref<16x32xf32, #tpu.memory_space<vmem>>, vector<16x32xf32>,
    %c2_i32 = arith.constant 2 : i32
    %266 = arith.muli %208, %c2_i32 : i32
    %267 = tpu.assume_multiple %266, 2 : i32
    %268 = vector.shape_cast %263 : vector<16x32xf32> to vector<2x8x32xf32>
    %c0_110 = arith.constant 0 : index
    %269 = arith.index_cast %267 : i32 to index
    %c0_111 = arith.constant 0 : index
    %c0_112 = arith.constant 0 : index
    %270 = vector.load %arg20[%c0_110, %269, %c0_111, %c0_112] : memref<1x2x8x32xf32, #tpu.memory_space<vmem>>, vector<1x2x8x32xf32>
    %271 = vector.shape_cast %270 : vector<1x2x8x32xf32> to vector<2x8x32xf32>
    %272 = vector.shape_cast %268 : vector<2x8x32xf32> to vector<1x2x8x32xf32>
    tpu.vector_store %arg20[%c0_110, %269, %c0_111, %c0_112], %272 {strides = array<i32>} : memref<1x2x8x32xf32, #tpu.memory_space<vmem>>, vector<1x2x8x32xf32>,
    %c1_i32_113 = arith.constant 1 : i32
    return
  }
  func.func @transform_0(%arg0: i32, %arg1: i32) -> (i32, i32, i32) {
    %c0_i32 = arith.constant 0 : i32
    %c0_i32_0 = arith.constant 0 : i32
    %c0_i32_1 = arith.constant 0 : i32
    return %arg0, %c0_i32, %c0_i32_0 : i32, i32, i32
  }
  func.func @transform_1(%arg0: i32, %arg1: i32) -> (i32, i32) {
    %c0_i32 = arith.constant 0 : i32
    %c0_i32_0 = arith.constant 0 : i32
    %c0_i32_1 = arith.constant 0 : i32
    return %c0_i32, %c0_i32_0 : i32, i32
  }
  func.func @transform_2(%arg0: i32, %arg1: i32) -> (i32, i32, i32) {
    %c0_i32 = arith.constant 0 : i32
    %c0_i32_0 = arith.constant 0 : i32
    %c0_i32_1 = arith.constant 0 : i32
    return %arg1, %c0_i32, %c0_i32_0 : i32, i32, i32
  }
  func.func @transform_3(%arg0: i32, %arg1: i32) -> (i32, i32, i32) {
    %c0_i32 = arith.constant 0 : i32
    %c0_i32_0 = arith.constant 0 : i32
    %c0_i32_1 = arith.constant 0 : i32
    return %arg1, %c0_i32, %c0_i32_0 : i32, i32, i32
  }
  func.func @transform_4(%arg0: i32, %arg1: i32) -> (i32, i32, i32) {
    %c0_i32 = arith.constant 0 : i32
    %c0_i32_0 = arith.constant 0 : i32
    %c0_i32_1 = arith.constant 0 : i32
    return %arg1, %c0_i32, %c0_i32_0 : i32, i32, i32
  }
  func.func @transform_5(%arg0: i32, %arg1: i32) -> (i32, i32, i32) {
    %c0_i32 = arith.constant 0 : i32
    %c0_i32_0 = arith.constant 0 : i32
    %c0_i32_1 = arith.constant 0 : i32
    return %arg1, %c0_i32, %c0_i32_0 : i32, i32, i32
  }
  func.func @transform_6(%arg0: i32, %arg1: i32) -> (i32, i32, i32) {
    %c0_i32 = arith.constant 0 : i32
    %c0_i32_0 = arith.constant 0 : i32
    %c0_i32_1 = arith.constant 0 : i32
    return %arg1, %c0_i32, %c0_i32_0 : i32, i32, i32
  }
  func.func @transform_7(%arg0: i32, %arg1: i32) -> (i32, i32, i32) {
    %c0_i32 = arith.constant 0 : i32
    %c0_i32_0 = arith.constant 0 : i32
    %c0_i32_1 = arith.constant 0 : i32
    return %arg1, %c0_i32, %c0_i32_0 : i32, i32, i32
  }
  func.func @transform_8(%arg0: i32, %arg1: i32) -> (i32, i32, i32) {
    %c0_i32 = arith.constant 0 : i32
    %c0_i32_0 = arith.constant 0 : i32
    %c0_i32_1 = arith.constant 0 : i32
    return %arg1, %c0_i32, %c0_i32_0 : i32, i32, i32
  }
  func.func @transform_9(%arg0: i32, %arg1: i32) -> (i32, i32, i32) {
    %c0_i32 = arith.constant 0 : i32
    %c0_i32_0 = arith.constant 0 : i32
    %c0_i32_1 = arith.constant 0 : i32
    return %arg1, %c0_i32, %c0_i32_0 : i32, i32, i32
  }
  func.func @transform_10(%arg0: i32, %arg1: i32) -> (i32, i32, i32) {
    %c0_i32 = arith.constant 0 : i32
    %c0_i32_0 = arith.constant 0 : i32
    %c0_i32_1 = arith.constant 0 : i32
    return %arg1, %c0_i32, %c0_i32_0 : i32, i32, i32
  }
  func.func @transform_11(%arg0: i32, %arg1: i32) -> (i32, i32, i32) {
    %c0_i32 = arith.constant 0 : i32
    %c0_i32_0 = arith.constant 0 : i32
    %c0_i32_1 = arith.constant 0 : i32
    return %arg1, %c0_i32, %c0_i32_0 : i32, i32, i32
  }
  func.func @transform_12(%arg0: i32, %arg1: i32) -> (i32, i32, i32) {
    %c0_i32 = arith.constant 0 : i32
    %c0_i32_0 = arith.constant 0 : i32
    %c0_i32_1 = arith.constant 0 : i32
    return %arg1, %c0_i32, %c0_i32_0 : i32, i32, i32
  }
  func.func @transform_13(%arg0: i32, %arg1: i32) -> (i32, i32, i32) {
    %c0_i32 = arith.constant 0 : i32
    %c0_i32_0 = arith.constant 0 : i32
    %c0_i32_1 = arith.constant 0 : i32
    return %arg1, %c0_i32, %c0_i32_0 : i32, i32, i32
  }
  func.func @transform_14(%arg0: i32, %arg1: i32) -> (i32, i32, i32) {
    %c0_i32 = arith.constant 0 : i32
    %c0_i32_0 = arith.constant 0 : i32
    %c0_i32_1 = arith.constant 0 : i32
    return %arg1, %c0_i32, %c0_i32_0 : i32, i32, i32
  }
  func.func @transform_15(%arg0: i32, %arg1: i32) -> (i32, i32, i32) {
    %c0_i32 = arith.constant 0 : i32
    %c0_i32_0 = arith.constant 0 : i32
    %c0_i32_1 = arith.constant 0 : i32
    return %arg1, %c0_i32, %c0_i32_0 : i32, i32, i32
  }
  func.func @transform_16(%arg0: i32, %arg1: i32) -> (i32, i32, i32) {
    %c0_i32 = arith.constant 0 : i32
    %c0_i32_0 = arith.constant 0 : i32
    %c0_i32_1 = arith.constant 0 : i32
    return %arg1, %c0_i32, %c0_i32_0 : i32, i32, i32
  }
  func.func @transform_17(%arg0: i32, %arg1: i32) -> (i32, i32, i32) {
    %c0_i32 = arith.constant 0 : i32
    %c0_i32_0 = arith.constant 0 : i32
    %c0_i32_1 = arith.constant 0 : i32
    return %arg1, %c0_i32, %c0_i32_0 : i32, i32, i32
  }
  func.func @transform_18(%arg0: i32, %arg1: i32) -> (i32, i32, i32, i32) {
    %c0_i32 = arith.constant 0 : i32
    %c0_i32_0 = arith.constant 0 : i32
    %c0_i32_1 = arith.constant 0 : i32
    return %arg1, %arg0, %c0_i32, %c0_i32_0 : i32, i32, i32, i32
  }
}

</mosaic_0001>

<llo_original>
// kernel: tpu_custom_call.1
$region0: #{tpu_custom_call.1}
  #allocation0 [shape = 'u32[]', space=smem, size = 0x4, offset = 0x4, fixed_abs, tag = 'smem constant byte address 0x4 - core index']
  #allocation1 [shape = 'u32[144,128]{1,0:T(1,128)}', space=vmem, size = 0x12000, scoped, tag = 'internal scratch']
  #allocation2 [shape = 'f32[16,32]{1,0:T(8,128)}', space=vmem, size = 0x2000, scoped, tag = 'scratch operand']
  #allocation3 [shape = 'bf16[16,32]{1,0:T(16,128)(2,1)}', space=vmem, size = 0x1000, scoped, tag = 'scratch operand']
  %s0 = inlined_call_operand.hbm [shape: f32[4,8,32], index: 0, kind: input, shape index: {}]
  %s1 = inlined_call_operand.hbm [shape: f32[8,32], index: 1, kind: input, shape index: {}]
  %s2 = inlined_call_operand.hbm [shape: bf16[2,32,128], index: 2, kind: input, shape index: {}]
  %s3 = inlined_call_operand.hbm [shape: f32[2,1,128], index: 3, kind: input, shape index: {}]
  %s4 = inlined_call_operand.hbm [shape: bf16[2,32,64], index: 4, kind: input, shape index: {}]
  %s5 = inlined_call_operand.hbm [shape: f32[2,1,64], index: 5, kind: input, shape index: {}]
  %s6 = inlined_call_operand.hbm [shape: f32[2,1,32], index: 6, kind: input, shape index: {}]
  %s7 = inlined_call_operand.hbm [shape: f32[2,1,32], index: 7, kind: input, shape index: {}]
  %s8 = inlined_call_operand.hbm [shape: bf16[2,32,32], index: 8, kind: input, shape index: {}]
  %s9 = inlined_call_operand.hbm [shape: f32[2,1,32], index: 9, kind: input, shape index: {}]
  %s10 = inlined_call_operand.hbm [shape: f32[2,1,32], index: 10, kind: input, shape index: {}]
  %s11 = inlined_call_operand.hbm [shape: f32[2,1,32], index: 11, kind: input, shape index: {}]
  %s12 = inlined_call_operand.hbm [shape: bf16[2,32,64], index: 12, kind: input, shape index: {}]
  %s13 = inlined_call_operand.hbm [shape: f32[2,1,64], index: 13, kind: input, shape index: {}]
  %s14 = inlined_call_operand.hbm [shape: bf16[2,64,32], index: 14, kind: input, shape index: {}]
  %s15 = inlined_call_operand.hbm [shape: f32[2,1,32], index: 15, kind: input, shape index: {}]
  %s16 = inlined_call_operand.hbm [shape: f32[2,1,32], index: 16, kind: input, shape index: {}]
  %s17 = inlined_call_operand.hbm [shape: f32[2,1,32], index: 17, kind: input, shape index: {}]
  %s18 = inlined_call_operand.hbm [shape: f32[2,4,8,32], index: 18, kind: output, shape index: {}]
  %s19 = sld [smem:[#allocation0]]
  $region181: #{tpu_custom_call.1} parent=0
    _
  %s21 = ssub.s32 1, %s19
  %s22 = scalar_select 0, %s21, %s19
  $region1: #{tpu_custom_call.1} parent=0
    #allocation4 [shape = 'u8[16384]{0}', space=vmem, size = 0x4000, scoped, tag = 'input window, operand 0']
    #allocation5 [shape = 's32[2]{0}', space=sflag, size = 0x8, scoped, tag = 'scoped memory for tpu_custom_call.1']
    #allocation6 [shape = 's32[2]{0}', space=sflag, size = 0x8, scoped, tag = 'scoped memory for tpu_custom_call.1']
    #allocation7 [shape = 'u8[4096]{0}', space=vmem, size = 0x1000, scoped, tag = 'input window, operand 1, single buffered']
    #allocation8 [shape = 's32[1]{0}', space=sflag, size = 0x4, scoped, tag = 'scoped memory for tpu_custom_call.1']
    #allocation9 [shape = 'u8[16384]{0}', space=vmem, size = 0x4000, scoped, tag = 'input window, operand 2']
    #allocation10 [shape = 'u8[1024]{0}', space=vmem, size = 0x400, scoped, tag = 'input window, operand 3']
    #allocation11 [shape = 'u8[16384]{0}', space=vmem, size = 0x4000, scoped, tag = 'input window, operand 4']
    #allocation12 [shape = 'u8[1024]{0}', space=vmem, size = 0x400, scoped, tag = 'input window, operand 5']
    #allocation13 [shape = 'u8[1024]{0}', space=vmem, size = 0x400, scoped, tag = 'input window, operand 6']
    #allocation14 [shape = 'u8[1024]{0}', space=vmem, size = 0x400, scoped, tag = 'input window, operand 7']
    #allocation15 [shape = 'u8[16384]{0}', space=vmem, size = 0x4000, scoped, tag = 'input window, operand 8']
    #allocation16 [shape = 'u8[1024]{0}', space=vmem, size = 0x400, scoped, tag = 'input window, operand 9']
    #allocation17 [shape = 'u8[1024]{0}', space=vmem, size = 0x400, scoped, tag = 'input window, operand 10']
    #allocation18 [shape = 'u8[1024]{0}', space=vmem, size = 0x400, scoped, tag = 'input window, operand 11']
    #allocation19 [shape = 'u8[16384]{0}', space=vmem, size = 0x4000, scoped, tag = 'input window, operand 12']
    #allocation20 [shape = 'u8[1024]{0}', space=vmem, size = 0x400, scoped, tag = 'input window, operand 13']
    #allocation21 [shape = 'u8[32768]{0}', space=vmem, size = 0x8000, scoped, tag = 'input window, operand 14']
    #allocation22 [shape = 'u8[1024]{0}', space=vmem, size = 0x400, scoped, tag = 'input window, operand 15']
    #allocation23 [shape = 'u8[1024]{0}', space=vmem, size = 0x400, scoped, tag = 'input window, operand 16']
    #allocation24 [shape = 'u8[1024]{0}', space=vmem, size = 0x400, scoped, tag = 'input window, operand 17']
    #allocation25 [shape = 'u8[16384]{0}', space=vmem, size = 0x4000, scoped, tag = 'output window, operand 0']
    %23 = vsyncpa [#allocation5], 0
    %s24 = scalar_lea.sflag [#allocation5], 1
    %25 = vsyncpa %s24, 0
    %26 = vsyncpa [#allocation8], 0
    %27 = vsyncpa [#allocation6], 0
    %s28 = scalar_lea.sflag [#allocation6], 1
    %29 = vsyncpa %s28, 0
    loop: start=0, step=1, limit=6
    $region2: #{tpu_custom_call.1} parent=1 // loop_pre_header
      _
    $region3: #{tpu_custom_call.1} parent=1 // loop_header
      %s31 = sphi 0, %s35
      %p32 = scmp.ge.s32.totalorder %s31, 6
      %s38 = sphi 0, %s50
      %s39 = sphi 0, %s46
      %s40 = sphi 0, %s38
      %s41 = sphi 0, %s39
      %s42 = sphi 0, %s40
      %s43 = sphi 0, %s41
      %s53 = sphi 0, %s55
      %s56 = sphi 0, %s53
      %s57 = sphi 0, %s56
      %s73 = sphi 0, %s57
      %s77 = sphi 0, %s77
      %s79 = sphi 0, %s77
      %s80 = sphi 0, %s79
      %s94 = sphi 0, %s80
      %s100 = sphi 0, %s102
      %s103 = sphi 0, %s100
      %s104 = sphi 0, %s103
      %s120 = sphi 0, %s104
      %s126 = sphi 0, %s128
      %s129 = sphi 0, %s126
      %s130 = sphi 0, %s129
      %s146 = sphi 0, %s130
      %s152 = sphi 0, %s154
      %s155 = sphi 0, %s152
      %s156 = sphi 0, %s155
      %s172 = sphi 0, %s156
      %s178 = sphi 0, %s180
      %s181 = sphi 0, %s178
      %s182 = sphi 0, %s181
      %s198 = sphi 0, %s182
      %s204 = sphi 0, %s206
      %s207 = sphi 0, %s204
      %s208 = sphi 0, %s207
      %s224 = sphi 0, %s208
      %s230 = sphi 0, %s232
      %s233 = sphi 0, %s230
      %s234 = sphi 0, %s233
      %s250 = sphi 0, %s234
      %s256 = sphi 0, %s258
      %s259 = sphi 0, %s256
      %s260 = sphi 0, %s259
      %s276 = sphi 0, %s260
      %s282 = sphi 0, %s284
      %s285 = sphi 0, %s282
      %s286 = sphi 0, %s285
      %s302 = sphi 0, %s286
      %s308 = sphi 0, %s310
      %s311 = sphi 0, %s308
      %s312 = sphi 0, %s311
      %s328 = sphi 0, %s312
      %s334 = sphi 0, %s336
      %s337 = sphi 0, %s334
      %s338 = sphi 0, %s337
      %s354 = sphi 0, %s338
      %s360 = sphi 0, %s362
      %s363 = sphi 0, %s360
      %s364 = sphi 0, %s363
      %s380 = sphi 0, %s364
      %s386 = sphi 0, %s388
      %s389 = sphi 0, %s386
      %s390 = sphi 0, %s389
      %s406 = sphi 0, %s390
      %s412 = sphi 0, %s414
      %s415 = sphi 0, %s412
      %s416 = sphi 0, %s415
      %s432 = sphi 0, %s416
      %s438 = sphi 0, %s440
      %s441 = sphi 0, %s438
      %s442 = sphi 0, %s441
      %s458 = sphi 0, %s442
      %s464 = sphi 0, %s466
      %s467 = sphi 0, %s464
      %s468 = sphi 0, %s467
      %s484 = sphi 0, %s468
      %s490 = sphi 0, %s492
      %s493 = sphi 0, %s490
      %s494 = sphi 0, %s493
      %s510 = sphi 0, %s494
      %s518 = sphi 0, %s520
      %s521 = sphi 0, %s518
      %s522 = sphi 0, %s521
      %s538 = sphi 0, %s522
    $region4: #{tpu_custom_call.1} parent=1 // loop_header_branch
      %34 = sbr.rel (%p32) target = $region8
    $region5: #{tpu_custom_call.1} parent=1 // loop_body
      %s36 = ssub.s32 %s31, 1
      %s37 = ssub.s32 %s31, 2
      %s44 = sadd.s32 1, %s39
      %p45 = scmp.ge.s32.totalorder %s44, 2
      %s46 = scalar_select %p45, 0, %s44
      %s47 = sadd.s32 1, %s38
      %s48 = scalar_select %p45, %s47, %s38
      %p49 = scmp.ge.s32.totalorder %s48, 2
      %s50 = scalar_select %p49, 0, %s48
      %s51 = ssub.s32 %s38, %s50
      %p52 = scmp.eq.s32.totalorder %s51, 0
      %s54 = sadd.s32 %s53, 1
      %s55 = scalar_select %p52, %s53, %s54
      %p58 = pneg %p52
      %p59 = scmp.eq.s32.totalorder %s31, 3
      %p60 = por %p58, %p59
      %p61 = scmp.ne.s32.totalorder %s53, %s56
      %p62 = scmp.eq.s32.totalorder %s31, 0
      %p63 = por %p61, %p62
      %p64 = scmp.ne.s32.totalorder %s53, %s56
      %p65 = scmp.eq.s32.totalorder %s36, 3
      %p66 = por %p64, %p65
      %p67 = scmp.ne.s32.totalorder %s56, %s57
      %p68 = scmp.eq.s32.totalorder %s36, 0
      %p69 = por %p67, %p68
      %p70 = scmp.ne.s32.totalorder %s56, %s57
      %p71 = scmp.eq.s32.totalorder %s37, 3
      %p72 = por %p70, %p71
      %p74 = scmp.ne.s32.totalorder %s57, %s73
      %p75 = scmp.eq.s32.totalorder %s37, 0
      %p76 = por %p74, %p75
      %s78 = sadd.s32 %s77, 1
      %p81 = scmp.eq.s32.totalorder %s31, 3
      %p82 = scmp.ne.s32.totalorder %s77, %s79
      %p83 = scmp.eq.s32.totalorder %s31, 0
      %p84 = por %p82, %p83
      %p85 = scmp.ne.s32.totalorder %s77, %s79
      %p86 = scmp.eq.s32.totalorder %s36, 3
      %p87 = por %p85, %p86
      %p88 = scmp.ne.s32.totalorder %s79, %s80
      %p89 = scmp.eq.s32.totalorder %s36, 0
      %p90 = por %p88, %p89
      %p91 = scmp.ne.s32.totalorder %s79, %s80
      %p92 = scmp.eq.s32.totalorder %s37, 3
      %p93 = por %p91, %p92
      %p95 = scmp.ne.s32.totalorder %s80, %s94
      %p96 = scmp.eq.s32.totalorder %s37, 0
      %p97 = por %p95, %p96
      %s98 = ssub.s32 %s39, %s46
      %p99 = scmp.eq.s32.totalorder %s98, 0
      %s101 = sadd.s32 %s100, 1
      %s102 = scalar_select %p99, %s100, %s101
      %p105 = pneg %p99
      %p106 = scmp.eq.s32.totalorder %s31, 3
      %p107 = por %p105, %p106
      %p108 = scmp.ne.s32.totalorder %s100, %s103
      %p109 = scmp.eq.s32.totalorder %s31, 0
      %p110 = por %p108, %p109
      %p111 = scmp.ne.s32.totalorder %s100, %s103
      %p112 = scmp.eq.s32.totalorder %s36, 3
      %p113 = por %p111, %p112
      %p114 = scmp.ne.s32.totalorder %s103, %s104
      %p115 = scmp.eq.s32.totalorder %s36, 0
      %p116 = por %p114, %p115
      %p117 = scmp.ne.s32.totalorder %s103, %s104
      %p118 = scmp.eq.s32.totalorder %s37, 3
      %p119 = por %p117, %p118
      %p121 = scmp.ne.s32.totalorder %s104, %s120
      %p122 = scmp.eq.s32.totalorder %s37, 0
      %p123 = por %p121, %p122
      %s124 = ssub.s32 %s39, %s46
      %p125 = scmp.eq.s32.totalorder %s124, 0
      %s127 = sadd.s32 %s126, 1
      %s128 = scalar_select %p125, %s126, %s127
      %p131 = pneg %p125
      %p132 = scmp.eq.s32.totalorder %s31, 3
      %p133 = por %p131, %p132
      %p134 = scmp.ne.s32.totalorder %s126, %s129
      %p135 = scmp.eq.s32.totalorder %s31, 0
      %p136 = por %p134, %p135
      %p137 = scmp.ne.s32.totalorder %s126, %s129
      %p138 = scmp.eq.s32.totalorder %s36, 3
      %p139 = por %p137, %p138
      %p140 = scmp.ne.s32.totalorder %s129, %s130
      %p141 = scmp.eq.s32.totalorder %s36, 0
      %p142 = por %p140, %p141
      %p143 = scmp.ne.s32.totalorder %s129, %s130
      %p144 = scmp.eq.s32.totalorder %s37, 3
      %p145 = por %p143, %p144
      %p147 = scmp.ne.s32.totalorder %s130, %s146
      %p148 = scmp.eq.s32.totalorder %s37, 0
      %p149 = por %p147, %p148
      %s150 = ssub.s32 %s39, %s46
      %p151 = scmp.eq.s32.totalorder %s150, 0
      %s153 = sadd.s32 %s152, 1
      %s154 = scalar_select %p151, %s152, %s153
      %p157 = pneg %p151
      %p158 = scmp.eq.s32.totalorder %s31, 3
      %p159 = por %p157, %p158
      %p160 = scmp.ne.s32.totalorder %s152, %s155
      %p161 = scmp.eq.s32.totalorder %s31, 0
      %p162 = por %p160, %p161
      %p163 = scmp.ne.s32.totalorder %s152, %s155
      %p164 = scmp.eq.s32.totalorder %s36, 3
      %p165 = por %p163, %p164
      %p166 = scmp.ne.s32.totalorder %s155, %s156
      %p167 = scmp.eq.s32.totalorder %s36, 0
      %p168 = por %p166, %p167
      %p169 = scmp.ne.s32.totalorder %s155, %s156
      %p170 = scmp.eq.s32.totalorder %s37, 3
      %p171 = por %p169, %p170
      %p173 = scmp.ne.s32.totalorder %s156, %s172
      %p174 = scmp.eq.s32.totalorder %s37, 0
      %p175 = por %p173, %p174
      %s176 = ssub.s32 %s39, %s46
      %p177 = scmp.eq.s32.totalorder %s176, 0
      %s179 = sadd.s32 %s178, 1
      %s180 = scalar_select %p177, %s178, %s179
      %p183 = pneg %p177
      %p184 = scmp.eq.s32.totalorder %s31, 3
      %p185 = por %p183, %p184
      %p186 = scmp.ne.s32.totalorder %s178, %s181
      %p187 = scmp.eq.s32.totalorder %s31, 0
      %p188 = por %p186, %p187
      %p189 = scmp.ne.s32.totalorder %s178, %s181
      %p190 = scmp.eq.s32.totalorder %s36, 3
      %p191 = por %p189, %p190
      %p192 = scmp.ne.s32.totalorder %s181, %s182
      %p193 = scmp.eq.s32.totalorder %s36, 0
      %p194 = por %p192, %p193
      %p195 = scmp.ne.s32.totalorder %s181, %s182
      %p196 = scmp.eq.s32.totalorder %s37, 3
      %p197 = por %p195, %p196
      %p199 = scmp.ne.s32.totalorder %s182, %s198
      %p200 = scmp.eq.s32.totalorder %s37, 0
      %p201 = por %p199, %p200
      %s202 = ssub.s32 %s39, %s46
      %p203 = scmp.eq.s32.totalorder %s202, 0
      %s205 = sadd.s32 %s204, 1
      %s206 = scalar_select %p203, %s204, %s205
      %p209 = pneg %p203
      %p210 = scmp.eq.s32.totalorder %s31, 3
      %p211 = por %p209, %p210
      %p212 = scmp.ne.s32.totalorder %s204, %s207
      %p213 = scmp.eq.s32.totalorder %s31, 0
      %p214 = por %p212, %p213
      %p215 = scmp.ne.s32.totalorder %s204, %s207
      %p216 = scmp.eq.s32.totalorder %s36, 3
      %p217 = por %p215, %p216
      %p218 = scmp.ne.s32.totalorder %s207, %s208
      %p219 = scmp.eq.s32.totalorder %s36, 0
      %p220 = por %p218, %p219
      %p221 = scmp.ne.s32.totalorder %s207, %s208
      %p222 = scmp.eq.s32.totalorder %s37, 3
      %p223 = por %p221, %p222
      %p225 = scmp.ne.s32.totalorder %s208, %s224
      %p226 = scmp.eq.s32.totalorder %s37, 0
      %p227 = por %p225, %p226
      %s228 = ssub.s32 %s39, %s46
      %p229 = scmp.eq.s32.totalorder %s228, 0
      %s231 = sadd.s32 %s230, 1
      %s232 = scalar_select %p229, %s230, %s231
      %p235 = pneg %p229
      %p236 = scmp.eq.s32.totalorder %s31, 3
      %p237 = por %p235, %p236
      %p238 = scmp.ne.s32.totalorder %s230, %s233
      %p239 = scmp.eq.s32.totalorder %s31, 0
      %p240 = por %p238, %p239
      %p241 = scmp.ne.s32.totalorder %s230, %s233
      %p242 = scmp.eq.s32.totalorder %s36, 3
      %p243 = por %p241, %p242
      %p244 = scmp.ne.s32.totalorder %s233, %s234
      %p245 = scmp.eq.s32.totalorder %s36, 0
      %p246 = por %p244, %p245
      %p247 = scmp.ne.s32.totalorder %s233, %s234
      %p248 = scmp.eq.s32.totalorder %s37, 3
      %p249 = por %p247, %p248
      %p251 = scmp.ne.s32.totalorder %s234, %s250
      %p252 = scmp.eq.s32.totalorder %s37, 0
      %p253 = por %p251, %p252
      %s254 = ssub.s32 %s39, %s46
      %p255 = scmp.eq.s32.totalorder %s254, 0
      %s257 = sadd.s32 %s256, 1
      %s258 = scalar_select %p255, %s256, %s257
      %p261 = pneg %p255
      %p262 = scmp.eq.s32.totalorder %s31, 3
      %p263 = por %p261, %p262
      %p264 = scmp.ne.s32.totalorder %s256, %s259
      %p265 = scmp.eq.s32.totalorder %s31, 0
      %p266 = por %p264, %p265
      %p267 = scmp.ne.s32.totalorder %s256, %s259
      %p268 = scmp.eq.s32.totalorder %s36, 3
      %p269 = por %p267, %p268
      %p270 = scmp.ne.s32.totalorder %s259, %s260
      %p271 = scmp.eq.s32.totalorder %s36, 0
      %p272 = por %p270, %p271
      %p273 = scmp.ne.s32.totalorder %s259, %s260
      %p274 = scmp.eq.s32.totalorder %s37, 3
      %p275 = por %p273, %p274
      %p277 = scmp.ne.s32.totalorder %s260, %s276
      %p278 = scmp.eq.s32.totalorder %s37, 0
      %p279 = por %p277, %p278
      %s280 = ssub.s32 %s39, %s46
      %p281 = scmp.eq.s32.totalorder %s280, 0
      %s283 = sadd.s32 %s282, 1
      %s284 = scalar_select %p281, %s282, %s283
      %p287 = pneg %p281
      %p288 = scmp.eq.s32.totalorder %s31, 3
      %p289 = por %p287, %p288
      %p290 = scmp.ne.s32.totalorder %s282, %s285
      %p291 = scmp.eq.s32.totalorder %s31, 0
      %p292 = por %p290, %p291
      %p293 = scmp.ne.s32.totalorder %s282, %s285
      %p294 = scmp.eq.s32.totalorder %s36, 3
      %p295 = por %p293, %p294
      %p296 = scmp.ne.s32.totalorder %s285, %s286
      %p297 = scmp.eq.s32.totalorder %s36, 0
      %p298 = por %p296, %p297
      %p299 = scmp.ne.s32.totalorder %s285, %s286
      %p300 = scmp.eq.s32.totalorder %s37, 3
      %p301 = por %p299, %p300
      %p303 = scmp.ne.s32.totalorder %s286, %s302
      %p304 = scmp.eq.s32.totalorder %s37, 0
      %p305 = por %p303, %p304
      %s306 = ssub.s32 %s39, %s46
      %p307 = scmp.eq.s32.totalorder %s306, 0
      %s309 = sadd.s32 %s308, 1
      %s310 = scalar_select %p307, %s308, %s309
      %p313 = pneg %p307
      %p314 = scmp.eq.s32.totalorder %s31, 3
      %p315 = por %p313, %p314
      %p316 = scmp.ne.s32.totalorder %s308, %s311
      %p317 = scmp.eq.s32.totalorder %s31, 0
      %p318 = por %p316, %p317
      %p319 = scmp.ne.s32.totalorder %s308, %s311
      %p320 = scmp.eq.s32.totalorder %s36, 3
      %p321 = por %p319, %p320
      %p322 = scmp.ne.s32.totalorder %s311, %s312
      %p323 = scmp.eq.s32.totalorder %s36, 0
      %p324 = por %p322, %p323
      %p325 = scmp.ne.s32.totalorder %s311, %s312
      %p326 = scmp.eq.s32.totalorder %s37, 3
      %p327 = por %p325, %p326
      %p329 = scmp.ne.s32.totalorder %s312, %s328
      %p330 = scmp.eq.s32.totalorder %s37, 0
      %p331 = por %p329, %p330
      %s332 = ssub.s32 %s39, %s46
      %p333 = scmp.eq.s32.totalorder %s332, 0
      %s335 = sadd.s32 %s334, 1
      %s336 = scalar_select %p333, %s334, %s335
      %p339 = pneg %p333
      %p340 = scmp.eq.s32.totalorder %s31, 3
      %p341 = por %p339, %p340
      %p342 = scmp.ne.s32.totalorder %s334, %s337
      %p343 = scmp.eq.s32.totalorder %s31, 0
      %p344 = por %p342, %p343
      %p345 = scmp.ne.s32.totalorder %s334, %s337
      %p346 = scmp.eq.s32.totalorder %s36, 3
      %p347 = por %p345, %p346
      %p348 = scmp.ne.s32.totalorder %s337, %s338
      %p349 = scmp.eq.s32.totalorder %s36, 0
      %p350 = por %p348, %p349
      %p351 = scmp.ne.s32.totalorder %s337, %s338
      %p352 = scmp.eq.s32.totalorder %s37, 3
      %p353 = por %p351, %p352
      %p355 = scmp.ne.s32.totalorder %s338, %s354
      %p356 = scmp.eq.s32.totalorder %s37, 0
      %p357 = por %p355, %p356
      %s358 = ssub.s32 %s39, %s46
      %p359 = scmp.eq.s32.totalorder %s358, 0
      %s361 = sadd.s32 %s360, 1
      %s362 = scalar_select %p359, %s360, %s361
      %p365 = pneg %p359
      %p366 = scmp.eq.s32.totalorder %s31, 3
      %p367 = por %p365, %p366
      %p368 = scmp.ne.s32.totalorder %s360, %s363
      %p369 = scmp.eq.s32.totalorder %s31, 0
      %p370 = por %p368, %p369
      %p371 = scmp.ne.s32.totalorder %s360, %s363
      %p372 = scmp.eq.s32.totalorder %s36, 3
      %p373 = por %p371, %p372
      %p374 = scmp.ne.s32.totalorder %s363, %s364
      %p375 = scmp.eq.s32.totalorder %s36, 0
      %p376 = por %p374, %p375
      %p377 = scmp.ne.s32.totalorder %s363, %s364
      %p378 = scmp.eq.s32.totalorder %s37, 3
      %p379 = por %p377, %p378
      %p381 = scmp.ne.s32.totalorder %s364, %s380
      %p382 = scmp.eq.s32.totalorder %s37, 0
      %p383 = por %p381, %p382
      %s384 = ssub.s32 %s39, %s46
      %p385 = scmp.eq.s32.totalorder %s384, 0
      %s387 = sadd.s32 %s386, 1
      %s388 = scalar_select %p385, %s386, %s387
      %p391 = pneg %p385
      %p392 = scmp.eq.s32.totalorder %s31, 3
      %p393 = por %p391, %p392
      %p394 = scmp.ne.s32.totalorder %s386, %s389
      %p395 = scmp.eq.s32.totalorder %s31, 0
      %p396 = por %p394, %p395
      %p397 = scmp.ne.s32.totalorder %s386, %s389
      %p398 = scmp.eq.s32.totalorder %s36, 3
      %p399 = por %p397, %p398
      %p400 = scmp.ne.s32.totalorder %s389, %s390
      %p401 = scmp.eq.s32.totalorder %s36, 0
      %p402 = por %p400, %p401
      %p403 = scmp.ne.s32.totalorder %s389, %s390
      %p404 = scmp.eq.s32.totalorder %s37, 3
      %p405 = por %p403, %p404
      %p407 = scmp.ne.s32.totalorder %s390, %s406
      %p408 = scmp.eq.s32.totalorder %s37, 0
      %p409 = por %p407, %p408
      %s410 = ssub.s32 %s39, %s46
      %p411 = scmp.eq.s32.totalorder %s410, 0
      %s413 = sadd.s32 %s412, 1
      %s414 = scalar_select %p411, %s412, %s413
      %p417 = pneg %p411
      %p418 = scmp.eq.s32.totalorder %s31, 3
      %p419 = por %p417, %p418
      %p420 = scmp.ne.s32.totalorder %s412, %s415
      %p421 = scmp.eq.s32.totalorder %s31, 0
      %p422 = por %p420, %p421
      %p423 = scmp.ne.s32.totalorder %s412, %s415
      %p424 = scmp.eq.s32.totalorder %s36, 3
      %p425 = por %p423, %p424
      %p426 = scmp.ne.s32.totalorder %s415, %s416
      %p427 = scmp.eq.s32.totalorder %s36, 0
      %p428 = por %p426, %p427
      %p429 = scmp.ne.s32.totalorder %s415, %s416
      %p430 = scmp.eq.s32.totalorder %s37, 3
      %p431 = por %p429, %p430
      %p433 = scmp.ne.s32.totalorder %s416, %s432
      %p434 = scmp.eq.s32.totalorder %s37, 0
      %p435 = por %p433, %p434
      %s436 = ssub.s32 %s39, %s46
      %p437 = scmp.eq.s32.totalorder %s436, 0
      %s439 = sadd.s32 %s438, 1
      %s440 = scalar_select %p437, %s438, %s439
      %p443 = pneg %p437
      %p444 = scmp.eq.s32.totalorder %s31, 3
      %p445 = por %p443, %p444
      %p446 = scmp.ne.s32.totalorder %s438, %s441
      %p447 = scmp.eq.s32.totalorder %s31, 0
      %p448 = por %p446, %p447
      %p449 = scmp.ne.s32.totalorder %s438, %s441
      %p450 = scmp.eq.s32.totalorder %s36, 3
      %p451 = por %p449, %p450
      %p452 = scmp.ne.s32.totalorder %s441, %s442
      %p453 = scmp.eq.s32.totalorder %s36, 0
      %p454 = por %p452, %p453
      %p455 = scmp.ne.s32.totalorder %s441, %s442
      %p456 = scmp.eq.s32.totalorder %s37, 3
      %p457 = por %p455, %p456
      %p459 = scmp.ne.s32.totalorder %s442, %s458
      %p460 = scmp.eq.s32.totalorder %s37, 0
      %p461 = por %p459, %p460
      %s462 = ssub.s32 %s39, %s46
      %p463 = scmp.eq.s32.totalorder %s462, 0
      %s465 = sadd.s32 %s464, 1
      %s466 = scalar_select %p463, %s464, %s465
      %p469 = pneg %p463
      %p470 = scmp.eq.s32.totalorder %s31, 3
      %p471 = por %p469, %p470
      %p472 = scmp.ne.s32.totalorder %s464, %s467
      %p473 = scmp.eq.s32.totalorder %s31, 0
      %p474 = por %p472, %p473
      %p475 = scmp.ne.s32.totalorder %s464, %s467
      %p476 = scmp.eq.s32.totalorder %s36, 3
      %p477 = por %p475, %p476
      %p478 = scmp.ne.s32.totalorder %s467, %s468
      %p479 = scmp.eq.s32.totalorder %s36, 0
      %p480 = por %p478, %p479
      %p481 = scmp.ne.s32.totalorder %s467, %s468
      %p482 = scmp.eq.s32.totalorder %s37, 3
      %p483 = por %p481, %p482
      %p485 = scmp.ne.s32.totalorder %s468, %s484
      %p486 = scmp.eq.s32.totalorder %s37, 0
      %p487 = por %p485, %p486
      %s488 = ssub.s32 %s39, %s46
      %p489 = scmp.eq.s32.totalorder %s488, 0
      %s491 = sadd.s32 %s490, 1
      %s492 = scalar_select %p489, %s490, %s491
      %p495 = pneg %p489
      %p496 = scmp.eq.s32.totalorder %s31, 3
      %p497 = por %p495, %p496
      %p498 = scmp.ne.s32.totalorder %s490, %s493
      %p499 = scmp.eq.s32.totalorder %s31, 0
      %p500 = por %p498, %p499
      %p501 = scmp.ne.s32.totalorder %s490, %s493
      %p502 = scmp.eq.s32.totalorder %s36, 3
      %p503 = por %p501, %p502
      %p504 = scmp.ne.s32.totalorder %s493, %s494
      %p505 = scmp.eq.s32.totalorder %s36, 0
      %p506 = por %p504, %p505
      %p507 = scmp.ne.s32.totalorder %s493, %s494
      %p508 = scmp.eq.s32.totalorder %s37, 3
      %p509 = por %p507, %p508
      %p511 = scmp.ne.s32.totalorder %s494, %s510
      %p512 = scmp.eq.s32.totalorder %s37, 0
      %p513 = por %p511, %p512
      %s514 = ssub.s32 %s39, %s46
      %s515 = ssub.s32 %s38, %s50
      %s516 = sor.u32 %s514, %s515
      %p517 = scmp.eq.s32.totalorder %s516, 0
      %s519 = sadd.s32 %s518, 1
      %s520 = scalar_select %p517, %s518, %s519
      %p523 = pneg %p517
      %p524 = scmp.eq.s32.totalorder %s31, 3
      %p525 = por %p523, %p524
      %p526 = scmp.ne.s32.totalorder %s518, %s521
      %p527 = scmp.eq.s32.totalorder %s31, 0
      %p528 = por %p526, %p527
      %p529 = scmp.ne.s32.totalorder %s518, %s521
      %p530 = scmp.eq.s32.totalorder %s36, 3
      %p531 = por %p529, %p530
      %p532 = scmp.ne.s32.totalorder %s521, %s522
      %p533 = scmp.eq.s32.totalorder %s36, 0
      %p534 = por %p532, %p533
      %p535 = scmp.ne.s32.totalorder %s521, %s522
      %p536 = scmp.eq.s32.totalorder %s37, 3
      %p537 = por %p535, %p536
      %p539 = scmp.ne.s32.totalorder %s522, %s538
      %p540 = scmp.eq.s32.totalorder %s37, 0
      %p541 = por %p539, %p540
      %p542 = scmp.le.s32.totalorder 1, %s31
      %p543 = scmp.lt.s32.totalorder %s31, 5
      %p544 = pnand %p542, %p543
      %p545 = pneg %p544
      // Predicated region
      $region9: #{tpu_custom_call.1} parent=5 // pred_check
        _
      $region10: #{tpu_custom_call.1} parent=5 // pred_check_branch
        %547 = sbr.rel (%p544) target = $region12
      $region11: #{tpu_custom_call.1} parent=5 // pred_region
        %s548 = ssub.s32 %s31, 1
        // Predicated region
        $region13: #{tpu_custom_call.1} parent=11 // pred_check
          %p549 = pneg %p90
        $region14: #{tpu_custom_call.1} parent=11 // pred_check_branch
          %551 = sbr.rel (%p549) target = $region16
        $region15: #{tpu_custom_call.1} parent=11 // pred_region
          %s553 = ssub.s32 128, 128
          %554 = vsyncadd [#allocation8], %s553
          %s556 = sshll.u32 [#allocation7], 4
          %s557 = int_to_ptr.vmem [resolvable:$true] %s556
          %559 = dma.hbm_to_vmem [thread:$0]  %s1, 128, %s557, [#allocation8]
        $region16: #{tpu_custom_call.1} parent=11 // pred_fallthru
          _
      $region12: #{tpu_custom_call.1} parent=5 // pred_fallthru
        _
      %p560 = scmp.lt.s32.totalorder %s31, 4
      // Predicated region
      $region17: #{tpu_custom_call.1} parent=5 // pred_check
        %p561 = pneg %p560
      $region18: #{tpu_custom_call.1} parent=5 // pred_check_branch
        %563 = sbr.rel (%p561) target = $region20
      $region19: #{tpu_custom_call.1} parent=5 // pred_region
        // Predicated region
        $region21: #{tpu_custom_call.1} parent=19 // pred_check
          %p564 = pneg %p63
        $region22: #{tpu_custom_call.1} parent=19 // pred_check_branch
          %566 = sbr.rel (%p564) target = $region24
        $region23: #{tpu_custom_call.1} parent=19 // pred_region
          %s567 = sand.u32 %s31, 1
          %s568 = scalar_lea.sflag [#allocation5], %s567
          %s569 = sand.u32 %s53, 1
          %s570 = smul.addr %s569, 16
          %s571 = scalar_lea.vmem [#allocation4], %s570
          %s572 = smul.u32 2, %s38
          %s574 = ssub.s32 256, 256
          %575 = vsyncadd %s568, %s574
          %s576 = smul.addr %s572, 128
          %s577 = scalar_lea.hbm %s0, %s576
          %s578 = sshll.u32 %s571, 4
          %s579 = int_to_ptr.vmem [resolvable:$true] %s578
          %584 = dma.hbm_to_vmem [thread:$0]  %s577, 256, %s579, %s568, 128, 128, 8
        $region24: #{tpu_custom_call.1} parent=19 // pred_fallthru
          _
        // Predicated region
        $region25: #{tpu_custom_call.1} parent=19 // pred_check
          %p585 = pneg %p110
        $region26: #{tpu_custom_call.1} parent=19 // pred_check_branch
          %587 = sbr.rel (%p585) target = $region28
        $region27: #{tpu_custom_call.1} parent=19 // pred_region
          %s588 = sand.u32 %s31, 1
          %s589 = scalar_lea.sflag [#allocation5], %s588
          %s590 = sand.u32 %s100, 1
          %s591 = smul.addr %s590, 16
          %s592 = scalar_lea.vmem [#allocation9], %s591
          %s594 = ssub.s32 256, 256
          %595 = vsyncadd %s589, %s594
          %s596 = smul.addr %s39, 4
          %s597 = smul.addr %s596, 64
          %s598 = scalar_lea.hbm %s2, %s597
          %s599 = sshll.u32 %s592, 4
          %s600 = int_to_ptr.vmem [resolvable:$true] %s599
          %605 = dma.hbm_to_vmem [thread:$0]  %s598, 256, %s600, %s589, 64, 64, 4
        $region28: #{tpu_custom_call.1} parent=19 // pred_fallthru
          _
        // Predicated region
        $region29: #{tpu_custom_call.1} parent=19 // pred_check
          %p606 = pneg %p136
        $region30: #{tpu_custom_call.1} parent=19 // pred_check_branch
          %608 = sbr.rel (%p606) target = $region32
        $region31: #{tpu_custom_call.1} parent=19 // pred_region
          %s609 = sand.u32 %s31, 1
          %s610 = scalar_lea.sflag [#allocation5], %s609
          %s611 = sand.u32 %s126, 1
          %s612 = scalar_lea.vmem [#allocation10], %s611
          %s614 = ssub.s32 16, 16
          %615 = vsyncadd %s610, %s614
          %s616 = smul.addr %s39, 16
          %s617 = scalar_lea.hbm %s3, %s616
          %s619 = sshll.u32 %s612, 4
          %s620 = int_to_ptr.vmem [resolvable:$true] %s619
          %622 = dma.hbm_to_vmem [thread:$0]  %s617, 16, %s620, %s610
        $region32: #{tpu_custom_call.1} parent=19 // pred_fallthru
          _
        // Predicated region
        $region33: #{tpu_custom_call.1} parent=19 // pred_check
          %p623 = pneg %p162
        $region34: #{tpu_custom_call.1} parent=19 // pred_check_branch
          %625 = sbr.rel (%p623) target = $region36
        $region35: #{tpu_custom_call.1} parent=19 // pred_region
          %s626 = sand.u32 %s31, 1
          %s627 = scalar_lea.sflag [#allocation5], %s626
          %s628 = sand.u32 %s152, 1
          %s629 = smul.addr %s628, 16
          %s630 = scalar_lea.vmem [#allocation11], %s629
          %s632 = ssub.s32 256, 256
          %633 = vsyncadd %s627, %s632
          %s634 = smul.addr %s39, 4
          %s635 = smul.addr %s634, 64
          %s636 = scalar_lea.hbm %s4, %s635
          %s637 = sshll.u32 %s630, 4
          %s638 = int_to_ptr.vmem [resolvable:$true] %s637
          %643 = dma.hbm_to_vmem [thread:$0]  %s636, 256, %s638, %s627, 64, 64, 4
        $region36: #{tpu_custom_call.1} parent=19 // pred_fallthru
          _
        // Predicated region
        $region37: #{tpu_custom_call.1} parent=19 // pred_check
          %p644 = pneg %p188
        $region38: #{tpu_custom_call.1} parent=19 // pred_check_branch
          %646 = sbr.rel (%p644) target = $region40
        $region39: #{tpu_custom_call.1} parent=19 // pred_region
          %s647 = sand.u32 %s31, 1
          %s648 = scalar_lea.sflag [#allocation5], %s647
          %s649 = sand.u32 %s178, 1
          %s650 = scalar_lea.vmem [#allocation12], %s649
          %s652 = ssub.s32 16, 16
          %653 = vsyncadd %s648, %s652
          %s654 = smul.addr %s39, 16
          %s655 = scalar_lea.hbm %s5, %s654
          %s657 = sshll.u32 %s650, 4
          %s658 = int_to_ptr.vmem [resolvable:$true] %s657
          %660 = dma.hbm_to_vmem [thread:$0]  %s655, 16, %s658, %s648
        $region40: #{tpu_custom_call.1} parent=19 // pred_fallthru
          _
        // Predicated region
        $region41: #{tpu_custom_call.1} parent=19 // pred_check
          %p661 = pneg %p214
        $region42: #{tpu_custom_call.1} parent=19 // pred_check_branch
          %663 = sbr.rel (%p661) target = $region44
        $region43: #{tpu_custom_call.1} parent=19 // pred_region
          %s664 = sand.u32 %s31, 1
          %s665 = scalar_lea.sflag [#allocation5], %s664
          %s666 = sand.u32 %s204, 1
          %s667 = scalar_lea.vmem [#allocation13], %s666
          %s669 = ssub.s32 16, 16
          %670 = vsyncadd %s665, %s669
          %s671 = smul.addr %s39, 16
          %s672 = scalar_lea.hbm %s6, %s671
          %s674 = sshll.u32 %s667, 4
          %s675 = int_to_ptr.vmem [resolvable:$true] %s674
          %677 = dma.hbm_to_vmem [thread:$0]  %s672, 16, %s675, %s665
        $region44: #{tpu_custom_call.1} parent=19 // pred_fallthru
          _
        // Predicated region
        $region45: #{tpu_custom_call.1} parent=19 // pred_check
          %p678 = pneg %p240
        $region46: #{tpu_custom_call.1} parent=19 // pred_check_branch
          %680 = sbr.rel (%p678) target = $region48
        $region47: #{tpu_custom_call.1} parent=19 // pred_region
          %s681 = sand.u32 %s31, 1
          %s682 = scalar_lea.sflag [#allocation5], %s681
          %s683 = sand.u32 %s230, 1
          %s684 = scalar_lea.vmem [#allocation14], %s683
          %s686 = ssub.s32 16, 16
          %687 = vsyncadd %s682, %s686
          %s688 = smul.addr %s39, 16
          %s689 = scalar_lea.hbm %s7, %s688
          %s691 = sshll.u32 %s684, 4
          %s692 = int_to_ptr.vmem [resolvable:$true] %s691
          %694 = dma.hbm_to_vmem [thread:$0]  %s689, 16, %s692, %s682
        $region48: #{tpu_custom_call.1} parent=19 // pred_fallthru
          _
        // Predicated region
        $region49: #{tpu_custom_call.1} parent=19 // pred_check
          %p695 = pneg %p266
        $region50: #{tpu_custom_call.1} parent=19 // pred_check_branch
          %697 = sbr.rel (%p695) target = $region52
        $region51: #{tpu_custom_call.1} parent=19 // pred_region
          %s698 = sand.u32 %s31, 1
          %s699 = scalar_lea.sflag [#allocation5], %s698
          %s700 = sand.u32 %s256, 1
          %s701 = smul.addr %s700, 16
          %s702 = scalar_lea.vmem [#allocation15], %s701
          %s704 = ssub.s32 256, 256
          %705 = vsyncadd %s699, %s704
          %s706 = smul.addr %s39, 4
          %s707 = smul.addr %s706, 64
          %s708 = scalar_lea.hbm %s8, %s707
          %s709 = sshll.u32 %s702, 4
          %s710 = int_to_ptr.vmem [resolvable:$true] %s709
          %715 = dma.hbm_to_vmem [thread:$0]  %s708, 256, %s710, %s699, 64, 64, 4
        $region52: #{tpu_custom_call.1} parent=19 // pred_fallthru
          _
        // Predicated region
        $region53: #{tpu_custom_call.1} parent=19 // pred_check
          %p716 = pneg %p292
        $region54: #{tpu_custom_call.1} parent=19 // pred_check_branch
          %718 = sbr.rel (%p716) target = $region56
        $region55: #{tpu_custom_call.1} parent=19 // pred_region
          %s719 = sand.u32 %s31, 1
          %s720 = scalar_lea.sflag [#allocation5], %s719
          %s721 = sand.u32 %s282, 1
          %s722 = scalar_lea.vmem [#allocation16], %s721
          %s724 = ssub.s32 16, 16
          %725 = vsyncadd %s720, %s724
          %s726 = smul.addr %s39, 16
          %s727 = scalar_lea.hbm %s9, %s726
          %s729 = sshll.u32 %s722, 4
          %s730 = int_to_ptr.vmem [resolvable:$true] %s729
          %732 = dma.hbm_to_vmem [thread:$0]  %s727, 16, %s730, %s720
        $region56: #{tpu_custom_call.1} parent=19 // pred_fallthru
          _
        // Predicated region
        $region57: #{tpu_custom_call.1} parent=19 // pred_check
          %p733 = pneg %p318
        $region58: #{tpu_custom_call.1} parent=19 // pred_check_branch
          %735 = sbr.rel (%p733) target = $region60
        $region59: #{tpu_custom_call.1} parent=19 // pred_region
          %s736 = sand.u32 %s31, 1
          %s737 = scalar_lea.sflag [#allocation5], %s736
          %s738 = sand.u32 %s308, 1
          %s739 = scalar_lea.vmem [#allocation17], %s738
          %s741 = ssub.s32 16, 16
          %742 = vsyncadd %s737, %s741
          %s743 = smul.addr %s39, 16
          %s744 = scalar_lea.hbm %s10, %s743
          %s746 = sshll.u32 %s739, 4
          %s747 = int_to_ptr.vmem [resolvable:$true] %s746
          %749 = dma.hbm_to_vmem [thread:$0]  %s744, 16, %s747, %s737
        $region60: #{tpu_custom_call.1} parent=19 // pred_fallthru
          _
        // Predicated region
        $region61: #{tpu_custom_call.1} parent=19 // pred_check
          %p750 = pneg %p344
        $region62: #{tpu_custom_call.1} parent=19 // pred_check_branch
          %752 = sbr.rel (%p750) target = $region64
        $region63: #{tpu_custom_call.1} parent=19 // pred_region
          %s753 = sand.u32 %s31, 1
          %s754 = scalar_lea.sflag [#allocation5], %s753
          %s755 = sand.u32 %s334, 1
          %s756 = scalar_lea.vmem [#allocation18], %s755
          %s758 = ssub.s32 16, 16
          %759 = vsyncadd %s754, %s758
          %s760 = smul.addr %s39, 16
          %s761 = scalar_lea.hbm %s11, %s760
          %s763 = sshll.u32 %s756, 4
          %s764 = int_to_ptr.vmem [resolvable:$true] %s763
          %766 = dma.hbm_to_vmem [thread:$0]  %s761, 16, %s764, %s754
        $region64: #{tpu_custom_call.1} parent=19 // pred_fallthru
          _
        // Predicated region
        $region65: #{tpu_custom_call.1} parent=19 // pred_check
          %p767 = pneg %p370
        $region66: #{tpu_custom_call.1} parent=19 // pred_check_branch
          %769 = sbr.rel (%p767) target = $region68
        $region67: #{tpu_custom_call.1} parent=19 // pred_region
          %s770 = sand.u32 %s31, 1
          %s771 = scalar_lea.sflag [#allocation5], %s770
          %s772 = sand.u32 %s360, 1
          %s773 = smul.addr %s772, 16
          %s774 = scalar_lea.vmem [#allocation19], %s773
          %s776 = ssub.s32 256, 256
          %777 = vsyncadd %s771, %s776
          %s778 = smul.addr %s39, 4
          %s779 = smul.addr %s778, 64
          %s780 = scalar_lea.hbm %s12, %s779
          %s781 = sshll.u32 %s774, 4
          %s782 = int_to_ptr.vmem [resolvable:$true] %s781
          %787 = dma.hbm_to_vmem [thread:$0]  %s780, 256, %s782, %s771, 64, 64, 4
        $region68: #{tpu_custom_call.1} parent=19 // pred_fallthru
          _
        // Predicated region
        $region69: #{tpu_custom_call.1} parent=19 // pred_check
          %p788 = pneg %p396
        $region70: #{tpu_custom_call.1} parent=19 // pred_check_branch
          %790 = sbr.rel (%p788) target = $region72
        $region71: #{tpu_custom_call.1} parent=19 // pred_region
          %s791 = sand.u32 %s31, 1
          %s792 = scalar_lea.sflag [#allocation5], %s791
          %s793 = sand.u32 %s386, 1
          %s794 = scalar_lea.vmem [#allocation20], %s793
          %s796 = ssub.s32 16, 16
          %797 = vsyncadd %s792, %s796
          %s798 = smul.addr %s39, 16
          %s799 = scalar_lea.hbm %s13, %s798
          %s801 = sshll.u32 %s794, 4
          %s802 = int_to_ptr.vmem [resolvable:$true] %s801
          %804 = dma.hbm_to_vmem [thread:$0]  %s799, 16, %s802, %s792
        $region72: #{tpu_custom_call.1} parent=19 // pred_fallthru
          _
        // Predicated region
        $region73: #{tpu_custom_call.1} parent=19 // pred_check
          %p805 = pneg %p422
        $region74: #{tpu_custom_call.1} parent=19 // pred_check_branch
          %807 = sbr.rel (%p805) target = $region76
        $region75: #{tpu_custom_call.1} parent=19 // pred_region
          %s808 = sand.u32 %s31, 1
          %s809 = scalar_lea.sflag [#allocation5], %s808
          %s810 = sand.u32 %s412, 1
          %s811 = smul.addr %s810, 32
          %s812 = scalar_lea.vmem [#allocation21], %s811
          %s814 = ssub.s32 512, 512
          %815 = vsyncadd %s809, %s814
          %s816 = smul.addr %s39, 8
          %s817 = smul.addr %s816, 64
          %s818 = scalar_lea.hbm %s14, %s817
          %s819 = sshll.u32 %s812, 4
          %s820 = int_to_ptr.vmem [resolvable:$true] %s819
          %825 = dma.hbm_to_vmem [thread:$0]  %s818, 512, %s820, %s809, 64, 64, 4
        $region76: #{tpu_custom_call.1} parent=19 // pred_fallthru
          _
        // Predicated region
        $region77: #{tpu_custom_call.1} parent=19 // pred_check
          %p826 = pneg %p448
        $region78: #{tpu_custom_call.1} parent=19 // pred_check_branch
          %828 = sbr.rel (%p826) target = $region80
        $region79: #{tpu_custom_call.1} parent=19 // pred_region
          %s829 = sand.u32 %s31, 1
          %s830 = scalar_lea.sflag [#allocation5], %s829
          %s831 = sand.u32 %s438, 1
          %s832 = scalar_lea.vmem [#allocation22], %s831
          %s834 = ssub.s32 16, 16
          %835 = vsyncadd %s830, %s834
          %s836 = smul.addr %s39, 16
          %s837 = scalar_lea.hbm %s15, %s836
          %s839 = sshll.u32 %s832, 4
          %s840 = int_to_ptr.vmem [resolvable:$true] %s839
          %842 = dma.hbm_to_vmem [thread:$0]  %s837, 16, %s840, %s830
        $region80: #{tpu_custom_call.1} parent=19 // pred_fallthru
          _
        // Predicated region
        $region81: #{tpu_custom_call.1} parent=19 // pred_check
          %p843 = pneg %p474
        $region82: #{tpu_custom_call.1} parent=19 // pred_check_branch
          %845 = sbr.rel (%p843) target = $region84
        $region83: #{tpu_custom_call.1} parent=19 // pred_region
          %s846 = sand.u32 %s31, 1
          %s847 = scalar_lea.sflag [#allocation5], %s846
          %s848 = sand.u32 %s464, 1
          %s849 = scalar_lea.vmem [#allocation23], %s848
          %s851 = ssub.s32 16, 16
          %852 = vsyncadd %s847, %s851
          %s853 = smul.addr %s39, 16
          %s854 = scalar_lea.hbm %s16, %s853
          %s856 = sshll.u32 %s849, 4
          %s857 = int_to_ptr.vmem [resolvable:$true] %s856
          %859 = dma.hbm_to_vmem [thread:$0]  %s854, 16, %s857, %s847
        $region84: #{tpu_custom_call.1} parent=19 // pred_fallthru
          _
        // Predicated region
        $region85: #{tpu_custom_call.1} parent=19 // pred_check
          %p860 = pneg %p500
        $region86: #{tpu_custom_call.1} parent=19 // pred_check_branch
          %862 = sbr.rel (%p860) target = $region88
        $region87: #{tpu_custom_call.1} parent=19 // pred_region
          %s863 = sand.u32 %s31, 1
          %s864 = scalar_lea.sflag [#allocation5], %s863
          %s865 = sand.u32 %s490, 1
          %s866 = scalar_lea.vmem [#allocation24], %s865
          %s868 = ssub.s32 16, 16
          %869 = vsyncadd %s864, %s868
          %s870 = smul.addr %s39, 16
          %s871 = scalar_lea.hbm %s17, %s870
          %s873 = sshll.u32 %s866, 4
          %s874 = int_to_ptr.vmem [resolvable:$true] %s873
          %876 = dma.hbm_to_vmem [thread:$0]  %s871, 16, %s874, %s864
        $region88: #{tpu_custom_call.1} parent=19 // pred_fallthru
          _
      $region20: #{tpu_custom_call.1} parent=5 // pred_fallthru
        _
      %p877 = scmp.le.s32.totalorder 1, %s31
      %p878 = scmp.lt.s32.totalorder %s31, 5
      %p879 = pnand %p877, %p878
      %p880 = pneg %p879
      // Predicated region
      $region89: #{tpu_custom_call.1} parent=5 // pred_check
        _
      $region90: #{tpu_custom_call.1} parent=5 // pred_check_branch
        %882 = sbr.rel (%p879) target = $region92
      $region91: #{tpu_custom_call.1} parent=5 // pred_region
        %s883 = ssub.s32 %s31, 1
        %s884 = sand.u32 %s36, 1
        %s885 = scalar_lea.sflag [#allocation5], %s884
        %s886 = sand.u32 %s56, 1
        %s887 = smul.addr %s886, 16
        %s888 = scalar_lea.vmem [#allocation4], %s887
        // Predicated region
        $region93: #{tpu_custom_call.1} parent=91 // pred_check
          %p889 = pneg %p69
        $region94: #{tpu_custom_call.1} parent=91 // pred_check_branch
          %891 = sbr.rel (%p889) target = $region96
        $region95: #{tpu_custom_call.1} parent=91 // pred_region
          %892 = dma.done %s885, 256
        $region96: #{tpu_custom_call.1} parent=91 // pred_fallthru
          _
        // Predicated region
        $region97: #{tpu_custom_call.1} parent=91 // pred_check
          %p893 = pneg %p90
        $region98: #{tpu_custom_call.1} parent=91 // pred_check_branch
          %895 = sbr.rel (%p893) target = $region100
        $region99: #{tpu_custom_call.1} parent=91 // pred_region
          %896 = dma.done [#allocation8], 128
        $region100: #{tpu_custom_call.1} parent=91 // pred_fallthru
          _
        %s897 = sand.u32 %s36, 1
        %s898 = scalar_lea.sflag [#allocation5], %s897
        %s899 = sand.u32 %s103, 1
        %s900 = smul.addr %s899, 16
        %s901 = scalar_lea.vmem [#allocation9], %s900
        // Predicated region
        $region101: #{tpu_custom_call.1} parent=91 // pred_check
          %p902 = pneg %p116
        $region102: #{tpu_custom_call.1} parent=91 // pred_check_branch
          %904 = sbr.rel (%p902) target = $region104
        $region103: #{tpu_custom_call.1} parent=91 // pred_region
          %905 = dma.done %s898, 256
        $region104: #{tpu_custom_call.1} parent=91 // pred_fallthru
          _
        %s906 = sand.u32 %s36, 1
        %s907 = scalar_lea.sflag [#allocation5], %s906
        %s908 = sand.u32 %s129, 1
        %s909 = scalar_lea.vmem [#allocation10], %s908
        // Predicated region
        $region105: #{tpu_custom_call.1} parent=91 // pred_check
          %p910 = pneg %p142
        $region106: #{tpu_custom_call.1} parent=91 // pred_check_branch
          %912 = sbr.rel (%p910) target = $region108
        $region107: #{tpu_custom_call.1} parent=91 // pred_region
          %913 = dma.done %s907, 16
        $region108: #{tpu_custom_call.1} parent=91 // pred_fallthru
          _
        %s914 = sand.u32 %s36, 1
        %s915 = scalar_lea.sflag [#allocation5], %s914
        %s916 = sand.u32 %s155, 1
        %s917 = smul.addr %s916, 16
        %s918 = scalar_lea.vmem [#allocation11], %s917
        // Predicated region
        $region109: #{tpu_custom_call.1} parent=91 // pred_check
          %p919 = pneg %p168
        $region110: #{tpu_custom_call.1} parent=91 // pred_check_branch
          %921 = sbr.rel (%p919) target = $region112
        $region111: #{tpu_custom_call.1} parent=91 // pred_region
          %922 = dma.done %s915, 256
        $region112: #{tpu_custom_call.1} parent=91 // pred_fallthru
          _
        %s923 = sand.u32 %s36, 1
        %s924 = scalar_lea.sflag [#allocation5], %s923
        %s925 = sand.u32 %s181, 1
        %s926 = scalar_lea.vmem [#allocation12], %s925
        // Predicated region
        $region113: #{tpu_custom_call.1} parent=91 // pred_check
          %p927 = pneg %p194
        $region114: #{tpu_custom_call.1} parent=91 // pred_check_branch
          %929 = sbr.rel (%p927) target = $region116
        $region115: #{tpu_custom_call.1} parent=91 // pred_region
          %930 = dma.done %s924, 16
        $region116: #{tpu_custom_call.1} parent=91 // pred_fallthru
          _
        %s931 = sand.u32 %s36, 1
        %s932 = scalar_lea.sflag [#allocation5], %s931
        %s933 = sand.u32 %s207, 1
        %s934 = scalar_lea.vmem [#allocation13], %s933
        // Predicated region
        $region117: #{tpu_custom_call.1} parent=91 // pred_check
          %p935 = pneg %p220
        $region118: #{tpu_custom_call.1} parent=91 // pred_check_branch
          %937 = sbr.rel (%p935) target = $region120
        $region119: #{tpu_custom_call.1} parent=91 // pred_region
          %938 = dma.done %s932, 16
        $region120: #{tpu_custom_call.1} parent=91 // pred_fallthru
          _
        %s939 = sand.u32 %s36, 1
        %s940 = scalar_lea.sflag [#allocation5], %s939
        %s941 = sand.u32 %s233, 1
        %s942 = scalar_lea.vmem [#allocation14], %s941
        // Predicated region
        $region121: #{tpu_custom_call.1} parent=91 // pred_check
          %p943 = pneg %p246
        $region122: #{tpu_custom_call.1} parent=91 // pred_check_branch
          %945 = sbr.rel (%p943) target = $region124
        $region123: #{tpu_custom_call.1} parent=91 // pred_region
          %946 = dma.done %s940, 16
        $region124: #{tpu_custom_call.1} parent=91 // pred_fallthru
          _
        %s947 = sand.u32 %s36, 1
        %s948 = scalar_lea.sflag [#allocation5], %s947
        %s949 = sand.u32 %s259, 1
        %s950 = smul.addr %s949, 16
        %s951 = scalar_lea.vmem [#allocation15], %s950
        // Predicated region
        $region125: #{tpu_custom_call.1} parent=91 // pred_check
          %p952 = pneg %p272
        $region126: #{tpu_custom_call.1} parent=91 // pred_check_branch
          %954 = sbr.rel (%p952) target = $region128
        $region127: #{tpu_custom_call.1} parent=91 // pred_region
          %955 = dma.done %s948, 256
        $region128: #{tpu_custom_call.1} parent=91 // pred_fallthru
          _
        %s956 = sand.u32 %s36, 1
        %s957 = scalar_lea.sflag [#allocation5], %s956
        %s958 = sand.u32 %s285, 1
        %s959 = scalar_lea.vmem [#allocation16], %s958
        // Predicated region
        $region129: #{tpu_custom_call.1} parent=91 // pred_check
          %p960 = pneg %p298
        $region130: #{tpu_custom_call.1} parent=91 // pred_check_branch
          %962 = sbr.rel (%p960) target = $region132
        $region131: #{tpu_custom_call.1} parent=91 // pred_region
          %963 = dma.done %s957, 16
        $region132: #{tpu_custom_call.1} parent=91 // pred_fallthru
          _
        %s964 = sand.u32 %s36, 1
        %s965 = scalar_lea.sflag [#allocation5], %s964
        %s966 = sand.u32 %s311, 1
        %s967 = scalar_lea.vmem [#allocation17], %s966
        // Predicated region
        $region133: #{tpu_custom_call.1} parent=91 // pred_check
          %p968 = pneg %p324
        $region134: #{tpu_custom_call.1} parent=91 // pred_check_branch
          %970 = sbr.rel (%p968) target = $region136
        $region135: #{tpu_custom_call.1} parent=91 // pred_region
          %971 = dma.done %s965, 16
        $region136: #{tpu_custom_call.1} parent=91 // pred_fallthru
          _
        %s972 = sand.u32 %s36, 1
        %s973 = scalar_lea.sflag [#allocation5], %s972
        %s974 = sand.u32 %s337, 1
        %s975 = scalar_lea.vmem [#allocation18], %s974
        // Predicated region
        $region137: #{tpu_custom_call.1} parent=91 // pred_check
          %p976 = pneg %p350
        $region138: #{tpu_custom_call.1} parent=91 // pred_check_branch
          %978 = sbr.rel (%p976) target = $region140
        $region139: #{tpu_custom_call.1} parent=91 // pred_region
          %979 = dma.done %s973, 16
        $region140: #{tpu_custom_call.1} parent=91 // pred_fallthru
          _
        %s980 = sand.u32 %s36, 1
        %s981 = scalar_lea.sflag [#allocation5], %s980
        %s982 = sand.u32 %s363, 1
        %s983 = smul.addr %s982, 16
        %s984 = scalar_lea.vmem [#allocation19], %s983
        // Predicated region
        $region141: #{tpu_custom_call.1} parent=91 // pred_check
          %p985 = pneg %p376
        $region142: #{tpu_custom_call.1} parent=91 // pred_check_branch
          %987 = sbr.rel (%p985) target = $region144
        $region143: #{tpu_custom_call.1} parent=91 // pred_region
          %988 = dma.done %s981, 256
        $region144: #{tpu_custom_call.1} parent=91 // pred_fallthru
          _
        %s989 = sand.u32 %s36, 1
        %s990 = scalar_lea.sflag [#allocation5], %s989
        %s991 = sand.u32 %s389, 1
        %s992 = scalar_lea.vmem [#allocation20], %s991
        // Predicated region
        $region145: #{tpu_custom_call.1} parent=91 // pred_check
          %p993 = pneg %p402
        $region146: #{tpu_custom_call.1} parent=91 // pred_check_branch
          %995 = sbr.rel (%p993) target = $region148
        $region147: #{tpu_custom_call.1} parent=91 // pred_region
          %996 = dma.done %s990, 16
        $region148: #{tpu_custom_call.1} parent=91 // pred_fallthru
          _
        %s997 = sand.u32 %s36, 1
        %s998 = scalar_lea.sflag [#allocation5], %s997
        %s999 = sand.u32 %s415, 1
        %s1000 = smul.addr %s999, 32
        %s1001 = scalar_lea.vmem [#allocation21], %s1000
        // Predicated region
        $region149: #{tpu_custom_call.1} parent=91 // pred_check
          %p1002 = pneg %p428
        $region150: #{tpu_custom_call.1} parent=91 // pred_check_branch
          %1004 = sbr.rel (%p1002) target = $region152
        $region151: #{tpu_custom_call.1} parent=91 // pred_region
          %1005 = dma.done %s998, 512
        $region152: #{tpu_custom_call.1} parent=91 // pred_fallthru
          _
        %s1006 = sand.u32 %s36, 1
        %s1007 = scalar_lea.sflag [#allocation5], %s1006
        %s1008 = sand.u32 %s441, 1
        %s1009 = scalar_lea.vmem [#allocation22], %s1008
        // Predicated region
        $region153: #{tpu_custom_call.1} parent=91 // pred_check
          %p1010 = pneg %p454
        $region154: #{tpu_custom_call.1} parent=91 // pred_check_branch
          %1012 = sbr.rel (%p1010) target = $region156
        $region155: #{tpu_custom_call.1} parent=91 // pred_region
          %1013 = dma.done %s1007, 16
        $region156: #{tpu_custom_call.1} parent=91 // pred_fallthru
          _
        %s1014 = sand.u32 %s36, 1
        %s1015 = scalar_lea.sflag [#allocation5], %s1014
        %s1016 = sand.u32 %s467, 1
        %s1017 = scalar_lea.vmem [#allocation23], %s1016
        // Predicated region
        $region157: #{tpu_custom_call.1} parent=91 // pred_check
          %p1018 = pneg %p480
        $region158: #{tpu_custom_call.1} parent=91 // pred_check_branch
          %1020 = sbr.rel (%p1018) target = $region160
        $region159: #{tpu_custom_call.1} parent=91 // pred_region
          %1021 = dma.done %s1015, 16
        $region160: #{tpu_custom_call.1} parent=91 // pred_fallthru
          _
        %s1022 = sand.u32 %s36, 1
        %s1023 = scalar_lea.sflag [#allocation5], %s1022
        %s1024 = sand.u32 %s493, 1
        %s1025 = scalar_lea.vmem [#allocation24], %s1024
        // Predicated region
        $region161: #{tpu_custom_call.1} parent=91 // pred_check
          %p1026 = pneg %p506
        $region162: #{tpu_custom_call.1} parent=91 // pred_check_branch
          %1028 = sbr.rel (%p1026) target = $region164
        $region163: #{tpu_custom_call.1} parent=91 // pred_region
          %1029 = dma.done %s1023, 16
        $region164: #{tpu_custom_call.1} parent=91 // pred_fallthru
          _
        %s1030 = sand.u32 %s36, 1
        %s1031 = scalar_lea.sflag [#allocation5], %s1030
        %s1032 = sand.u32 %s56, 1
        %s1033 = smul.addr %s1032, 16
        %s1034 = scalar_lea.vmem [#allocation4], %s1033
        %p1035 = pneg %p69
        %p1036 = pneg %p66
        %p1037 = pneg %p90
        %p1038 = pneg %p87
        %s1039 = sand.u32 %s36, 1
        %s1040 = scalar_lea.sflag [#allocation5], %s1039
        %s1041 = sand.u32 %s103, 1
        %s1042 = smul.addr %s1041, 16
        %s1043 = scalar_lea.vmem [#allocation9], %s1042
        %p1044 = pneg %p116
        %p1045 = pneg %p113
        %s1046 = sand.u32 %s36, 1
        %s1047 = scalar_lea.sflag [#allocation5], %s1046
        %s1048 = sand.u32 %s129, 1
        %s1049 = scalar_lea.vmem [#allocation10], %s1048
        %p1050 = pneg %p142
        %p1051 = pneg %p139
        %s1052 = sand.u32 %s36, 1
        %s1053 = scalar_lea.sflag [#allocation5], %s1052
        %s1054 = sand.u32 %s155, 1
        %s1055 = smul.addr %s1054, 16
        %s1056 = scalar_lea.vmem [#allocation11], %s1055
        %p1057 = pneg %p168
        %p1058 = pneg %p165
        %s1059 = sand.u32 %s36, 1
        %s1060 = scalar_lea.sflag [#allocation5], %s1059
        %s1061 = sand.u32 %s181, 1
        %s1062 = scalar_lea.vmem [#allocation12], %s1061
        %p1063 = pneg %p194
        %p1064 = pneg %p191
        %s1065 = sand.u32 %s36, 1
        %s1066 = scalar_lea.sflag [#allocation5], %s1065
        %s1067 = sand.u32 %s207, 1
        %s1068 = scalar_lea.vmem [#allocation13], %s1067
        %p1069 = pneg %p220
        %p1070 = pneg %p217
        %s1071 = sand.u32 %s36, 1
        %s1072 = scalar_lea.sflag [#allocation5], %s1071
        %s1073 = sand.u32 %s233, 1
        %s1074 = scalar_lea.vmem [#allocation14], %s1073
        %p1075 = pneg %p246
        %p1076 = pneg %p243
        %s1077 = sand.u32 %s36, 1
        %s1078 = scalar_lea.sflag [#allocation5], %s1077
        %s1079 = sand.u32 %s259, 1
        %s1080 = smul.addr %s1079, 16
        %s1081 = scalar_lea.vmem [#allocation15], %s1080
        %p1082 = pneg %p272
        %p1083 = pneg %p269
        %s1084 = sand.u32 %s36, 1
        %s1085 = scalar_lea.sflag [#allocation5], %s1084
        %s1086 = sand.u32 %s285, 1
        %s1087 = scalar_lea.vmem [#allocation16], %s1086
        %p1088 = pneg %p298
        %p1089 = pneg %p295
        %s1090 = sand.u32 %s36, 1
        %s1091 = scalar_lea.sflag [#allocation5], %s1090
        %s1092 = sand.u32 %s311, 1
        %s1093 = scalar_lea.vmem [#allocation17], %s1092
        %p1094 = pneg %p324
        %p1095 = pneg %p321
        %s1096 = sand.u32 %s36, 1
        %s1097 = scalar_lea.sflag [#allocation5], %s1096
        %s1098 = sand.u32 %s337, 1
        %s1099 = scalar_lea.vmem [#allocation18], %s1098
        %p1100 = pneg %p350
        %p1101 = pneg %p347
        %s1102 = sand.u32 %s36, 1
        %s1103 = scalar_lea.sflag [#allocation5], %s1102
        %s1104 = sand.u32 %s363, 1
        %s1105 = smul.addr %s1104, 16
        %s1106 = scalar_lea.vmem [#allocation19], %s1105
        %p1107 = pneg %p376
        %p1108 = pneg %p373
        %s1109 = sand.u32 %s36, 1
        %s1110 = scalar_lea.sflag [#allocation5], %s1109
        %s1111 = sand.u32 %s389, 1
        %s1112 = scalar_lea.vmem [#allocation20], %s1111
        %p1113 = pneg %p402
        %p1114 = pneg %p399
        %s1115 = sand.u32 %s36, 1
        %s1116 = scalar_lea.sflag [#allocation5], %s1115
        %s1117 = sand.u32 %s415, 1
        %s1118 = smul.addr %s1117, 32
        %s1119 = scalar_lea.vmem [#allocation21], %s1118
        %p1120 = pneg %p428
        %p1121 = pneg %p425
        %s1122 = sand.u32 %s36, 1
        %s1123 = scalar_lea.sflag [#allocation5], %s1122
        %s1124 = sand.u32 %s441, 1
        %s1125 = scalar_lea.vmem [#allocation22], %s1124
        %p1126 = pneg %p454
        %p1127 = pneg %p451
        %s1128 = sand.u32 %s36, 1
        %s1129 = scalar_lea.sflag [#allocation5], %s1128
        %s1130 = sand.u32 %s467, 1
        %s1131 = scalar_lea.vmem [#allocation23], %s1130
        %p1132 = pneg %p480
        %p1133 = pneg %p477
        %s1134 = sand.u32 %s36, 1
        %s1135 = scalar_lea.sflag [#allocation5], %s1134
        %s1136 = sand.u32 %s493, 1
        %s1137 = scalar_lea.vmem [#allocation24], %s1136
        %p1138 = pneg %p506
        %p1139 = pneg %p503
        %p1140 = pneg %p534
        %p1141 = pneg %p531
        %s1142 = sand.u32 %s521, 1
        %s1143 = scalar_lea.sflag [#allocation6], %s1142
        %s1144 = sand.u32 %s521, 1
        %s1145 = smul.addr %s1144, 16
        %s1146 = scalar_lea.vmem [#allocation25], %s1145
        %s1147 = smul.u32 2, %s40
        %s1148 = smul.u32 2, %s40
        %p1150 = scmp.eq.s32.totalorder %s41, 0
        // Predicated region
        $region165: #{tpu_custom_call.1} parent=91 // pred_check
          %p1151 = pneg %p1150
        $region166: #{tpu_custom_call.1} parent=91 // pred_check_branch
          %1153 = sbr.rel (%p1151) target = $region168
        $region167: #{tpu_custom_call.1} parent=91 // pred_region
          %v1154 = vld [vmem:[%s888] sm:$0xff]
          %v1155 = vld [vmem:[%s888 + $0x8] sm:$0xff]
          %vm1156 = vcmask 261120
          %1157 = vst.msk [vmem:[#allocation2] sm:$0xff] %vm1156, %v1154
          %1158 = vst.msk [vmem:[#allocation2 + $0x8] sm:$0xff] %vm1156, %v1155
        $region168: #{tpu_custom_call.1} parent=91 // pred_fallthru
          _
        %v1159 = vld [vmem:[#allocation2] sm:$0xff]
        %v1160 = vld [vmem:[#allocation2 + $0x8] sm:$0xff]
        %v1161 = vpack.c.bf16 %v1160, %v1159
        %v1162 = vld [vmem:[%s901] sm:$0xf]
        %v1163 = vld [vmem:[%s901 + $0x4] sm:$0xf]
        %v1164 = vld [vmem:[%s901 + $0x8] sm:$0xf]
        %v1165 = vld [vmem:[%s901 + $0xc] sm:$0xf]
        %v1166 = vld [vmem:[%s909] sm:$0x1]
        %v1168 = vlaneseq
        %v1169 = vshrl.u32 %v1168, 7
        %v1170 = vsub.s32 0, %v1169
        %v1171 = vrot.slane %v1166, %v1170
        %v1177 = vunpack.c.l.b16 %v1162
        %v1178 = vunpack.c.l.b16 %v1163
        %v1179 = vunpack.c.l.b16 %v1164
        %v1180 = vunpack.c.l.b16 %v1165
        %v1181 = vpack.c.b16 %v1178, %v1177
        %v1182 = vpack.c.b16 %v1180, %v1179
        %vm1185 = vcmask 261120
        %v1187 = vsel %vm1185, %v1161, 0
        %1189 = vmatprep.subr.bf16.mxu0 0
        %1190 = vmatpush1.bf16.msra.mxu0 %v1181
        %1191 = vmatprep.subr.bf16.mxu0 0
        %1192 = vmatpush1.bf16.msra.mxu0 %v1182
        %1193 = vmatprep.subr.bf16.mxu0 0
        %1194 = vmatpush1.bf16.msra.mxu0 0
        %1195 = vmatprep.subr.bf16.mxu0 0
        %1196 = vmatpush1.bf16.msra.mxu0 0
        %1197 = vmatprep.subr.bf16.mxu0 0
        %1198 = vmatpush1.bf16.msra.mxu0 0
        %1199 = vmatprep.subr.bf16.mxu0 0
        %1200 = vmatpush1.bf16.msra.mxu0 0
        %1201 = vmatprep.subr.bf16.mxu0 0
        %1202 = vmatpush1.bf16.msra.mxu0 0
        %1203 = vmatprep.subr.bf16.mxu0 0
        %1204 = vmatpush1.bf16.msra.mxu0 0
        %1205 = vmatprep.subr.bf16.mxu0 0
        %1206 = vmatpush1.bf16.msra.mxu0 0
        %1207 = vmatprep.subr.bf16.mxu0 0
        %1208 = vmatpush1.bf16.msra.mxu0 0
        %1209 = vmatprep.subr.bf16.mxu0 0
        %1210 = vmatpush1.bf16.msra.mxu0 0
        %1211 = vmatprep.subr.bf16.mxu0 0
        %1212 = vmatpush1.bf16.msra.mxu0 0
        %1213 = vmatprep.subr.bf16.mxu0 0
        %1214 = vmatpush1.bf16.msra.mxu0 0
        %1215 = vmatprep.subr.bf16.mxu0 0
        %1216 = vmatpush1.bf16.msra.mxu0 0
        %1217 = vmatprep.subr.bf16.mxu0 0
        %1218 = vmatpush1.bf16.msra.mxu0 0
        %1219 = vmatprep.subr.bf16.mxu0 0
        %1220 = vmatpush1.bf16.msra.mxu0 0
        %1221 = vmatprep.mubr.bf16.mxu0 0
        %1222 = vmatmul.mubr.bf16.gmra.mrb[0].mxu0 %v1187
        %v1223 = vpop.f32.mrb[0].mxu0
        %v1224 = vadd.f32 %v1171, %v1223
        %v1225 = vpop.f32.mrb[0].mxu0
        %v1226 = vpop.f32.mrb[0].mxu0
        %v1227 = vadd.f32 %v1171, %v1226
        %v1228 = vpop.f32.mrb[0].mxu0
        %1229 = vdwg.mxu0
        %1232 = vrot.lane.b32.xlu0 %v1224, 32
        %v1233 = vpop.permute.xlu0 %1232
        %1234 = vrot.lane.b32.xlu0 %v1227, 32
        %v1235 = vpop.permute.xlu0 %1234
        %1238 = vxpose.xlu0.b32.start [1/16] %v1233, 128
        %1239 = vxpose.xlu0.b32.cont [2/16] 0.0, 128
        %1240 = vxpose.xlu0.b32.cont [3/16] 0.0, 128
        %1241 = vxpose.xlu0.b32.cont [4/16] 0.0, 128
        %1242 = vxpose.xlu0.b32.cont [5/16] 0.0, 128
        %1243 = vxpose.xlu0.b32.cont [6/16] 0.0, 128
        %1244 = vxpose.xlu0.b32.cont [7/16] 0.0, 128
        %1245 = vxpose.xlu0.b32.cont [8/16] 0.0, 128
        %1246 = vxpose.xlu0.b32.cont [9/16] 0.0, 128
        %1247 = vxpose.xlu0.b32.cont [10/16] 0.0, 128
        %1248 = vxpose.xlu0.b32.cont [11/16] 0.0, 128
        %1249 = vxpose.xlu0.b32.cont [12/16] 0.0, 128
        %1250 = vxpose.xlu0.b32.cont [13/16] 0.0, 128
        %1251 = vxpose.xlu0.b32.cont [14/16] 0.0, 128
        %1252 = vxpose.xlu0.b32.cont [15/16] 0.0, 128
        %1253 = vxpose.xlu0.b32.end [16/16] 0.0, 128
        %v1254 = vpop.trf.xlu0
        %v1255 = vpop.trf.xlu0
        %v1256 = vpop.trf.xlu0
        %v1257 = vpop.trf.xlu0
        %v1258 = vpop.trf.xlu0
        %v1259 = vpop.trf.xlu0
        %v1260 = vpop.trf.xlu0
        %v1261 = vpop.trf.xlu0
        %v1262 = vpop.trf.xlu0
        %v1263 = vpop.trf.xlu0
        %v1264 = vpop.trf.xlu0
        %v1265 = vpop.trf.xlu0
        %v1266 = vpop.trf.xlu0
        %v1267 = vpop.trf.xlu0
        %v1268 = vpop.trf.xlu0
        %v1269 = vpop.trf.xlu0
        %1270 = vxpose.xlu0.b32.start [1/16] %v1235, 128
        %1271 = vxpose.xlu0.b32.cont [2/16] 0.0, 128
        %1272 = vxpose.xlu0.b32.cont [3/16] 0.0, 128
        %1273 = vxpose.xlu0.b32.cont [4/16] 0.0, 128
        %1274 = vxpose.xlu0.b32.cont [5/16] 0.0, 128
        %1275 = vxpose.xlu0.b32.cont [6/16] 0.0, 128
        %1276 = vxpose.xlu0.b32.cont [7/16] 0.0, 128
        %1277 = vxpose.xlu0.b32.cont [8/16] 0.0, 128
        %1278 = vxpose.xlu0.b32.cont [9/16] 0.0, 128
        %1279 = vxpose.xlu0.b32.cont [10/16] 0.0, 128
        %1280 = vxpose.xlu0.b32.cont [11/16] 0.0, 128
        %1281 = vxpose.xlu0.b32.cont [12/16] 0.0, 128
        %1282 = vxpose.xlu0.b32.cont [13/16] 0.0, 128
        %1283 = vxpose.xlu0.b32.cont [14/16] 0.0, 128
        %1284 = vxpose.xlu0.b32.cont [15/16] 0.0, 128
        %1285 = vxpose.xlu0.b32.end [16/16] 0.0, 128
        %v1286 = vpop.trf.xlu0
        %v1287 = vpop.trf.xlu0
        %v1288 = vpop.trf.xlu0
        %v1289 = vpop.trf.xlu0
        %v1290 = vpop.trf.xlu0
        %v1291 = vpop.trf.xlu0
        %v1292 = vpop.trf.xlu0
        %v1293 = vpop.trf.xlu0
        %v1294 = vpop.trf.xlu0
        %v1295 = vpop.trf.xlu0
        %v1296 = vpop.trf.xlu0
        %v1297 = vpop.trf.xlu0
        %v1298 = vpop.trf.xlu0
        %v1299 = vpop.trf.xlu0
        %v1300 = vpop.trf.xlu0
        %v1301 = vpop.trf.xlu0
        %vm1302 = vcmask 64512
        %v1303 = vsel %vm1302, %v1254, -inf
        %1304 = vmax.xlane.f32.xlu0 %v1303
        %v1305 = vpop.xlane.xlu0 %1304
        %vm1306 = vcmask 58368
        %v1307 = vsel %vm1306, %v1255, -inf
        %1308 = vmax.xlane.f32.xlu0 %v1307
        %v1309 = vpop.xlane.xlu0 %1308
        %v1310 = vsel %vm1302, %v1286, -inf
        %1311 = vmax.xlane.f32.xlu0 %v1310
        %v1312 = vpop.xlane.xlu0 %1311
        %v1313 = vsel %vm1306, %v1287, -inf
        %1314 = vmax.xlane.f32.xlu0 %v1313
        %v1315 = vpop.xlane.xlu0 %1314
        %v1316 = vsub.f32 %v1254, %v1305
        %v1317 = vsub.f32 %v1255, %v1309
        %v1318 = vsub.f32 %v1286, %v1312
        %v1319 = vsub.f32 %v1287, %v1315
        %v1320 = vmul.f32 %v1316, 1.442695
        %v1321 = vpow.pop %v1320
        %v1322 = vmul.f32 %v1317, 1.442695
        %v1323 = vpow.pop %v1322
        %v1324 = vmul.f32 %v1318, 1.442695
        %v1325 = vpow.pop %v1324
        %v1326 = vmul.f32 %v1319, 1.442695
        %v1327 = vpow.pop %v1326
        %v1328 = vsel %vm1302, %v1321, 0.0
        %1329 = vadd.xlane.f32.xlu0 %v1328
        %v1330 = vpop.xlane.xlu0 %1329
        %v1331 = vsel %vm1306, %v1323, 0.0
        %1332 = vadd.xlane.f32.xlu0 %v1331
        %v1333 = vpop.xlane.xlu0 %1332
        %v1334 = vsel %vm1302, %v1325, 0.0
        %1335 = vadd.xlane.f32.xlu0 %v1334
        %v1336 = vpop.xlane.xlu0 %1335
        %v1337 = vsel %vm1306, %v1327, 0.0
        %1338 = vadd.xlane.f32.xlu0 %v1337
        %v1339 = vpop.xlane.xlu0 %1338
        %v1340 = vrcp.pop %v1330
        %v1341 = vmul.f32 %v1321, %v1340
        %v1342 = vrcp.pop %v1333
        %v1343 = vmul.f32 %v1323, %v1342
        %v1344 = vrcp.pop %v1336
        %v1345 = vmul.f32 %v1325, %v1344
        %v1346 = vrcp.pop %v1339
        %v1347 = vmul.f32 %v1327, %v1346
        %v1348 = vpack.c.bf16 %v1343, %v1341
        %v1349 = vpack.c.bf16 %v1347, %v1345
        %v1350 = vpack.c.bf16 %v1224, %v1224
        %v1351 = vpack.c.bf16 %v1227, %v1227
        %1353 = vrot.lane.b32.xlu0 %v1350, 96
        %v1354 = vpop.permute.xlu0 %1353
        %v1356 = vsel %vm1302, %v1348, 0
        %vm1358 = vcmask 1043456
        %v1360 = vsel %vm1358, %v1354, 0
        %1362 = vmatprep.subr.bf16.mxu0 0
        %1363 = vmatpush1.bf16.msra.mxu0 %v1360
        %1364 = vmatprep.subr.bf16.mxu0 0
        %1365 = vmatpush1.bf16.msra.mxu0 0
        %1366 = vmatprep.subr.bf16.mxu0 0
        %1367 = vmatpush1.bf16.msra.mxu0 0
        %1368 = vmatprep.subr.bf16.mxu0 0
        %1369 = vmatpush1.bf16.msra.mxu0 0
        %1370 = vmatprep.subr.bf16.mxu0 0
        %1371 = vmatpush1.bf16.msra.mxu0 0
        %1372 = vmatprep.subr.bf16.mxu0 0
        %1373 = vmatpush1.bf16.msra.mxu0 0
        %1374 = vmatprep.subr.bf16.mxu0 0
        %1375 = vmatpush1.bf16.msra.mxu0 0
        %1376 = vmatprep.subr.bf16.mxu0 0
        %1377 = vmatpush1.bf16.msra.mxu0 0
        %1378 = vmatprep.subr.bf16.mxu0 0
        %1379 = vmatpush1.bf16.msra.mxu0 0
        %1380 = vmatprep.subr.bf16.mxu0 0
        %1381 = vmatpush1.bf16.msra.mxu0 0
        %1382 = vmatprep.subr.bf16.mxu0 0
        %1383 = vmatpush1.bf16.msra.mxu0 0
        %1384 = vmatprep.subr.bf16.mxu0 0
        %1385 = vmatpush1.bf16.msra.mxu0 0
        %1386 = vmatprep.subr.bf16.mxu0 0
        %1387 = vmatpush1.bf16.msra.mxu0 0
        %1388 = vmatprep.subr.bf16.mxu0 0
        %1389 = vmatpush1.bf16.msra.mxu0 0
        %1390 = vmatprep.subr.bf16.mxu0 0
        %1391 = vmatpush1.bf16.msra.mxu0 0
        %1392 = vmatprep.subr.bf16.mxu0 0
        %1393 = vmatpush1.bf16.msra.mxu0 0
        %1394 = vmatprep.mubr.bf16.mxu0 0
        %1395 = vmatmul.mubr.bf16.gmra.mrb[0].mxu0 %v1356
        %v1396 = vpop.f32.mrb[0].mxu0
        %v1397 = vadd.f32 0.0, %v1396
        %v1398 = vpop.f32.mrb[0].mxu0
        %v1399 = vpop.f32.mrb[0].mxu0
        %v1400 = vpop.f32.mrb[0].mxu0
        %1401 = vdwg.mxu0
        %1403 = vrot.lane.b32.xlu0 %v1351, 96
        %v1404 = vpop.permute.xlu0 %1403
        %v1406 = vsel %vm1302, %v1349, 0
        %v1409 = vsel %vm1358, %v1404, 0
        %1411 = vmatprep.subr.bf16.mxu0 0
        %1412 = vmatpush1.bf16.msra.mxu0 %v1409
        %1413 = vmatprep.subr.bf16.mxu0 0
        %1414 = vmatpush1.bf16.msra.mxu0 0
        %1415 = vmatprep.subr.bf16.mxu0 0
        %1416 = vmatpush1.bf16.msra.mxu0 0
        %1417 = vmatprep.subr.bf16.mxu0 0
        %1418 = vmatpush1.bf16.msra.mxu0 0
        %1419 = vmatprep.subr.bf16.mxu0 0
        %1420 = vmatpush1.bf16.msra.mxu0 0
        %1421 = vmatprep.subr.bf16.mxu0 0
        %1422 = vmatpush1.bf16.msra.mxu0 0
        %1423 = vmatprep.subr.bf16.mxu0 0
        %1424 = vmatpush1.bf16.msra.mxu0 0
        %1425 = vmatprep.subr.bf16.mxu0 0
        %1426 = vmatpush1.bf16.msra.mxu0 0
        %1427 = vmatprep.subr.bf16.mxu0 0
        %1428 = vmatpush1.bf16.msra.mxu0 0
        %1429 = vmatprep.subr.bf16.mxu0 0
        %1430 = vmatpush1.bf16.msra.mxu0 0
        %1431 = vmatprep.subr.bf16.mxu0 0
        %1432 = vmatpush1.bf16.msra.mxu0 0
        %1433 = vmatprep.subr.bf16.mxu0 0
        %1434 = vmatpush1.bf16.msra.mxu0 0
        %1435 = vmatprep.subr.bf16.mxu0 0
        %1436 = vmatpush1.bf16.msra.mxu0 0
        %1437 = vmatprep.subr.bf16.mxu0 0
        %1438 = vmatpush1.bf16.msra.mxu0 0
        %1439 = vmatprep.subr.bf16.mxu0 0
        %1440 = vmatpush1.bf16.msra.mxu0 0
        %1441 = vmatprep.subr.bf16.mxu0 0
        %1442 = vmatpush1.bf16.msra.mxu0 0
        %1443 = vmatprep.mubr.bf16.mxu0 0
        %1444 = vmatmul.mubr.bf16.gmra.mrb[0].mxu0 %v1406
        %v1445 = vpop.f32.mrb[0].mxu0
        %v1446 = vadd.f32 0.0, %v1445
        %v1447 = vpop.f32.mrb[0].mxu0
        %v1448 = vpop.f32.mrb[0].mxu0
        %v1449 = vpop.f32.mrb[0].mxu0
        %1450 = vdwg.mxu0
        %v1451 = vshrl.u32 %v1348, 16
        %v1453 = vrot.slane %v1451, 2
        %v1454 = vshll.u32 %v1348, 16
        %v1456 = vrot.slane %v1454, 3
        %v1457 = vor.u32 %v1453, %v1456
        %1458 = vrot.lane.b32.xlu0 %v1350, 64
        %v1459 = vpop.permute.xlu0 %1458
        %v1461 = vsel %vm1302, %v1457, 0
        %v1464 = vsel %vm1358, %v1459, 0
        %1466 = vmatprep.subr.bf16.mxu0 0
        %1467 = vmatpush1.bf16.msra.mxu0 %v1464
        %1468 = vmatprep.subr.bf16.mxu0 0
        %1469 = vmatpush1.bf16.msra.mxu0 0
        %1470 = vmatprep.subr.bf16.mxu0 0
        %1471 = vmatpush1.bf16.msra.mxu0 0
        %1472 = vmatprep.subr.bf16.mxu0 0
        %1473 = vmatpush1.bf16.msra.mxu0 0
        %1474 = vmatprep.subr.bf16.mxu0 0
        %1475 = vmatpush1.bf16.msra.mxu0 0
        %1476 = vmatprep.subr.bf16.mxu0 0
        %1477 = vmatpush1.bf16.msra.mxu0 0
        %1478 = vmatprep.subr.bf16.mxu0 0
        %1479 = vmatpush1.bf16.msra.mxu0 0
        %1480 = vmatprep.subr.bf16.mxu0 0
        %1481 = vmatpush1.bf16.msra.mxu0 0
        %1482 = vmatprep.subr.bf16.mxu0 0
        %1483 = vmatpush1.bf16.msra.mxu0 0
        %1484 = vmatprep.subr.bf16.mxu0 0
        %1485 = vmatpush1.bf16.msra.mxu0 0
        %1486 = vmatprep.subr.bf16.mxu0 0
        %1487 = vmatpush1.bf16.msra.mxu0 0
        %1488 = vmatprep.subr.bf16.mxu0 0
        %1489 = vmatpush1.bf16.msra.mxu0 0
        %1490 = vmatprep.subr.bf16.mxu0 0
        %1491 = vmatpush1.bf16.msra.mxu0 0
        %1492 = vmatprep.subr.bf16.mxu0 0
        %1493 = vmatpush1.bf16.msra.mxu0 0
        %1494 = vmatprep.subr.bf16.mxu0 0
        %1495 = vmatpush1.bf16.msra.mxu0 0
        %1496 = vmatprep.subr.bf16.mxu0 0
        %1497 = vmatpush1.bf16.msra.mxu0 0
        %1498 = vmatprep.mubr.bf16.mxu0 0
        %1499 = vmatmul.mubr.bf16.gmra.mrb[0].mxu0 %v1461
        %v1500 = vpop.f32.mrb[0].mxu0
        %v1501 = vadd.f32 0.0, %v1500
        %v1502 = vpop.f32.mrb[0].mxu0
        %v1503 = vpop.f32.mrb[0].mxu0
        %v1504 = vpop.f32.mrb[0].mxu0
        %1505 = vdwg.mxu0
        %v1506 = vshrl.u32 %v1349, 16
        %v1508 = vrot.slane %v1506, 2
        %v1509 = vshll.u32 %v1349, 16
        %v1511 = vrot.slane %v1509, 3
        %v1512 = vor.u32 %v1508, %v1511
        %1513 = vrot.lane.b32.xlu0 %v1351, 64
        %v1514 = vpop.permute.xlu0 %1513
        %v1516 = vsel %vm1302, %v1512, 0
        %v1519 = vsel %vm1358, %v1514, 0
        %1521 = vmatprep.subr.bf16.mxu0 0
        %1522 = vmatpush1.bf16.msra.mxu0 %v1519
        %1523 = vmatprep.subr.bf16.mxu0 0
        %1524 = vmatpush1.bf16.msra.mxu0 0
        %1525 = vmatprep.subr.bf16.mxu0 0
        %1526 = vmatpush1.bf16.msra.mxu0 0
        %1527 = vmatprep.subr.bf16.mxu0 0
        %1528 = vmatpush1.bf16.msra.mxu0 0
        %1529 = vmatprep.subr.bf16.mxu0 0
        %1530 = vmatpush1.bf16.msra.mxu0 0
        %1531 = vmatprep.subr.bf16.mxu0 0
        %1532 = vmatpush1.bf16.msra.mxu0 0
        %1533 = vmatprep.subr.bf16.mxu0 0
        %1534 = vmatpush1.bf16.msra.mxu0 0
        %1535 = vmatprep.subr.bf16.mxu0 0
        %1536 = vmatpush1.bf16.msra.mxu0 0
        %1537 = vmatprep.subr.bf16.mxu0 0
        %1538 = vmatpush1.bf16.msra.mxu0 0
        %1539 = vmatprep.subr.bf16.mxu0 0
        %1540 = vmatpush1.bf16.msra.mxu0 0
        %1541 = vmatprep.subr.bf16.mxu0 0
        %1542 = vmatpush1.bf16.msra.mxu0 0
        %1543 = vmatprep.subr.bf16.mxu0 0
        %1544 = vmatpush1.bf16.msra.mxu0 0
        %1545 = vmatprep.subr.bf16.mxu0 0
        %1546 = vmatpush1.bf16.msra.mxu0 0
        %1547 = vmatprep.subr.bf16.mxu0 0
        %1548 = vmatpush1.bf16.msra.mxu0 0
        %1549 = vmatprep.subr.bf16.mxu0 0
        %1550 = vmatpush1.bf16.msra.mxu0 0
        %1551 = vmatprep.subr.bf16.mxu0 0
        %1552 = vmatpush1.bf16.msra.mxu0 0
        %1553 = vmatprep.mubr.bf16.mxu0 0
        %1554 = vmatmul.mubr.bf16.gmra.mrb[0].mxu0 %v1516
        %v1555 = vpop.f32.mrb[0].mxu0
        %v1556 = vadd.f32 0.0, %v1555
        %v1557 = vpop.f32.mrb[0].mxu0
        %v1558 = vpop.f32.mrb[0].mxu0
        %v1559 = vpop.f32.mrb[0].mxu0
        %1560 = vdwg.mxu0
        %v1561 = vld [vmem:[#allocation7] sm:$0xff]
        %v1562 = vld [vmem:[%s934] sm:$0x1]
        %v1563 = vld [vmem:[%s942] sm:$0x1]
        %v1564 = vsel %vm1185, %v1561, 0.0
        %1565 = vadd.xlane.f32.xlu0 %v1564
        %v1566 = vpop.xlane.xlu0 %1565
        %v1567 = vrcp.pop 32.0
        %v1568 = vmul.f32 %v1566, %v1567
        %v1569 = vsub.f32 %v1561, %v1568
        %v1570 = vmul.f32 %v1569, %v1569
        %v1571 = vsel %vm1185, %v1570, 0.0
        %1572 = vadd.xlane.f32.xlu0 %v1571
        %v1573 = vpop.xlane.xlu0 %1572
        %v1574 = vmul.f32 %v1573, %v1567
        %v1575 = vadd.f32 %v1574, 1e-12
        %v1576 = vrsqrt.pop %v1575
        %v1577 = vmul.f32 %v1569, %v1576
        %v1579 = vlaneseq
        %v1580 = vshrl.u32 %v1579, 7
        %v1581 = vsub.s32 0, %v1580
        %v1582 = vrot.slane %v1562, %v1581
        %v1584 = vmul.f32 %v1577, %v1582
        %v1586 = vlaneseq
        %v1587 = vshrl.u32 %v1586, 7
        %v1588 = vsub.s32 0, %v1587
        %v1589 = vrot.slane %v1563, %v1588
        %v1591 = vadd.f32 %v1584, %v1589
        %v1592 = vpack.c.bf16 %v1591, %v1591
        %v1593 = vld [vmem:[%s918] sm:$0xf]
        %v1594 = vld [vmem:[%s918 + $0x4] sm:$0xf]
        %v1595 = vld [vmem:[%s918 + $0x8] sm:$0xf]
        %v1596 = vld [vmem:[%s918 + $0xc] sm:$0xf]
        %v1597 = vld [vmem:[%s926] sm:$0x1]
        %v1599 = vlaneseq
        %v1600 = vshrl.u32 %v1599, 7
        %v1601 = vsub.s32 0, %v1600
        %v1602 = vrot.slane %v1597, %v1601
        %v1608 = vunpack.c.l.b16 %v1593
        %v1609 = vunpack.c.l.b16 %v1594
        %v1610 = vunpack.c.l.b16 %v1595
        %v1611 = vunpack.c.l.b16 %v1596
        %v1612 = vpack.c.b16 %v1609, %v1608
        %v1613 = vpack.c.b16 %v1611, %v1610
        %v1617 = vsel %vm1185, %v1592, 0
        %1619 = vmatprep.subr.bf16.mxu0 0
        %1620 = vmatpush1.bf16.msra.mxu0 %v1612
        %1621 = vmatprep.subr.bf16.mxu0 0
        %1622 = vmatpush1.bf16.msra.mxu0 %v1613
        %1623 = vmatprep.subr.bf16.mxu0 0
        %1624 = vmatpush1.bf16.msra.mxu0 0
        %1625 = vmatprep.subr.bf16.mxu0 0
        %1626 = vmatpush1.bf16.msra.mxu0 0
        %1627 = vmatprep.subr.bf16.mxu0 0
        %1628 = vmatpush1.bf16.msra.mxu0 0
        %1629 = vmatprep.subr.bf16.mxu0 0
        %1630 = vmatpush1.bf16.msra.mxu0 0
        %1631 = vmatprep.subr.bf16.mxu0 0
        %1632 = vmatpush1.bf16.msra.mxu0 0
        %1633 = vmatprep.subr.bf16.mxu0 0
        %1634 = vmatpush1.bf16.msra.mxu0 0
        %1635 = vmatprep.subr.bf16.mxu0 0
        %1636 = vmatpush1.bf16.msra.mxu0 0
        %1637 = vmatprep.subr.bf16.mxu0 0
        %1638 = vmatpush1.bf16.msra.mxu0 0
        %1639 = vmatprep.subr.bf16.mxu0 0
        %1640 = vmatpush1.bf16.msra.mxu0 0
        %1641 = vmatprep.subr.bf16.mxu0 0
        %1642 = vmatpush1.bf16.msra.mxu0 0
        %1643 = vmatprep.subr.bf16.mxu0 0
        %1644 = vmatpush1.bf16.msra.mxu0 0
        %1645 = vmatprep.subr.bf16.mxu0 0
        %1646 = vmatpush1.bf16.msra.mxu0 0
        %1647 = vmatprep.subr.bf16.mxu0 0
        %1648 = vmatpush1.bf16.msra.mxu0 0
        %1649 = vmatprep.subr.bf16.mxu0 0
        %1650 = vmatpush1.bf16.msra.mxu0 0
        %1651 = vmatprep.mubr.bf16.mxu0 0
        %1652 = vmatmul.mubr.bf16.gmra.mrb[0].mxu0 %v1617
        %v1653 = vpop.f32.mrb[0].mxu0
        %v1654 = vadd.f32 %v1602, %v1653
        %v1655 = vpop.f32.mrb[0].mxu0
        %v1656 = vpop.f32.mrb[0].mxu0
        %v1657 = vpop.f32.mrb[0].mxu0
        %1658 = vdwg.mxu0
        %v1659 = vmul.f32 %v1654, 0.17677669
        %1660 = vrot.lane.b32.xlu0 %v1224, 64
        %v1661 = vpop.permute.xlu0 %1660
        %1662 = vrot.lane.b32.xlu0 %v1227, 64
        %v1663 = vpop.permute.xlu0 %1662
        %1666 = vxpose.xlu0.b32.start [1/16] %v1661, 128
        %1667 = vxpose.xlu0.b32.cont [2/16] 0.0, 128
        %1668 = vxpose.xlu0.b32.cont [3/16] 0.0, 128
        %1669 = vxpose.xlu0.b32.cont [4/16] 0.0, 128
        %1670 = vxpose.xlu0.b32.cont [5/16] 0.0, 128
        %1671 = vxpose.xlu0.b32.cont [6/16] 0.0, 128
        %1672 = vxpose.xlu0.b32.cont [7/16] 0.0, 128
        %1673 = vxpose.xlu0.b32.cont [8/16] 0.0, 128
        %1674 = vxpose.xlu0.b32.cont [9/16] 0.0, 128
        %1675 = vxpose.xlu0.b32.cont [10/16] 0.0, 128
        %1676 = vxpose.xlu0.b32.cont [11/16] 0.0, 128
        %1677 = vxpose.xlu0.b32.cont [12/16] 0.0, 128
        %1678 = vxpose.xlu0.b32.cont [13/16] 0.0, 128
        %1679 = vxpose.xlu0.b32.cont [14/16] 0.0, 128
        %1680 = vxpose.xlu0.b32.cont [15/16] 0.0, 128
        %1681 = vxpose.xlu0.b32.end [16/16] 0.0, 128
        %v1682 = vpop.trf.xlu0
        %v1683 = vpop.trf.xlu0
        %v1684 = vpop.trf.xlu0
        %v1685 = vpop.trf.xlu0
        %v1686 = vpop.trf.xlu0
        %v1687 = vpop.trf.xlu0
        %v1688 = vpop.trf.xlu0
        %v1689 = vpop.trf.xlu0
        %v1690 = vpop.trf.xlu0
        %v1691 = vpop.trf.xlu0
        %v1692 = vpop.trf.xlu0
        %v1693 = vpop.trf.xlu0
        %v1694 = vpop.trf.xlu0
        %v1695 = vpop.trf.xlu0
        %v1696 = vpop.trf.xlu0
        %v1697 = vpop.trf.xlu0
        %1698 = vxpose.xlu0.b32.start [1/16] %v1663, 128
        %1699 = vxpose.xlu0.b32.cont [2/16] 0.0, 128
        %1700 = vxpose.xlu0.b32.cont [3/16] 0.0, 128
        %1701 = vxpose.xlu0.b32.cont [4/16] 0.0, 128
        %1702 = vxpose.xlu0.b32.cont [5/16] 0.0, 128
        %1703 = vxpose.xlu0.b32.cont [6/16] 0.0, 128
        %1704 = vxpose.xlu0.b32.cont [7/16] 0.0, 128
        %1705 = vxpose.xlu0.b32.cont [8/16] 0.0, 128
        %1706 = vxpose.xlu0.b32.cont [9/16] 0.0, 128
        %1707 = vxpose.xlu0.b32.cont [10/16] 0.0, 128
        %1708 = vxpose.xlu0.b32.cont [11/16] 0.0, 128
        %1709 = vxpose.xlu0.b32.cont [12/16] 0.0, 128
        %1710 = vxpose.xlu0.b32.cont [13/16] 0.0, 128
        %1711 = vxpose.xlu0.b32.cont [14/16] 0.0, 128
        %1712 = vxpose.xlu0.b32.cont [15/16] 0.0, 128
        %1713 = vxpose.xlu0.b32.end [16/16] 0.0, 128
        %v1714 = vpop.trf.xlu0
        %v1715 = vpop.trf.xlu0
        %v1716 = vpop.trf.xlu0
        %v1717 = vpop.trf.xlu0
        %v1718 = vpop.trf.xlu0
        %v1719 = vpop.trf.xlu0
        %v1720 = vpop.trf.xlu0
        %v1721 = vpop.trf.xlu0
        %v1722 = vpop.trf.xlu0
        %v1723 = vpop.trf.xlu0
        %v1724 = vpop.trf.xlu0
        %v1725 = vpop.trf.xlu0
        %v1726 = vpop.trf.xlu0
        %v1727 = vpop.trf.xlu0
        %v1728 = vpop.trf.xlu0
        %v1729 = vpop.trf.xlu0
        %v1730 = vpack.c.bf16 %v1397, %v1397
        %v1731 = vpack.c.bf16 %v1446, %v1446
        %v1732 = vpack.c.bf16 %v1501, %v1501
        %v1733 = vpack.c.bf16 %v1556, %v1556
        %vm1734 = vcmask 130048
        %v1736 = vsel %vm1734, %v1730, 0
        %v1739 = vsel %vm1734, %v1350, 0
        %1741 = vmatprep.subr.bf16.mxu0 0
        %1742 = vmatpush1.bf16.xpose.msra.mxu0 %v1739
        %1743 = vmatprep.subr.bf16.mxu0 0
        %1744 = vmatpush1.bf16.xpose.msra.mxu0 0
        %1745 = vmatprep.subr.bf16.mxu0 0
        %1746 = vmatpush1.bf16.xpose.msra.mxu0 0
        %1747 = vmatprep.subr.bf16.mxu0 0
        %1748 = vmatpush1.bf16.xpose.msra.mxu0 0
        %1749 = vmatprep.subr.bf16.mxu0 0
        %1750 = vmatpush1.bf16.xpose.msra.mxu0 0
        %1751 = vmatprep.subr.bf16.mxu0 0
        %1752 = vmatpush1.bf16.xpose.msra.mxu0 0
        %1753 = vmatprep.subr.bf16.mxu0 0
        %1754 = vmatpush1.bf16.xpose.msra.mxu0 0
        %1755 = vmatprep.subr.bf16.mxu0 0
        %1756 = vmatpush1.bf16.xpose.msra.mxu0 0
        %1757 = vmatprep.subr.bf16.mxu0 0
        %1758 = vmatpush1.bf16.xpose.msra.mxu0 0
        %1759 = vmatprep.subr.bf16.mxu0 0
        %1760 = vmatpush1.bf16.xpose.msra.mxu0 0
        %1761 = vmatprep.subr.bf16.mxu0 0
        %1762 = vmatpush1.bf16.xpose.msra.mxu0 0
        %1763 = vmatprep.subr.bf16.mxu0 0
        %1764 = vmatpush1.bf16.xpose.msra.mxu0 0
        %1765 = vmatprep.subr.bf16.mxu0 0
        %1766 = vmatpush1.bf16.xpose.msra.mxu0 0
        %1767 = vmatprep.subr.bf16.mxu0 0
        %1768 = vmatpush1.bf16.xpose.msra.mxu0 0
        %1769 = vmatprep.subr.bf16.mxu0 0
        %1770 = vmatpush1.bf16.xpose.msra.mxu0 0
        %1771 = vmatprep.subr.bf16.mxu0 0
        %1772 = vmatpush1.bf16.xpose.msra.mxu0 0
        %1773 = vmatprep.mubr.bf16.mxu0 0
        %1774 = vmatmul.mubr.bf16.gmra.mrb[0].mxu0 %v1736
        %v1775 = vpop.f32.mrb[0].mxu0
        %v1776 = vadd.f32 0.0, %v1775
        %v1777 = vpop.f32.mrb[0].mxu0
        %v1778 = vpop.f32.mrb[0].mxu0
        %v1779 = vpop.f32.mrb[0].mxu0
        %1780 = vdwg.mxu0
        %v1782 = vsel %vm1734, %v1731, 0
        %v1785 = vsel %vm1734, %v1351, 0
        %1787 = vmatprep.subr.bf16.mxu0 0
        %1788 = vmatpush1.bf16.xpose.msra.mxu0 %v1785
        %1789 = vmatprep.subr.bf16.mxu0 0
        %1790 = vmatpush1.bf16.xpose.msra.mxu0 0
        %1791 = vmatprep.subr.bf16.mxu0 0
        %1792 = vmatpush1.bf16.xpose.msra.mxu0 0
        %1793 = vmatprep.subr.bf16.mxu0 0
        %1794 = vmatpush1.bf16.xpose.msra.mxu0 0
        %1795 = vmatprep.subr.bf16.mxu0 0
        %1796 = vmatpush1.bf16.xpose.msra.mxu0 0
        %1797 = vmatprep.subr.bf16.mxu0 0
        %1798 = vmatpush1.bf16.xpose.msra.mxu0 0
        %1799 = vmatprep.subr.bf16.mxu0 0
        %1800 = vmatpush1.bf16.xpose.msra.mxu0 0
        %1801 = vmatprep.subr.bf16.mxu0 0
        %1802 = vmatpush1.bf16.xpose.msra.mxu0 0
        %1803 = vmatprep.subr.bf16.mxu0 0
        %1804 = vmatpush1.bf16.xpose.msra.mxu0 0
        %1805 = vmatprep.subr.bf16.mxu0 0
        %1806 = vmatpush1.bf16.xpose.msra.mxu0 0
        %1807 = vmatprep.subr.bf16.mxu0 0
        %1808 = vmatpush1.bf16.xpose.msra.mxu0 0
        %1809 = vmatprep.subr.bf16.mxu0 0
        %1810 = vmatpush1.bf16.xpose.msra.mxu0 0
        %1811 = vmatprep.subr.bf16.mxu0 0
        %1812 = vmatpush1.bf16.xpose.msra.mxu0 0
        %1813 = vmatprep.subr.bf16.mxu0 0
        %1814 = vmatpush1.bf16.xpose.msra.mxu0 0
        %1815 = vmatprep.subr.bf16.mxu0 0
        %1816 = vmatpush1.bf16.xpose.msra.mxu0 0
        %1817 = vmatprep.subr.bf16.mxu0 0
        %1818 = vmatpush1.bf16.xpose.msra.mxu0 0
        %1819 = vmatprep.mubr.bf16.mxu0 0
        %1820 = vmatmul.mubr.bf16.gmra.mrb[0].mxu0 %v1782
        %v1821 = vpop.f32.mrb[0].mxu0
        %v1822 = vadd.f32 0.0, %v1821
        %v1823 = vpop.f32.mrb[0].mxu0
        %v1824 = vpop.f32.mrb[0].mxu0
        %v1825 = vpop.f32.mrb[0].mxu0
        %1826 = vdwg.mxu0
        %v1827 = vmul.f32 %v1776, 0.25
        %v1828 = vmul.f32 %v1822, 0.25
        %vm1829 = vcmask 61440
        %v1830 = vsel %vm1829, %v1827, -inf
        %1831 = vmax.xlane.f32.xlu0 %v1830
        %v1832 = vpop.xlane.xlu0 %1831
        %v1833 = vsel %vm1829, %v1828, -inf
        %1834 = vmax.xlane.f32.xlu0 %v1833
        %v1835 = vpop.xlane.xlu0 %1834
        %v1836 = vsub.f32 %v1827, %v1832
        %v1837 = vsub.f32 %v1828, %v1835
        %v1838 = vmul.f32 %v1836, 1.442695
        %v1839 = vpow.pop %v1838
        %v1840 = vmul.f32 %v1837, 1.442695
        %v1841 = vpow.pop %v1840
        %v1842 = vsel %vm1829, %v1839, 0.0
        %1843 = vadd.xlane.f32.xlu0 %v1842
        %v1844 = vpop.xlane.xlu0 %1843
        %v1845 = vsel %vm1829, %v1841, 0.0
        %1846 = vadd.xlane.f32.xlu0 %v1845
        %v1847 = vpop.xlane.xlu0 %1846
        %v1848 = vrcp.pop %v1844
        %v1849 = vmul.f32 %v1839, %v1848
        %v1850 = vrcp.pop %v1847
        %v1851 = vmul.f32 %v1841, %v1850
        %v1852 = vpack.c.bf16 %v1849, %v1849
        %v1853 = vpack.c.bf16 %v1851, %v1851
        %v1854 = vpack.c.bf16 %v1654, %v1654
        %v1855 = vpack.c.bf16 %v1659, %v1659
        %1857 = vrot.lane.b32.xlu0 %v1854, 96
        %v1858 = vpop.permute.xlu0 %1857
        %v1860 = vsel %vm1734, %v1858, 0
        %v1863 = vsel %vm1734, %v1855, 0
        %1865 = vmatprep.subr.bf16.mxu0 0
        %1866 = vmatpush1.bf16.xpose.msra.mxu0 %v1863
        %1867 = vmatprep.subr.bf16.mxu0 0
        %1868 = vmatpush1.bf16.xpose.msra.mxu0 0
        %1869 = vmatprep.subr.bf16.mxu0 0
        %1870 = vmatpush1.bf16.xpose.msra.mxu0 0
        %1871 = vmatprep.subr.bf16.mxu0 0
        %1872 = vmatpush1.bf16.xpose.msra.mxu0 0
        %1873 = vmatprep.subr.bf16.mxu0 0
        %1874 = vmatpush1.bf16.xpose.msra.mxu0 0
        %1875 = vmatprep.subr.bf16.mxu0 0
        %1876 = vmatpush1.bf16.xpose.msra.mxu0 0
        %1877 = vmatprep.subr.bf16.mxu0 0
        %1878 = vmatpush1.bf16.xpose.msra.mxu0 0
        %1879 = vmatprep.subr.bf16.mxu0 0
        %1880 = vmatpush1.bf16.xpose.msra.mxu0 0
        %1881 = vmatprep.subr.bf16.mxu0 0
        %1882 = vmatpush1.bf16.xpose.msra.mxu0 0
        %1883 = vmatprep.subr.bf16.mxu0 0
        %1884 = vmatpush1.bf16.xpose.msra.mxu0 0
        %1885 = vmatprep.subr.bf16.mxu0 0
        %1886 = vmatpush1.bf16.xpose.msra.mxu0 0
        %1887 = vmatprep.subr.bf16.mxu0 0
        %1888 = vmatpush1.bf16.xpose.msra.mxu0 0
        %1889 = vmatprep.subr.bf16.mxu0 0
        %1890 = vmatpush1.bf16.xpose.msra.mxu0 0
        %1891 = vmatprep.subr.bf16.mxu0 0
        %1892 = vmatpush1.bf16.xpose.msra.mxu0 0
        %1893 = vmatprep.subr.bf16.mxu0 0
        %1894 = vmatpush1.bf16.xpose.msra.mxu0 0
        %1895 = vmatprep.subr.bf16.mxu0 0
        %1896 = vmatpush1.bf16.xpose.msra.mxu0 0
        %1897 = vmatprep.mubr.bf16.mxu0 0
        %1898 = vmatmul.mubr.bf16.gmra.mrb[0].mxu0 %v1860
        %v1899 = vpop.f32.mrb[0].mxu0
        %v1900 = vadd.f32 0.0, %v1899
        %v1901 = vpop.f32.mrb[0].mxu0
        %v1902 = vpop.f32.mrb[0].mxu0
        %v1903 = vpop.f32.mrb[0].mxu0
        %1904 = vdwg.mxu0
        %v1905 = vmul.f32 %v1900, 0.25
        %v1906 = vsel %vm1302, %v1905, -inf
        %1907 = vmax.xlane.f32.xlu0 %v1906
        %v1908 = vpop.xlane.xlu0 %1907
        %v1909 = vsub.f32 %v1905, %v1908
        %v1910 = vmul.f32 %v1909, 1.442695
        %v1911 = vpow.pop %v1910
        %v1912 = vsel %vm1302, %v1911, 0.0
        %1913 = vadd.xlane.f32.xlu0 %v1912
        %v1914 = vpop.xlane.xlu0 %1913
        %v1915 = vrcp.pop %v1914
        %v1916 = vmul.f32 %v1911, %v1915
        %v1917 = vpack.c.bf16 %v1916, %v1916
        %v1918 = vpack.c.bf16 %v1683, %v1682
        %v1919 = vpack.c.bf16 %v1715, %v1714
        %v1921 = vsel %vm1302, %v1918, 0
        %v1924 = vsel %vm1302, %v1919, 0
        %v1927 = vsel %vm1358, %v1917, 0
        %1929 = vmatprep.subr.bf16.mxu0 0
        %1930 = vmatpush1.bf16.msra.mxu0 %v1927
        %1931 = vmatprep.subr.bf16.mxu0 0
        %1932 = vmatpush1.bf16.msra.mxu0 0
        %1933 = vmatprep.subr.bf16.mxu0 0
        %1934 = vmatpush1.bf16.msra.mxu0 0
        %1935 = vmatprep.subr.bf16.mxu0 0
        %1936 = vmatpush1.bf16.msra.mxu0 0
        %1937 = vmatprep.subr.bf16.mxu0 0
        %1938 = vmatpush1.bf16.msra.mxu0 0
        %1939 = vmatprep.subr.bf16.mxu0 0
        %1940 = vmatpush1.bf16.msra.mxu0 0
        %1941 = vmatprep.subr.bf16.mxu0 0
        %1942 = vmatpush1.bf16.msra.mxu0 0
        %1943 = vmatprep.subr.bf16.mxu0 0
        %1944 = vmatpush1.bf16.msra.mxu0 0
        %1945 = vmatprep.subr.bf16.mxu0 0
        %1946 = vmatpush1.bf16.msra.mxu0 0
        %1947 = vmatprep.subr.bf16.mxu0 0
        %1948 = vmatpush1.bf16.msra.mxu0 0
        %1949 = vmatprep.subr.bf16.mxu0 0
        %1950 = vmatpush1.bf16.msra.mxu0 0
        %1951 = vmatprep.subr.bf16.mxu0 0
        %1952 = vmatpush1.bf16.msra.mxu0 0
        %1953 = vmatprep.subr.bf16.mxu0 0
        %1954 = vmatpush1.bf16.msra.mxu0 0
        %1955 = vmatprep.subr.bf16.mxu0 0
        %1956 = vmatpush1.bf16.msra.mxu0 0
        %1957 = vmatprep.subr.bf16.mxu0 0
        %1958 = vmatpush1.bf16.msra.mxu0 0
        %1959 = vmatprep.subr.bf16.mxu0 0
        %1960 = vmatpush1.bf16.msra.mxu0 0
        %1961 = vmatprep.mubr.bf16.mxu0 0
        %1962 = vmatmul.mubr.bf16.gmra.mrb[0].mxu0 %v1921
        %v1963 = vpop.f32.mrb[0].mxu0
        %v1964 = vadd.f32 0.0, %v1963
        %v1965 = vpop.f32.mrb[0].mxu0
        %v1966 = vpop.f32.mrb[0].mxu0
        %v1967 = vadd.f32 0.0, %v1966
        %v1968 = vpop.f32.mrb[0].mxu0
        %1969 = vmatprep.mubr.bf16.mxu0 0
        %1970 = vmatmul.mubr.bf16.gmra.mrb[0].mxu0 %v1924
        %v1971 = vpop.f32.mrb[0].mxu0
        %v1972 = vadd.f32 0.0, %v1971
        %v1973 = vpop.f32.mrb[0].mxu0
        %v1974 = vpop.f32.mrb[0].mxu0
        %v1975 = vadd.f32 0.0, %v1974
        %v1976 = vpop.f32.mrb[0].mxu0
        %1977 = vdwg.mxu0
        %1978 = vxpose.xlu0.b32.start [1/16] %v1964, 128
        %1979 = vxpose.xlu0.b32.cont [2/16] %v1967, 128
        %1980 = vxpose.xlu0.b32.cont [3/16] 0.0, 128
        %1981 = vxpose.xlu0.b32.cont [4/16] 0.0, 128
        %1982 = vxpose.xlu0.b32.cont [5/16] 0.0, 128
        %1983 = vxpose.xlu0.b32.cont [6/16] 0.0, 128
        %1984 = vxpose.xlu0.b32.cont [7/16] 0.0, 128
        %1985 = vxpose.xlu0.b32.cont [8/16] 0.0, 128
        %1986 = vxpose.xlu0.b32.cont [9/16] 0.0, 128
        %1987 = vxpose.xlu0.b32.cont [10/16] 0.0, 128
        %1988 = vxpose.xlu0.b32.cont [11/16] 0.0, 128
        %1989 = vxpose.xlu0.b32.cont [12/16] 0.0, 128
        %1990 = vxpose.xlu0.b32.cont [13/16] 0.0, 128
        %1991 = vxpose.xlu0.b32.cont [14/16] 0.0, 128
        %1992 = vxpose.xlu0.b32.cont [15/16] 0.0, 128
        %1993 = vxpose.xlu0.b32.end [16/16] 0.0, 128
        %v1994 = vpop.trf.xlu0
        %v1995 = vpop.trf.xlu0
        %v1996 = vpop.trf.xlu0
        %v1997 = vpop.trf.xlu0
        %v1998 = vpop.trf.xlu0
        %v1999 = vpop.trf.xlu0
        %v2000 = vpop.trf.xlu0
        %v2001 = vpop.trf.xlu0
        %v2002 = vpop.trf.xlu0
        %v2003 = vpop.trf.xlu0
        %v2004 = vpop.trf.xlu0
        %v2005 = vpop.trf.xlu0
        %v2006 = vpop.trf.xlu0
        %v2007 = vpop.trf.xlu0
        %v2008 = vpop.trf.xlu0
        %v2009 = vpop.trf.xlu0
        %2010 = vxpose.xlu0.b32.start [1/16] %v1972, 128
        %2011 = vxpose.xlu0.b32.cont [2/16] %v1975, 128
        %2012 = vxpose.xlu0.b32.cont [3/16] 0.0, 128
        %2013 = vxpose.xlu0.b32.cont [4/16] 0.0, 128
        %2014 = vxpose.xlu0.b32.cont [5/16] 0.0, 128
        %2015 = vxpose.xlu0.b32.cont [6/16] 0.0, 128
        %2016 = vxpose.xlu0.b32.cont [7/16] 0.0, 128
        %2017 = vxpose.xlu0.b32.cont [8/16] 0.0, 128
        %2018 = vxpose.xlu0.b32.cont [9/16] 0.0, 128
        %2019 = vxpose.xlu0.b32.cont [10/16] 0.0, 128
        %2020 = vxpose.xlu0.b32.cont [11/16] 0.0, 128
        %2021 = vxpose.xlu0.b32.cont [12/16] 0.0, 128
        %2022 = vxpose.xlu0.b32.cont [13/16] 0.0, 128
        %2023 = vxpose.xlu0.b32.cont [14/16] 0.0, 128
        %2024 = vxpose.xlu0.b32.cont [15/16] 0.0, 128
        %2025 = vxpose.xlu0.b32.end [16/16] 0.0, 128
        %v2026 = vpop.trf.xlu0
        %v2027 = vpop.trf.xlu0
        %v2028 = vpop.trf.xlu0
        %v2029 = vpop.trf.xlu0
        %v2030 = vpop.trf.xlu0
        %v2031 = vpop.trf.xlu0
        %v2032 = vpop.trf.xlu0
        %v2033 = vpop.trf.xlu0
        %v2034 = vpop.trf.xlu0
        %v2035 = vpop.trf.xlu0
        %v2036 = vpop.trf.xlu0
        %v2037 = vpop.trf.xlu0
        %v2038 = vpop.trf.xlu0
        %v2039 = vpop.trf.xlu0
        %v2040 = vpop.trf.xlu0
        %v2041 = vpop.trf.xlu0
        %2042 = vxpose.xlu0.c.b16.start [1/8] %v1852, 128
        %2043 = vxpose.xlu0.c.b16.cont [2/8] 0, 128
        %2044 = vxpose.xlu0.c.b16.cont [3/8] 0, 128
        %2045 = vxpose.xlu0.c.b16.cont [4/8] 0, 128
        %2046 = vxpose.xlu0.c.b16.cont [5/8] 0, 128
        %2047 = vxpose.xlu0.c.b16.cont [6/8] 0, 128
        %2048 = vxpose.xlu0.c.b16.cont [7/8] 0, 128
        %2049 = vxpose.xlu0.c.b16.end [8/8] 0, 128
        %v2050 = vpop.trf.xlu0
        %v2051 = vpop.trf.xlu0
        %v2052 = vpop.trf.xlu0
        %v2053 = vpop.trf.xlu0
        %v2054 = vpop.trf.xlu0
        %v2055 = vpop.trf.xlu0
        %v2056 = vpop.trf.xlu0
        %v2057 = vpop.trf.xlu0
        %vm2058 = vcmask 39936
        %v2060 = vsel %vm2058, %v2050, 0
        %vm2062 = vcmask 1041408
        %vm2063 = vcmask 1042432
        %v2064 = vsel %vm2062, 4294967295, 65535
        %v2065 = vsel %vm2063, %v2064, 0
        %v2067 = vand.u32 %v1732, %v2065
        %2069 = vmatprep.subr.bf16.mxu0 0
        %2070 = vmatpush1.bf16.msra.mxu0 %v2067
        %2071 = vmatprep.subr.bf16.mxu0 0
        %2072 = vmatpush1.bf16.msra.mxu0 0
        %2073 = vmatprep.subr.bf16.mxu0 0
        %2074 = vmatpush1.bf16.msra.mxu0 0
        %2075 = vmatprep.subr.bf16.mxu0 0
        %2076 = vmatpush1.bf16.msra.mxu0 0
        %2077 = vmatprep.subr.bf16.mxu0 0
        %2078 = vmatpush1.bf16.msra.mxu0 0
        %2079 = vmatprep.subr.bf16.mxu0 0
        %2080 = vmatpush1.bf16.msra.mxu0 0
        %2081 = vmatprep.subr.bf16.mxu0 0
        %2082 = vmatpush1.bf16.msra.mxu0 0
        %2083 = vmatprep.subr.bf16.mxu0 0
        %2084 = vmatpush1.bf16.msra.mxu0 0
        %2085 = vmatprep.subr.bf16.mxu0 0
        %2086 = vmatpush1.bf16.msra.mxu0 0
        %2087 = vmatprep.subr.bf16.mxu0 0
        %2088 = vmatpush1.bf16.msra.mxu0 0
        %2089 = vmatprep.subr.bf16.mxu0 0
        %2090 = vmatpush1.bf16.msra.mxu0 0
        %2091 = vmatprep.subr.bf16.mxu0 0
        %2092 = vmatpush1.bf16.msra.mxu0 0
        %2093 = vmatprep.subr.bf16.mxu0 0
        %2094 = vmatpush1.bf16.msra.mxu0 0
        %2095 = vmatprep.subr.bf16.mxu0 0
        %2096 = vmatpush1.bf16.msra.mxu0 0
        %2097 = vmatprep.subr.bf16.mxu0 0
        %2098 = vmatpush1.bf16.msra.mxu0 0
        %2099 = vmatprep.subr.bf16.mxu0 0
        %2100 = vmatpush1.bf16.msra.mxu0 0
        %2101 = vmatprep.mubr.bf16.mxu0 0
        %2102 = vmatmul.mubr.bf16.gmra.mrb[0].mxu0 %v2060
        %v2103 = vpop.f32.mrb[0].mxu0
        %v2104 = vadd.f32 %v1994, %v2103
        %v2105 = vpop.f32.mrb[0].mxu0
        %v2106 = vpop.f32.mrb[0].mxu0
        %v2107 = vpop.f32.mrb[0].mxu0
        %2108 = vdwg.mxu0
        %2109 = vxpose.xlu0.c.b16.start [1/8] %v1853, 128
        %2110 = vxpose.xlu0.c.b16.cont [2/8] 0, 128
        %2111 = vxpose.xlu0.c.b16.cont [3/8] 0, 128
        %2112 = vxpose.xlu0.c.b16.cont [4/8] 0, 128
        %2113 = vxpose.xlu0.c.b16.cont [5/8] 0, 128
        %2114 = vxpose.xlu0.c.b16.cont [6/8] 0, 128
        %2115 = vxpose.xlu0.c.b16.cont [7/8] 0, 128
        %2116 = vxpose.xlu0.c.b16.end [8/8] 0, 128
        %v2117 = vpop.trf.xlu0
        %v2118 = vpop.trf.xlu0
        %v2119 = vpop.trf.xlu0
        %v2120 = vpop.trf.xlu0
        %v2121 = vpop.trf.xlu0
        %v2122 = vpop.trf.xlu0
        %v2123 = vpop.trf.xlu0
        %v2124 = vpop.trf.xlu0
        %v2126 = vsel %vm2058, %v2117, 0
        %v2129 = vand.u32 %v1733, %v2065
        %2131 = vmatprep.subr.bf16.mxu0 0
        %2132 = vmatpush1.bf16.msra.mxu0 %v2129
        %2133 = vmatprep.subr.bf16.mxu0 0
        %2134 = vmatpush1.bf16.msra.mxu0 0
        %2135 = vmatprep.subr.bf16.mxu0 0
        %2136 = vmatpush1.bf16.msra.mxu0 0
        %2137 = vmatprep.subr.bf16.mxu0 0
        %2138 = vmatpush1.bf16.msra.mxu0 0
        %2139 = vmatprep.subr.bf16.mxu0 0
        %2140 = vmatpush1.bf16.msra.mxu0 0
        %2141 = vmatprep.subr.bf16.mxu0 0
        %2142 = vmatpush1.bf16.msra.mxu0 0
        %2143 = vmatprep.subr.bf16.mxu0 0
        %2144 = vmatpush1.bf16.msra.mxu0 0
        %2145 = vmatprep.subr.bf16.mxu0 0
        %2146 = vmatpush1.bf16.msra.mxu0 0
        %2147 = vmatprep.subr.bf16.mxu0 0
        %2148 = vmatpush1.bf16.msra.mxu0 0
        %2149 = vmatprep.subr.bf16.mxu0 0
        %2150 = vmatpush1.bf16.msra.mxu0 0
        %2151 = vmatprep.subr.bf16.mxu0 0
        %2152 = vmatpush1.bf16.msra.mxu0 0
        %2153 = vmatprep.subr.bf16.mxu0 0
        %2154 = vmatpush1.bf16.msra.mxu0 0
        %2155 = vmatprep.subr.bf16.mxu0 0
        %2156 = vmatpush1.bf16.msra.mxu0 0
        %2157 = vmatprep.subr.bf16.mxu0 0
        %2158 = vmatpush1.bf16.msra.mxu0 0
        %2159 = vmatprep.subr.bf16.mxu0 0
        %2160 = vmatpush1.bf16.msra.mxu0 0
        %2161 = vmatprep.subr.bf16.mxu0 0
        %2162 = vmatpush1.bf16.msra.mxu0 0
        %2163 = vmatprep.mubr.bf16.mxu0 0
        %2164 = vmatmul.mubr.bf16.gmra.mrb[0].mxu0 %v2126
        %v2165 = vpop.f32.mrb[0].mxu0
        %v2166 = vadd.f32 %v2026, %v2165
        %v2167 = vpop.f32.mrb[0].mxu0
        %v2168 = vpop.f32.mrb[0].mxu0
        %v2169 = vpop.f32.mrb[0].mxu0
        %2170 = vdwg.mxu0
        %v2171 = vpack.c.bf16 %v2166, %v2104
        %2172 = vst.msk [vmem:[#allocation3] sm:$0xff] %vm1734, %v2171
        %2174 = vrot.lane.b32.xlu0 %v1730, 112
        %v2175 = vpop.permute.xlu0 %2174
        %2176 = vrot.lane.b32.xlu0 %v1350, 112
        %v2177 = vpop.permute.xlu0 %2176
        %v2179 = vsel %vm1734, %v2175, 0
        %v2182 = vsel %vm1734, %v2177, 0
        %2184 = vmatprep.subr.bf16.mxu0 0
        %2185 = vmatpush1.bf16.xpose.msra.mxu0 %v2182
        %2186 = vmatprep.subr.bf16.mxu0 0
        %2187 = vmatpush1.bf16.xpose.msra.mxu0 0
        %2188 = vmatprep.subr.bf16.mxu0 0
        %2189 = vmatpush1.bf16.xpose.msra.mxu0 0
        %2190 = vmatprep.subr.bf16.mxu0 0
        %2191 = vmatpush1.bf16.xpose.msra.mxu0 0
        %2192 = vmatprep.subr.bf16.mxu0 0
        %2193 = vmatpush1.bf16.xpose.msra.mxu0 0
        %2194 = vmatprep.subr.bf16.mxu0 0
        %2195 = vmatpush1.bf16.xpose.msra.mxu0 0
        %2196 = vmatprep.subr.bf16.mxu0 0
        %2197 = vmatpush1.bf16.xpose.msra.mxu0 0
        %2198 = vmatprep.subr.bf16.mxu0 0
        %2199 = vmatpush1.bf16.xpose.msra.mxu0 0
        %2200 = vmatprep.subr.bf16.mxu0 0
        %2201 = vmatpush1.bf16.xpose.msra.mxu0 0
        %2202 = vmatprep.subr.bf16.mxu0 0
        %2203 = vmatpush1.bf16.xpose.msra.mxu0 0
        %2204 = vmatprep.subr.bf16.mxu0 0
        %2205 = vmatpush1.bf16.xpose.msra.mxu0 0
        %2206 = vmatprep.subr.bf16.mxu0 0
        %2207 = vmatpush1.bf16.xpose.msra.mxu0 0
        %2208 = vmatprep.subr.bf16.mxu0 0
        %2209 = vmatpush1.bf16.xpose.msra.mxu0 0
        %2210 = vmatprep.subr.bf16.mxu0 0
        %2211 = vmatpush1.bf16.xpose.msra.mxu0 0
        %2212 = vmatprep.subr.bf16.mxu0 0
        %2213 = vmatpush1.bf16.xpose.msra.mxu0 0
        %2214 = vmatprep.subr.bf16.mxu0 0
        %2215 = vmatpush1.bf16.xpose.msra.mxu0 0
        %2216 = vmatprep.mubr.bf16.mxu0 0
        %2217 = vmatmul.mubr.bf16.gmra.mrb[0].mxu0 %v2179
        %v2218 = vpop.f32.mrb[0].mxu0
        %v2219 = vadd.f32 0.0, %v2218
        %v2220 = vpop.f32.mrb[0].mxu0
        %v2221 = vpop.f32.mrb[0].mxu0
        %v2222 = vpop.f32.mrb[0].mxu0
        %2223 = vdwg.mxu0
        %2225 = vrot.lane.b32.xlu0 %v1731, 112
        %v2226 = vpop.permute.xlu0 %2225
        %2227 = vrot.lane.b32.xlu0 %v1351, 112
        %v2228 = vpop.permute.xlu0 %2227
        %v2230 = vsel %vm1734, %v2226, 0
        %v2233 = vsel %vm1734, %v2228, 0
        %2235 = vmatprep.subr.bf16.mxu0 0
        %2236 = vmatpush1.bf16.xpose.msra.mxu0 %v2233
        %2237 = vmatprep.subr.bf16.mxu0 0
        %2238 = vmatpush1.bf16.xpose.msra.mxu0 0
        %2239 = vmatprep.subr.bf16.mxu0 0
        %2240 = vmatpush1.bf16.xpose.msra.mxu0 0
        %2241 = vmatprep.subr.bf16.mxu0 0
        %2242 = vmatpush1.bf16.xpose.msra.mxu0 0
        %2243 = vmatprep.subr.bf16.mxu0 0
        %2244 = vmatpush1.bf16.xpose.msra.mxu0 0
        %2245 = vmatprep.subr.bf16.mxu0 0
        %2246 = vmatpush1.bf16.xpose.msra.mxu0 0
        %2247 = vmatprep.subr.bf16.mxu0 0
        %2248 = vmatpush1.bf16.xpose.msra.mxu0 0
        %2249 = vmatprep.subr.bf16.mxu0 0
        %2250 = vmatpush1.bf16.xpose.msra.mxu0 0
        %2251 = vmatprep.subr.bf16.mxu0 0
        %2252 = vmatpush1.bf16.xpose.msra.mxu0 0
        %2253 = vmatprep.subr.bf16.mxu0 0
        %2254 = vmatpush1.bf16.xpose.msra.mxu0 0
        %2255 = vmatprep.subr.bf16.mxu0 0
        %2256 = vmatpush1.bf16.xpose.msra.mxu0 0
        %2257 = vmatprep.subr.bf16.mxu0 0
        %2258 = vmatpush1.bf16.xpose.msra.mxu0 0
        %2259 = vmatprep.subr.bf16.mxu0 0
        %2260 = vmatpush1.bf16.xpose.msra.mxu0 0
        %2261 = vmatprep.subr.bf16.mxu0 0
        %2262 = vmatpush1.bf16.xpose.msra.mxu0 0
        %2263 = vmatprep.subr.bf16.mxu0 0
        %2264 = vmatpush1.bf16.xpose.msra.mxu0 0
        %2265 = vmatprep.subr.bf16.mxu0 0
        %2266 = vmatpush1.bf16.xpose.msra.mxu0 0
        %2267 = vmatprep.mubr.bf16.mxu0 0
        %2268 = vmatmul.mubr.bf16.gmra.mrb[0].mxu0 %v2230
        %v2269 = vpop.f32.mrb[0].mxu0
        %v2270 = vadd.f32 0.0, %v2269
        %v2271 = vpop.f32.mrb[0].mxu0
        %v2272 = vpop.f32.mrb[0].mxu0
        %v2273 = vpop.f32.mrb[0].mxu0
        %2274 = vdwg.mxu0
        %v2275 = vmul.f32 %v2219, 0.25
        %v2276 = vmul.f32 %v2270, 0.25
        %v2277 = vsel %vm1829, %v2275, -inf
        %2278 = vmax.xlane.f32.xlu0 %v2277
        %v2279 = vpop.xlane.xlu0 %2278
        %v2280 = vsel %vm1829, %v2276, -inf
        %2281 = vmax.xlane.f32.xlu0 %v2280
        %v2282 = vpop.xlane.xlu0 %2281
        %v2283 = vsub.f32 %v2275, %v2279
        %v2284 = vsub.f32 %v2276, %v2282
        %v2285 = vmul.f32 %v2283, 1.442695
        %v2286 = vpow.pop %v2285
        %v2287 = vmul.f32 %v2284, 1.442695
        %v2288 = vpow.pop %v2287
        %v2289 = vsel %vm1829, %v2286, 0.0
        %2290 = vadd.xlane.f32.xlu0 %v2289
        %v2291 = vpop.xlane.xlu0 %2290
        %v2292 = vsel %vm1829, %v2288, 0.0
        %2293 = vadd.xlane.f32.xlu0 %v2292
        %v2294 = vpop.xlane.xlu0 %2293
        %v2295 = vrcp.pop %v2291
        %v2296 = vmul.f32 %v2286, %v2295
        %v2297 = vrcp.pop %v2294
        %v2298 = vmul.f32 %v2288, %v2297
        %v2299 = vpack.c.bf16 %v2296, %v2296
        %v2300 = vpack.c.bf16 %v2298, %v2298
        %2301 = vrot.lane.b32.xlu0 %v1854, 80
        %v2302 = vpop.permute.xlu0 %2301
        %2304 = vrot.lane.b32.xlu0 %v1855, 112
        %v2305 = vpop.permute.xlu0 %2304
        %v2307 = vsel %vm1734, %v2302, 0
        %v2310 = vsel %vm1734, %v2305, 0
        %2312 = vmatprep.subr.bf16.mxu0 0
        %2313 = vmatpush1.bf16.xpose.msra.mxu0 %v2310
        %2314 = vmatprep.subr.bf16.mxu0 0
        %2315 = vmatpush1.bf16.xpose.msra.mxu0 0
        %2316 = vmatprep.subr.bf16.mxu0 0
        %2317 = vmatpush1.bf16.xpose.msra.mxu0 0
        %2318 = vmatprep.subr.bf16.mxu0 0
        %2319 = vmatpush1.bf16.xpose.msra.mxu0 0
        %2320 = vmatprep.subr.bf16.mxu0 0
        %2321 = vmatpush1.bf16.xpose.msra.mxu0 0
        %2322 = vmatprep.subr.bf16.mxu0 0
        %2323 = vmatpush1.bf16.xpose.msra.mxu0 0
        %2324 = vmatprep.subr.bf16.mxu0 0
        %2325 = vmatpush1.bf16.xpose.msra.mxu0 0
        %2326 = vmatprep.subr.bf16.mxu0 0
        %2327 = vmatpush1.bf16.xpose.msra.mxu0 0
        %2328 = vmatprep.subr.bf16.mxu0 0
        %2329 = vmatpush1.bf16.xpose.msra.mxu0 0
        %2330 = vmatprep.subr.bf16.mxu0 0
        %2331 = vmatpush1.bf16.xpose.msra.mxu0 0
        %2332 = vmatprep.subr.bf16.mxu0 0
        %2333 = vmatpush1.bf16.xpose.msra.mxu0 0
        %2334 = vmatprep.subr.bf16.mxu0 0
        %2335 = vmatpush1.bf16.xpose.msra.mxu0 0
        %2336 = vmatprep.subr.bf16.mxu0 0
        %2337 = vmatpush1.bf16.xpose.msra.mxu0 0
        %2338 = vmatprep.subr.bf16.mxu0 0
        %2339 = vmatpush1.bf16.xpose.msra.mxu0 0
        %2340 = vmatprep.subr.bf16.mxu0 0
        %2341 = vmatpush1.bf16.xpose.msra.mxu0 0
        %2342 = vmatprep.subr.bf16.mxu0 0
        %2343 = vmatpush1.bf16.xpose.msra.mxu0 0
        %2344 = vmatprep.mubr.bf16.mxu0 0
        %2345 = vmatmul.mubr.bf16.gmra.mrb[0].mxu0 %v2307
        %v2346 = vpop.f32.mrb[0].mxu0
        %v2347 = vadd.f32 0.0, %v2346
        %v2348 = vpop.f32.mrb[0].mxu0
        %v2349 = vpop.f32.mrb[0].mxu0
        %v2350 = vpop.f32.mrb[0].mxu0
        %2351 = vdwg.mxu0
        %v2352 = vmul.f32 %v2347, 0.25
        %v2353 = vsel %vm1302, %v2352, -inf
        %2354 = vmax.xlane.f32.xlu0 %v2353
        %v2355 = vpop.xlane.xlu0 %2354
        %v2356 = vsub.f32 %v2352, %v2355
        %v2357 = vmul.f32 %v2356, 1.442695
        %v2358 = vpow.pop %v2357
        %v2359 = vsel %vm1302, %v2358, 0.0
        %2360 = vadd.xlane.f32.xlu0 %v2359
        %v2361 = vpop.xlane.xlu0 %2360
        %v2362 = vrcp.pop %v2361
        %v2363 = vmul.f32 %v2358, %v2362
        %v2364 = vpack.c.bf16 %v2363, %v2363
        %v2365 = vpack.c.bf16 %v1685, %v1684
        %v2366 = vpack.c.bf16 %v1717, %v1716
        %v2368 = vsel %vm1302, %v2365, 0
        %v2371 = vsel %vm1302, %v2366, 0
        %v2374 = vsel %vm1358, %v2364, 0
        %2376 = vmatprep.subr.bf16.mxu0 0
        %2377 = vmatpush1.bf16.msra.mxu0 %v2374
        %2378 = vmatprep.subr.bf16.mxu0 0
        %2379 = vmatpush1.bf16.msra.mxu0 0
        %2380 = vmatprep.subr.bf16.mxu0 0
        %2381 = vmatpush1.bf16.msra.mxu0 0
        %2382 = vmatprep.subr.bf16.mxu0 0
        %2383 = vmatpush1.bf16.msra.mxu0 0
        %2384 = vmatprep.subr.bf16.mxu0 0
        %2385 = vmatpush1.bf16.msra.mxu0 0
        %2386 = vmatprep.subr.bf16.mxu0 0
        %2387 = vmatpush1.bf16.msra.mxu0 0
        %2388 = vmatprep.subr.bf16.mxu0 0
        %2389 = vmatpush1.bf16.msra.mxu0 0
        %2390 = vmatprep.subr.bf16.mxu0 0
        %2391 = vmatpush1.bf16.msra.mxu0 0
        %2392 = vmatprep.subr.bf16.mxu0 0
        %2393 = vmatpush1.bf16.msra.mxu0 0
        %2394 = vmatprep.subr.bf16.mxu0 0
        %2395 = vmatpush1.bf16.msra.mxu0 0
        %2396 = vmatprep.subr.bf16.mxu0 0
        %2397 = vmatpush1.bf16.msra.mxu0 0
        %2398 = vmatprep.subr.bf16.mxu0 0
        %2399 = vmatpush1.bf16.msra.mxu0 0
        %2400 = vmatprep.subr.bf16.mxu0 0
        %2401 = vmatpush1.bf16.msra.mxu0 0
        %2402 = vmatprep.subr.bf16.mxu0 0
        %2403 = vmatpush1.bf16.msra.mxu0 0
        %2404 = vmatprep.subr.bf16.mxu0 0
        %2405 = vmatpush1.bf16.msra.mxu0 0
        %2406 = vmatprep.subr.bf16.mxu0 0
        %2407 = vmatpush1.bf16.msra.mxu0 0
        %2408 = vmatprep.mubr.bf16.mxu0 0
        %2409 = vmatmul.mubr.bf16.gmra.mrb[0].mxu0 %v2368
        %v2410 = vpop.f32.mrb[0].mxu0
        %v2411 = vadd.f32 0.0, %v2410
        %v2412 = vpop.f32.mrb[0].mxu0
        %v2413 = vpop.f32.mrb[0].mxu0
        %v2414 = vadd.f32 0.0, %v2413
        %v2415 = vpop.f32.mrb[0].mxu0
        %2416 = vmatprep.mubr.bf16.mxu0 0
        %2417 = vmatmul.mubr.bf16.gmra.mrb[0].mxu0 %v2371
        %v2418 = vpop.f32.mrb[0].mxu0
        %v2419 = vadd.f32 0.0, %v2418
        %v2420 = vpop.f32.mrb[0].mxu0
        %v2421 = vpop.f32.mrb[0].mxu0
        %v2422 = vadd.f32 0.0, %v2421
        %v2423 = vpop.f32.mrb[0].mxu0
        %2424 = vdwg.mxu0
        %2425 = vxpose.xlu0.b32.start [1/16] %v2411, 128
        %2426 = vxpose.xlu0.b32.cont [2/16] %v2414, 128
        %2427 = vxpose.xlu0.b32.cont [3/16] 0.0, 128
        %2428 = vxpose.xlu0.b32.cont [4/16] 0.0, 128
        %2429 = vxpose.xlu0.b32.cont [5/16] 0.0, 128
        %2430 = vxpose.xlu0.b32.cont [6/16] 0.0, 128
        %2431 = vxpose.xlu0.b32.cont [7/16] 0.0, 128
        %2432 = vxpose.xlu0.b32.cont [8/16] 0.0, 128
        %2433 = vxpose.xlu0.b32.cont [9/16] 0.0, 128
        %2434 = vxpose.xlu0.b32.cont [10/16] 0.0, 128
        %2435 = vxpose.xlu0.b32.cont [11/16] 0.0, 128
        %2436 = vxpose.xlu0.b32.cont [12/16] 0.0, 128
        %2437 = vxpose.xlu0.b32.cont [13/16] 0.0, 128
        %2438 = vxpose.xlu0.b32.cont [14/16] 0.0, 128
        %2439 = vxpose.xlu0.b32.cont [15/16] 0.0, 128
        %2440 = vxpose.xlu0.b32.end [16/16] 0.0, 128
        %v2441 = vpop.trf.xlu0
        %v2442 = vpop.trf.xlu0
        %v2443 = vpop.trf.xlu0
        %v2444 = vpop.trf.xlu0
        %v2445 = vpop.trf.xlu0
        %v2446 = vpop.trf.xlu0
        %v2447 = vpop.trf.xlu0
        %v2448 = vpop.trf.xlu0
        %v2449 = vpop.trf.xlu0
        %v2450 = vpop.trf.xlu0
        %v2451 = vpop.trf.xlu0
        %v2452 = vpop.trf.xlu0
        %v2453 = vpop.trf.xlu0
        %v2454 = vpop.trf.xlu0
        %v2455 = vpop.trf.xlu0
        %v2456 = vpop.trf.xlu0
        %2457 = vxpose.xlu0.b32.start [1/16] %v2419, 128
        %2458 = vxpose.xlu0.b32.cont [2/16] %v2422, 128
        %2459 = vxpose.xlu0.b32.cont [3/16] 0.0, 128
        %2460 = vxpose.xlu0.b32.cont [4/16] 0.0, 128
        %2461 = vxpose.xlu0.b32.cont [5/16] 0.0, 128
        %2462 = vxpose.xlu0.b32.cont [6/16] 0.0, 128
        %2463 = vxpose.xlu0.b32.cont [7/16] 0.0, 128
        %2464 = vxpose.xlu0.b32.cont [8/16] 0.0, 128
        %2465 = vxpose.xlu0.b32.cont [9/16] 0.0, 128
        %2466 = vxpose.xlu0.b32.cont [10/16] 0.0, 128
        %2467 = vxpose.xlu0.b32.cont [11/16] 0.0, 128
        %2468 = vxpose.xlu0.b32.cont [12/16] 0.0, 128
        %2469 = vxpose.xlu0.b32.cont [13/16] 0.0, 128
        %2470 = vxpose.xlu0.b32.cont [14/16] 0.0, 128
        %2471 = vxpose.xlu0.b32.cont [15/16] 0.0, 128
        %2472 = vxpose.xlu0.b32.end [16/16] 0.0, 128
        %v2473 = vpop.trf.xlu0
        %v2474 = vpop.trf.xlu0
        %v2475 = vpop.trf.xlu0
        %v2476 = vpop.trf.xlu0
        %v2477 = vpop.trf.xlu0
        %v2478 = vpop.trf.xlu0
        %v2479 = vpop.trf.xlu0
        %v2480 = vpop.trf.xlu0
        %v2481 = vpop.trf.xlu0
        %v2482 = vpop.trf.xlu0
        %v2483 = vpop.trf.xlu0
        %v2484 = vpop.trf.xlu0
        %v2485 = vpop.trf.xlu0
        %v2486 = vpop.trf.xlu0
        %v2487 = vpop.trf.xlu0
        %v2488 = vpop.trf.xlu0
        %2489 = vxpose.xlu0.c.b16.start [1/8] %v2299, 128
        %2490 = vxpose.xlu0.c.b16.cont [2/8] 0, 128
        %2491 = vxpose.xlu0.c.b16.cont [3/8] 0, 128
        %2492 = vxpose.xlu0.c.b16.cont [4/8] 0, 128
        %2493 = vxpose.xlu0.c.b16.cont [5/8] 0, 128
        %2494 = vxpose.xlu0.c.b16.cont [6/8] 0, 128
        %2495 = vxpose.xlu0.c.b16.cont [7/8] 0, 128
        %2496 = vxpose.xlu0.c.b16.end [8/8] 0, 128
        %v2497 = vpop.trf.xlu0
        %v2498 = vpop.trf.xlu0
        %v2499 = vpop.trf.xlu0
        %v2500 = vpop.trf.xlu0
        %v2501 = vpop.trf.xlu0
        %v2502 = vpop.trf.xlu0
        %v2503 = vpop.trf.xlu0
        %v2504 = vpop.trf.xlu0
        %2506 = vrot.lane.b32.xlu0 %v1732, 112
        %v2507 = vpop.permute.xlu0 %2506
        %v2509 = vsel %vm2058, %v2497, 0
        %v2512 = vand.u32 %v2507, %v2065
        %2514 = vmatprep.subr.bf16.mxu0 0
        %2515 = vmatpush1.bf16.msra.mxu0 %v2512
        %2516 = vmatprep.subr.bf16.mxu0 0
        %2517 = vmatpush1.bf16.msra.mxu0 0
        %2518 = vmatprep.subr.bf16.mxu0 0
        %2519 = vmatpush1.bf16.msra.mxu0 0
        %2520 = vmatprep.subr.bf16.mxu0 0
        %2521 = vmatpush1.bf16.msra.mxu0 0
        %2522 = vmatprep.subr.bf16.mxu0 0
        %2523 = vmatpush1.bf16.msra.mxu0 0
        %2524 = vmatprep.subr.bf16.mxu0 0
        %2525 = vmatpush1.bf16.msra.mxu0 0
        %2526 = vmatprep.subr.bf16.mxu0 0
        %2527 = vmatpush1.bf16.msra.mxu0 0
        %2528 = vmatprep.subr.bf16.mxu0 0
        %2529 = vmatpush1.bf16.msra.mxu0 0
        %2530 = vmatprep.subr.bf16.mxu0 0
        %2531 = vmatpush1.bf16.msra.mxu0 0
        %2532 = vmatprep.subr.bf16.mxu0 0
        %2533 = vmatpush1.bf16.msra.mxu0 0
        %2534 = vmatprep.subr.bf16.mxu0 0
        %2535 = vmatpush1.bf16.msra.mxu0 0
        %2536 = vmatprep.subr.bf16.mxu0 0
        %2537 = vmatpush1.bf16.msra.mxu0 0
        %2538 = vmatprep.subr.bf16.mxu0 0
        %2539 = vmatpush1.bf16.msra.mxu0 0
        %2540 = vmatprep.subr.bf16.mxu0 0
        %2541 = vmatpush1.bf16.msra.mxu0 0
        %2542 = vmatprep.subr.bf16.mxu0 0
        %2543 = vmatpush1.bf16.msra.mxu0 0
        %2544 = vmatprep.subr.bf16.mxu0 0
        %2545 = vmatpush1.bf16.msra.mxu0 0
        %2546 = vmatprep.mubr.bf16.mxu0 0
        %2547 = vmatmul.mubr.bf16.gmra.mrb[0].mxu0 %v2509
        %v2548 = vpop.f32.mrb[0].mxu0
        %v2549 = vadd.f32 %v2441, %v2548
        %v2550 = vpop.f32.mrb[0].mxu0
        %v2551 = vpop.f32.mrb[0].mxu0
        %v2552 = vpop.f32.mrb[0].mxu0
        %2553 = vdwg.mxu0
        %2554 = vxpose.xlu0.c.b16.start [1/8] %v2300, 128
        %2555 = vxpose.xlu0.c.b16.cont [2/8] 0, 128
        %2556 = vxpose.xlu0.c.b16.cont [3/8] 0, 128
        %2557 = vxpose.xlu0.c.b16.cont [4/8] 0, 128
        %2558 = vxpose.xlu0.c.b16.cont [5/8] 0, 128
        %2559 = vxpose.xlu0.c.b16.cont [6/8] 0, 128
        %2560 = vxpose.xlu0.c.b16.cont [7/8] 0, 128
        %2561 = vxpose.xlu0.c.b16.end [8/8] 0, 128
        %v2562 = vpop.trf.xlu0
        %v2563 = vpop.trf.xlu0
        %v2564 = vpop.trf.xlu0
        %v2565 = vpop.trf.xlu0
        %v2566 = vpop.trf.xlu0
        %v2567 = vpop.trf.xlu0
        %v2568 = vpop.trf.xlu0
        %v2569 = vpop.trf.xlu0
        %2571 = vrot.lane.b32.xlu0 %v1733, 112
        %v2572 = vpop.permute.xlu0 %2571
        %v2574 = vsel %vm2058, %v2562, 0
        %v2577 = vand.u32 %v2572, %v2065
        %2579 = vmatprep.subr.bf16.mxu0 0
        %2580 = vmatpush1.bf16.msra.mxu0 %v2577
        %2581 = vmatprep.subr.bf16.mxu0 0
        %2582 = vmatpush1.bf16.msra.mxu0 0
        %2583 = vmatprep.subr.bf16.mxu0 0
        %2584 = vmatpush1.bf16.msra.mxu0 0
        %2585 = vmatprep.subr.bf16.mxu0 0
        %2586 = vmatpush1.bf16.msra.mxu0 0
        %2587 = vmatprep.subr.bf16.mxu0 0
        %2588 = vmatpush1.bf16.msra.mxu0 0
        %2589 = vmatprep.subr.bf16.mxu0 0
        %2590 = vmatpush1.bf16.msra.mxu0 0
        %2591 = vmatprep.subr.bf16.mxu0 0
        %2592 = vmatpush1.bf16.msra.mxu0 0
        %2593 = vmatprep.subr.bf16.mxu0 0
        %2594 = vmatpush1.bf16.msra.mxu0 0
        %2595 = vmatprep.subr.bf16.mxu0 0
        %2596 = vmatpush1.bf16.msra.mxu0 0
        %2597 = vmatprep.subr.bf16.mxu0 0
        %2598 = vmatpush1.bf16.msra.mxu0 0
        %2599 = vmatprep.subr.bf16.mxu0 0
        %2600 = vmatpush1.bf16.msra.mxu0 0
        %2601 = vmatprep.subr.bf16.mxu0 0
        %2602 = vmatpush1.bf16.msra.mxu0 0
        %2603 = vmatprep.subr.bf16.mxu0 0
        %2604 = vmatpush1.bf16.msra.mxu0 0
        %2605 = vmatprep.subr.bf16.mxu0 0
        %2606 = vmatpush1.bf16.msra.mxu0 0
        %2607 = vmatprep.subr.bf16.mxu0 0
        %2608 = vmatpush1.bf16.msra.mxu0 0
        %2609 = vmatprep.subr.bf16.mxu0 0
        %2610 = vmatpush1.bf16.msra.mxu0 0
        %2611 = vmatprep.mubr.bf16.mxu0 0
        %2612 = vmatmul.mubr.bf16.gmra.mrb[0].mxu0 %v2574
        %v2613 = vpop.f32.mrb[0].mxu0
        %v2614 = vadd.f32 %v2473, %v2613
        %v2615 = vpop.f32.mrb[0].mxu0
        %v2616 = vpop.f32.mrb[0].mxu0
        %v2617 = vpop.f32.mrb[0].mxu0
        %2618 = vdwg.mxu0
        %v2619 = vpack.c.bf16 %v2614, %v2549
        %2621 = vrot.lane.b32.xlu0 %v2619, 16
        %v2622 = vpop.permute.xlu0 %2621
        %vm2624 = vcmask 261248
        %2625 = vst.msk [vmem:[#allocation3] sm:$0xff] %vm2624, %v2622
        %v2626 = vld [vmem:[#allocation3] sm:$0xff]
        %v2627 = vld [vmem:[%s951] sm:$0xf]
        %v2628 = vld [vmem:[%s951 + $0x4] sm:$0xf]
        %v2629 = vld [vmem:[%s951 + $0x8] sm:$0xf]
        %v2630 = vld [vmem:[%s951 + $0xc] sm:$0xf]
        %v2631 = vld [vmem:[%s959] sm:$0x1]
        %v2633 = vlaneseq
        %v2634 = vshrl.u32 %v2633, 7
        %v2635 = vsub.s32 0, %v2634
        %v2636 = vrot.slane %v2631, %v2635
        %v2642 = vunpack.c.l.b16 %v2627
        %v2643 = vunpack.c.l.b16 %v2628
        %v2644 = vunpack.c.l.b16 %v2629
        %v2645 = vunpack.c.l.b16 %v2630
        %v2646 = vpack.c.b16 %v2643, %v2642
        %v2647 = vpack.c.b16 %v2645, %v2644
        %v2651 = vsel %vm1185, %v2626, 0
        %2653 = vmatprep.subr.bf16.mxu0 0
        %2654 = vmatpush1.bf16.msra.mxu0 %v2646
        %2655 = vmatprep.subr.bf16.mxu0 0
        %2656 = vmatpush1.bf16.msra.mxu0 %v2647
        %2657 = vmatprep.subr.bf16.mxu0 0
        %2658 = vmatpush1.bf16.msra.mxu0 0
        %2659 = vmatprep.subr.bf16.mxu0 0
        %2660 = vmatpush1.bf16.msra.mxu0 0
        %2661 = vmatprep.subr.bf16.mxu0 0
        %2662 = vmatpush1.bf16.msra.mxu0 0
        %2663 = vmatprep.subr.bf16.mxu0 0
        %2664 = vmatpush1.bf16.msra.mxu0 0
        %2665 = vmatprep.subr.bf16.mxu0 0
        %2666 = vmatpush1.bf16.msra.mxu0 0
        %2667 = vmatprep.subr.bf16.mxu0 0
        %2668 = vmatpush1.bf16.msra.mxu0 0
        %2669 = vmatprep.subr.bf16.mxu0 0
        %2670 = vmatpush1.bf16.msra.mxu0 0
        %2671 = vmatprep.subr.bf16.mxu0 0
        %2672 = vmatpush1.bf16.msra.mxu0 0
        %2673 = vmatprep.subr.bf16.mxu0 0
        %2674 = vmatpush1.bf16.msra.mxu0 0
        %2675 = vmatprep.subr.bf16.mxu0 0
        %2676 = vmatpush1.bf16.msra.mxu0 0
        %2677 = vmatprep.subr.bf16.mxu0 0
        %2678 = vmatpush1.bf16.msra.mxu0 0
        %2679 = vmatprep.subr.bf16.mxu0 0
        %2680 = vmatpush1.bf16.msra.mxu0 0
        %2681 = vmatprep.subr.bf16.mxu0 0
        %2682 = vmatpush1.bf16.msra.mxu0 0
        %2683 = vmatprep.subr.bf16.mxu0 0
        %2684 = vmatpush1.bf16.msra.mxu0 0
        %2685 = vmatprep.mubr.bf16.mxu0 0
        %2686 = vmatmul.mubr.bf16.gmra.mrb[0].mxu0 %v2651
        %v2687 = vpop.f32.mrb[0].mxu0
        %v2688 = vadd.f32 %v2636, %v2687
        %v2689 = vpop.f32.mrb[0].mxu0
        %v2690 = vpop.f32.mrb[0].mxu0
        %v2691 = vadd.f32 %v2636, %v2690
        %v2692 = vpop.f32.mrb[0].mxu0
        %2693 = vdwg.mxu0
        %v2694 = vadd.f32 %v2688, %v1159
        %v2695 = vadd.f32 %v2691, %v1160
        %v2696 = vld [vmem:[%s967] sm:$0x1]
        %v2697 = vld [vmem:[%s975] sm:$0x1]
        %v2698 = vsel %vm1185, %v2694, 0.0
        %2699 = vadd.xlane.f32.xlu0 %v2698
        %v2700 = vpop.xlane.xlu0 %2699
        %v2701 = vsel %vm1185, %v2695, 0.0
        %2702 = vadd.xlane.f32.xlu0 %v2701
        %v2703 = vpop.xlane.xlu0 %2702
        %v2704 = vmul.f32 %v2700, %v1567
        %v2705 = vmul.f32 %v2703, %v1567
        %v2706 = vsub.f32 %v2694, %v2704
        %v2707 = vsub.f32 %v2695, %v2705
        %v2708 = vmul.f32 %v2706, %v2706
        %v2709 = vmul.f32 %v2707, %v2707
        %v2710 = vsel %vm1185, %v2708, 0.0
        %2711 = vadd.xlane.f32.xlu0 %v2710
        %v2712 = vpop.xlane.xlu0 %2711
        %v2713 = vsel %vm1185, %v2709, 0.0
        %2714 = vadd.xlane.f32.xlu0 %v2713
        %v2715 = vpop.xlane.xlu0 %2714
        %v2716 = vmul.f32 %v2712, %v1567
        %v2717 = vmul.f32 %v2715, %v1567
        %v2718 = vadd.f32 %v2716, 1e-12
        %v2719 = vadd.f32 %v2717, 1e-12
        %v2720 = vrsqrt.pop %v2718
        %v2721 = vrsqrt.pop %v2719
        %v2722 = vmul.f32 %v2706, %v2720
        %v2723 = vmul.f32 %v2707, %v2721
        %v2725 = vlaneseq
        %v2726 = vshrl.u32 %v2725, 7
        %v2727 = vsub.s32 0, %v2726
        %v2728 = vrot.slane %v2696, %v2727
        %v2730 = vmul.f32 %v2722, %v2728
        %v2731 = vmul.f32 %v2723, %v2728
        %v2733 = vlaneseq
        %v2734 = vshrl.u32 %v2733, 7
        %v2735 = vsub.s32 0, %v2734
        %v2736 = vrot.slane %v2697, %v2735
        %v2738 = vadd.f32 %v2730, %v2736
        %v2739 = vadd.f32 %v2731, %v2736
        %2740 = vst.msk [vmem:[#allocation2] sm:$0xff] %vm1185, %v2738
        %2741 = vst.msk [vmem:[#allocation2 + $0x8] sm:$0xff] %vm1185, %v2739
        %v2742 = vld [vmem:[#allocation2] sm:$0xff]
        %v2743 = vld [vmem:[#allocation2 + $0x8] sm:$0xff]
        %v2744 = vpack.c.bf16 %v2743, %v2742
        %v2745 = vld [vmem:[%s984] sm:$0xf]
        %v2746 = vld [vmem:[%s984 + $0x4] sm:$0xf]
        %v2747 = vld [vmem:[%s984 + $0x8] sm:$0xf]
        %v2748 = vld [vmem:[%s984 + $0xc] sm:$0xf]
        %v2749 = vld [vmem:[%s992] sm:$0x1]
        %v2751 = vlaneseq
        %v2752 = vshrl.u32 %v2751, 7
        %v2753 = vsub.s32 0, %v2752
        %v2754 = vrot.slane %v2749, %v2753
        %v2760 = vunpack.c.l.b16 %v2745
        %v2761 = vunpack.c.l.b16 %v2746
        %v2762 = vunpack.c.l.b16 %v2747
        %v2763 = vunpack.c.l.b16 %v2748
        %v2764 = vpack.c.b16 %v2761, %v2760
        %v2765 = vpack.c.b16 %v2763, %v2762
        %v2769 = vsel %vm1185, %v2744, 0
        %2771 = vmatprep.subr.bf16.mxu0 0
        %2772 = vmatpush1.bf16.msra.mxu0 %v2764
        %2773 = vmatprep.subr.bf16.mxu0 0
        %2774 = vmatpush1.bf16.msra.mxu0 %v2765
        %2775 = vmatprep.subr.bf16.mxu0 0
        %2776 = vmatpush1.bf16.msra.mxu0 0
        %2777 = vmatprep.subr.bf16.mxu0 0
        %2778 = vmatpush1.bf16.msra.mxu0 0
        %2779 = vmatprep.subr.bf16.mxu0 0
        %2780 = vmatpush1.bf16.msra.mxu0 0
        %2781 = vmatprep.subr.bf16.mxu0 0
        %2782 = vmatpush1.bf16.msra.mxu0 0
        %2783 = vmatprep.subr.bf16.mxu0 0
        %2784 = vmatpush1.bf16.msra.mxu0 0
        %2785 = vmatprep.subr.bf16.mxu0 0
        %2786 = vmatpush1.bf16.msra.mxu0 0
        %2787 = vmatprep.subr.bf16.mxu0 0
        %2788 = vmatpush1.bf16.msra.mxu0 0
        %2789 = vmatprep.subr.bf16.mxu0 0
        %2790 = vmatpush1.bf16.msra.mxu0 0
        %2791 = vmatprep.subr.bf16.mxu0 0
        %2792 = vmatpush1.bf16.msra.mxu0 0
        %2793 = vmatprep.subr.bf16.mxu0 0
        %2794 = vmatpush1.bf16.msra.mxu0 0
        %2795 = vmatprep.subr.bf16.mxu0 0
        %2796 = vmatpush1.bf16.msra.mxu0 0
        %2797 = vmatprep.subr.bf16.mxu0 0
        %2798 = vmatpush1.bf16.msra.mxu0 0
        %2799 = vmatprep.subr.bf16.mxu0 0
        %2800 = vmatpush1.bf16.msra.mxu0 0
        %2801 = vmatprep.subr.bf16.mxu0 0
        %2802 = vmatpush1.bf16.msra.mxu0 0
        %2803 = vmatprep.mubr.bf16.mxu0 0
        %2804 = vmatmul.mubr.bf16.gmra.mrb[0].mxu0 %v2769
        %v2805 = vpop.f32.mrb[0].mxu0
        %v2806 = vadd.f32 %v2754, %v2805
        %v2807 = vpop.f32.mrb[0].mxu0
        %v2808 = vpop.f32.mrb[0].mxu0
        %v2809 = vadd.f32 %v2754, %v2808
        %v2810 = vpop.f32.mrb[0].mxu0
        %2811 = vdwg.mxu0
        %v2812 = vmul.f32 %v2806, 0.5
        %v2813 = vmul.f32 %v2809, 0.5
        %v2814 = vrcp.pop 1.4142135
        %v2815 = vmul.f32 %v2806, %v2814
        %v2816 = vmul.f32 %v2809, %v2814
        %v2817 = verf.f32.pop %v2815
        %v2818 = verf.f32.pop %v2816
        %v2819 = vadd.f32 %v2817, 1.0
        %v2820 = vadd.f32 %v2818, 1.0
        %v2821 = vmul.f32 %v2812, %v2819
        %v2822 = vmul.f32 %v2813, %v2820
        %v2823 = vpack.c.bf16 %v2822, %v2821
        %v2824 = vld [vmem:[%s1001] sm:$0xf]
        %v2825 = vld [vmem:[%s1001 + $0x4] sm:$0xf]
        %v2826 = vld [vmem:[%s1001 + $0x8] sm:$0xf]
        %v2827 = vld [vmem:[%s1001 + $0xc] sm:$0xf]
        %v2828 = vld [vmem:[%s1001 + $0x10] sm:$0xf]
        %v2829 = vld [vmem:[%s1001 + $0x14] sm:$0xf]
        %v2830 = vld [vmem:[%s1001 + $0x18] sm:$0xf]
        %v2831 = vld [vmem:[%s1001 + $0x1c] sm:$0xf]
        %v2832 = vld [vmem:[%s1009] sm:$0x1]
        %v2834 = vlaneseq
        %v2835 = vshrl.u32 %v2834, 7
        %v2836 = vsub.s32 0, %v2835
        %v2837 = vrot.slane %v2832, %v2836
        %v2847 = vunpack.c.l.b16 %v2824
        %v2848 = vunpack.c.l.b16 %v2825
        %v2849 = vunpack.c.l.b16 %v2826
        %v2850 = vunpack.c.l.b16 %v2827
        %v2851 = vunpack.c.l.b16 %v2828
        %v2852 = vunpack.c.l.b16 %v2829
        %v2853 = vunpack.c.l.b16 %v2830
        %v2854 = vunpack.c.l.b16 %v2831
        %v2855 = vpack.c.b16 %v2848, %v2847
        %v2856 = vpack.c.b16 %v2850, %v2849
        %v2857 = vpack.c.b16 %v2852, %v2851
        %v2858 = vpack.c.b16 %v2854, %v2853
        %vm2863 = vcmask 523264
        %v2865 = vsel %vm2863, %v2823, 0
        %2867 = vmatprep.subr.bf16.mxu0 0
        %2868 = vmatpush1.bf16.msra.mxu0 %v2855
        %2869 = vmatprep.subr.bf16.mxu0 0
        %2870 = vmatpush1.bf16.msra.mxu0 %v2856
        %2871 = vmatprep.subr.bf16.mxu0 0
        %2872 = vmatpush1.bf16.msra.mxu0 %v2857
        %2873 = vmatprep.subr.bf16.mxu0 0
        %2874 = vmatpush1.bf16.msra.mxu0 %v2858
        %2875 = vmatprep.subr.bf16.mxu0 0
        %2876 = vmatpush1.bf16.msra.mxu0 0
        %2877 = vmatprep.subr.bf16.mxu0 0
        %2878 = vmatpush1.bf16.msra.mxu0 0
        %2879 = vmatprep.subr.bf16.mxu0 0
        %2880 = vmatpush1.bf16.msra.mxu0 0
        %2881 = vmatprep.subr.bf16.mxu0 0
        %2882 = vmatpush1.bf16.msra.mxu0 0
        %2883 = vmatprep.subr.bf16.mxu0 0
        %2884 = vmatpush1.bf16.msra.mxu0 0
        %2885 = vmatprep.subr.bf16.mxu0 0
        %2886 = vmatpush1.bf16.msra.mxu0 0
        %2887 = vmatprep.subr.bf16.mxu0 0
        %2888 = vmatpush1.bf16.msra.mxu0 0
        %2889 = vmatprep.subr.bf16.mxu0 0
        %2890 = vmatpush1.bf16.msra.mxu0 0
        %2891 = vmatprep.subr.bf16.mxu0 0
        %2892 = vmatpush1.bf16.msra.mxu0 0
        %2893 = vmatprep.subr.bf16.mxu0 0
        %2894 = vmatpush1.bf16.msra.mxu0 0
        %2895 = vmatprep.subr.bf16.mxu0 0
        %2896 = vmatpush1.bf16.msra.mxu0 0
        %2897 = vmatprep.subr.bf16.mxu0 0
        %2898 = vmatpush1.bf16.msra.mxu0 0
        %2899 = vmatprep.mubr.bf16.mxu0 0
        %2900 = vmatmul.mubr.bf16.gmra.mrb[0].mxu0 %v2865
        %v2901 = vpop.f32.mrb[0].mxu0
        %v2902 = vadd.f32 %v2837, %v2901
        %v2903 = vpop.f32.mrb[0].mxu0
        %v2904 = vpop.f32.mrb[0].mxu0
        %v2905 = vadd.f32 %v2837, %v2904
        %v2906 = vpop.f32.mrb[0].mxu0
        %2907 = vdwg.mxu0
        %v2908 = vadd.f32 %v2902, %v2742
        %v2909 = vadd.f32 %v2905, %v2743
        %v2910 = vld [vmem:[%s1017] sm:$0x1]
        %v2911 = vld [vmem:[%s1025] sm:$0x1]
        %v2912 = vsel %vm1185, %v2908, 0.0
        %2913 = vadd.xlane.f32.xlu0 %v2912
        %v2914 = vpop.xlane.xlu0 %2913
        %v2915 = vsel %vm1185, %v2909, 0.0
        %2916 = vadd.xlane.f32.xlu0 %v2915
        %v2917 = vpop.xlane.xlu0 %2916
        %v2918 = vmul.f32 %v2914, %v1567
        %v2919 = vmul.f32 %v2917, %v1567
        %v2920 = vsub.f32 %v2908, %v2918
        %v2921 = vsub.f32 %v2909, %v2919
        %v2922 = vmul.f32 %v2920, %v2920
        %v2923 = vmul.f32 %v2921, %v2921
        %v2924 = vsel %vm1185, %v2922, 0.0
        %2925 = vadd.xlane.f32.xlu0 %v2924
        %v2926 = vpop.xlane.xlu0 %2925
        %v2927 = vsel %vm1185, %v2923, 0.0
        %2928 = vadd.xlane.f32.xlu0 %v2927
        %v2929 = vpop.xlane.xlu0 %2928
        %v2930 = vmul.f32 %v2926, %v1567
        %v2931 = vmul.f32 %v2929, %v1567
        %v2932 = vadd.f32 %v2930, 1e-12
        %v2933 = vadd.f32 %v2931, 1e-12
        %v2934 = vrsqrt.pop %v2932
        %v2935 = vrsqrt.pop %v2933
        %v2936 = vmul.f32 %v2920, %v2934
        %v2937 = vmul.f32 %v2921, %v2935
        %v2939 = vlaneseq
        %v2940 = vshrl.u32 %v2939, 7
        %v2941 = vsub.s32 0, %v2940
        %v2942 = vrot.slane %v2910, %v2941
        %v2944 = vmul.f32 %v2936, %v2942
        %v2945 = vmul.f32 %v2937, %v2942
        %v2947 = vlaneseq
        %v2948 = vshrl.u32 %v2947, 7
        %v2949 = vsub.s32 0, %v2948
        %v2950 = vrot.slane %v2911, %v2949
        %v2952 = vadd.f32 %v2944, %v2950
        %v2953 = vadd.f32 %v2945, %v2950
        %2954 = vst.msk [vmem:[#allocation2] sm:$0xff] %vm1185, %v2952
        %2955 = vst.msk [vmem:[#allocation2 + $0x8] sm:$0xff] %vm1185, %v2953
        %s2956 = smul.u32 0, 8
        %s2957 = scalar_lea.vmem %s1146, %s2956 [#allocation25]
        %2958 = vst.msk [vmem:[%s2957] sm:$0xff] %vm1185, %v2952
        %2959 = vst.msk [vmem:[%s2957 + $0x8] sm:$0xff] %vm1185, %v2953
        %s2960 = sand.u32 %s521, 1
        %s2961 = scalar_lea.sflag [#allocation6], %s2960
        %s2962 = sand.u32 %s521, 1
        %s2963 = smul.addr %s2962, 16
        %s2964 = scalar_lea.vmem [#allocation25], %s2963
        // Predicated region
        $region169: #{tpu_custom_call.1} parent=91 // pred_check
          %p2965 = pneg %p531
        $region170: #{tpu_custom_call.1} parent=91 // pred_check_branch
          %2967 = sbr.rel (%p2965) target = $region172
        $region171: #{tpu_custom_call.1} parent=91 // pred_region
          %s2968 = smul.u32 2, %s40
          %s2970 = ssub.s32 256, 256
          %2971 = vsyncadd %s2961, %s2970
          %s2972 = smul.addr %s41, 4
          %s2973 = sadd.s32 %s2968, %s2972
          %s2974 = smul.addr %s2973, 128
          %s2975 = scalar_lea.hbm %s18, %s2974
          %s2976 = sshll.u32 %s2964, 4
          %s2977 = int_to_ptr.vmem [resolvable:$true] %s2976
          %2982 = dma.vmem_to_hbm [thread:$0]  %s2977, 256, %s2975, %s2961, 128, 128, 8
        $region172: #{tpu_custom_call.1} parent=91 // pred_fallthru
          _
      $region92: #{tpu_custom_call.1} parent=5 // pred_fallthru
        _
      %p2983 = scmp.le.s32.totalorder 2, %s31
      // Predicated region
      $region173: #{tpu_custom_call.1} parent=5 // pred_check
        %p2984 = pneg %p2983
      $region174: #{tpu_custom_call.1} parent=5 // pred_check_branch
        %2986 = sbr.rel (%p2984) target = $region176
      $region175: #{tpu_custom_call.1} parent=5 // pred_region
        %s2987 = ssub.s32 %s31, 2
        // Predicated region
        $region177: #{tpu_custom_call.1} parent=175 // pred_check
          %p2988 = pneg %p537
        $region178: #{tpu_custom_call.1} parent=175 // pred_check_branch
          %2990 = sbr.rel (%p2988) target = $region180
        $region179: #{tpu_custom_call.1} parent=175 // pred_region
          %s2991 = sand.u32 %s522, 1
          %s2992 = scalar_lea.sflag [#allocation6], %s2991
          %s2993 = sand.u32 %s522, 1
          %s2994 = smul.addr %s2993, 16
          %s2995 = scalar_lea.vmem [#allocation25], %s2994
          %2996 = dma.done %s2992, 256
        $region180: #{tpu_custom_call.1} parent=175 // pred_fallthru
          _
      $region176: #{tpu_custom_call.1} parent=5 // pred_fallthru
        _
    $region6: #{tpu_custom_call.1} parent=1 // loop_footer
      %s35 = sadd.s32 1, %s31
    $region7: #{tpu_custom_call.1} parent=1 // loop_footer_branch
      %30 = sbr.rel target = $region3
    $region8: #{tpu_custom_call.1} parent=1 // loop_exit
      _
    %2997 = vsyncpa [#allocation5], 1
    %s2998 = scalar_lea.sflag [#allocation5], 1
    %2999 = vsyncpa %s2998, 1
    %3000 = vsyncpa [#allocation8], 1
    %3001 = vsyncpa [#allocation6], 1
    %s3002 = scalar_lea.sflag [#allocation6], 1
    %3003 = vsyncpa %s3002, 1

</llo_original>
